<compile_context>
chip_gen: v7x
topology: tpu7x:2x2x1
jax: 0.10.0
libtpu: 0.0.40
codegen_flags: <defaults>
</compile_context>

<pallas_src>
import math

import jax
import jax.numpy as jnp
from jax.experimental import pallas as pl
from jax.experimental.pallas import tpu as pltpu  # noqa: F401  (TPU backend)

# ----------------------------- config (small) --------------------------------
D_MODEL = 32
NHEAD = 4
HEAD_DIM = D_MODEL // NHEAD
DIM_FF = 64
L_TGT = 8       # target sequence length
S_MEM = 16      # memory sequence length
BATCH = 2
LN_EPS = 1e-5


# ------------------------------- kernel --------------------------------------
def make_kernel(n_batch, nhead, head_dim, d_model, dim_ff):
    E, F, H, HD = d_model, dim_ff, nhead, head_dim

    def _pmod(x, n):
        if n & (n - 1) == 0:                       # power of two -> AND
            return jnp.bitwise_and(x, n - 1)
        return jax.lax.rem(x, n)

    def _batch_mask(rows, cols):
        # rows/cols are flattened seq*batch indices; batch id == index % n_batch
        r = jax.lax.broadcasted_iota(jnp.int32, (rows, cols), 0)
        c = jax.lax.broadcasted_iota(jnp.int32, (rows, cols), 1)
        return _pmod(r, n_batch) == _pmod(c, n_batch)

    def _ln(x, g, b):
        mu = jnp.mean(x, axis=-1, keepdims=True)
        var = jnp.mean((x - mu) ** 2, axis=-1, keepdims=True)
        return (x - mu) * jax.lax.rsqrt(var + LN_EPS) * g + b

    def _attend(Q, K, Vv, wo, bo, mask):
        # scale already folded into Wq / bq. Heads accumulated straight through
        # their slice of the output projection (no lane-axis concatenate).
        out = jnp.zeros((Q.shape[0], E), jnp.float32)
        for h in range(H):
            sl = slice(h * HD, (h + 1) * HD)
            s = jnp.dot(Q[:, sl], K[:, sl].T, preferred_element_type=jnp.float32)
            s = jnp.where(mask, s, -1e30)
            s = s - jnp.max(s, axis=-1, keepdims=True)
            p = jnp.exp(s)
            p = p * pl.reciprocal(jnp.sum(p, axis=-1, keepdims=True), approx=True)
            oh = jnp.dot(p, Vv[:, sl], preferred_element_type=jnp.float32)
            out = out + jnp.dot(oh, wo[sl, :], preferred_element_type=jnp.float32)
        return out + bo

    def kernel(tgt_ref, qpos_ref, mem_ref, pos_ref, w_ref, w2_ref, vec_ref, out_ref):
        tgt = tgt_ref[...]        # (N*L, E)
        qpos = qpos_ref[...]      # (N*L, E)
        mem = mem_ref[...]        # (N*S, E)
        pos = pos_ref[...]        # (N*S, E)
        W = w_ref[...]            # (E, 8E + F) packed weights
        w2 = w2_ref[...]          # (F, E)
        vecs = vec_ref[...]       # (12, 3E) packed biases / LN params

        # -------- unpack packed parameters (static slices) --------
        sa_wqk = W[:, 0:2 * E]            # fused Wq|Wk (scale folded into Wq)
        sa_wv = W[:, 2 * E:3 * E]
        sa_wo = W[:, 3 * E:4 * E]
        ca_wq = W[:, 4 * E:5 * E]         # scale folded
        ca_wk = W[:, 5 * E:6 * E]
        ca_wv = W[:, 6 * E:7 * E]
        ca_wo = W[:, 7 * E:8 * E]
        w1 = W[:, 8 * E:8 * E + F]

        sa_bqk = vecs[0:1, 0:2 * E]
        sa_bv = vecs[0:1, 2 * E:3 * E]
        ca_bq = vecs[1:2, 0:E]
        ca_bk = vecs[1:2, E:2 * E]
        ca_bv = vecs[1:2, 2 * E:3 * E]
        b1 = vecs[2:3, 0:F]
        sa_bo = vecs[3:4, 0:E]
        ca_bo = vecs[4:5, 0:E]
        b2 = vecs[5:6, 0:E]
        ln1_g = vecs[6:7, 0:E]
        ln1_b = vecs[7:8, 0:E]
        ln2_g = vecs[8:9, 0:E]
        ln2_b = vecs[9:10, 0:E]
        ln3_g = vecs[10:11, 0:E]
        ln3_b = vecs[11:12, 0:E]

        R = tgt.shape[0]
        M = mem.shape[0]
        self_mask = _batch_mask(R, R)
        cross_mask = _batch_mask(R, M)

        # -------- self attention (fused Q|K projection, post-norm) --------
        qk_in = tgt + qpos
        QK = jnp.dot(qk_in, sa_wqk, preferred_element_type=jnp.float32) + sa_bqk
        Vs = jnp.dot(tgt, sa_wv, preferred_element_type=jnp.float32) + sa_bv
        sa = _attend(QK[:, 0:E], QK[:, E:2 * E], Vs, sa_wo, sa_bo, self_mask)
        x = _ln(tgt + sa, ln1_g, ln1_b)

        # -------- cross attention --------
        Qc = jnp.dot(x + qpos, ca_wq, preferred_element_type=jnp.float32) + ca_bq
        Kc = jnp.dot(mem + pos, ca_wk, preferred_element_type=jnp.float32) + ca_bk
        Vc = jnp.dot(mem, ca_wv, preferred_element_type=jnp.float32) + ca_bv
        ca = _attend(Qc, Kc, Vc, ca_wo, ca_bo, cross_mask)
        x = _ln(x + ca, ln2_g, ln2_b)

        # -------- feed-forward (relu) --------
        hdn = jnp.maximum(jnp.dot(x, w1, preferred_element_type=jnp.float32) + b1, 0.0)
        ff = jnp.dot(hdn, w2, preferred_element_type=jnp.float32) + b2
        x = _ln(x + ff, ln3_g, ln3_b)

        out_ref[...] = x

    return kernel


# ------------------------------- wrapper --------------------------------------
@jax.jit
def decoder_layer_forward(tgt, memory, query_pos, pos, packed):
    """tgt/query_pos: (L, N, E); memory/pos: (S, N, E) — torch convention.

    Only free row-major reshapes around the kernel (no HBM transposes);
    row index r of the flattened (seq*batch, E) slab belongs to batch r % N.
    """
    L, N, E = tgt.shape
    S = memory.shape[0]
    kernel = make_kernel(N, NHEAD, HEAD_DIM, D_MODEL, DIM_FF)

    out2 = pl.pallas_call(
        kernel,
        out_shape=jax.ShapeDtypeStruct((L * N, E), jnp.float32),
    )(
        tgt.reshape(L * N, E).astype(jnp.float32),
        query_pos.reshape(L * N, E).astype(jnp.float32),
        memory.reshape(S * N, E).astype(jnp.float32),
        pos.reshape(S * N, E).astype(jnp.float32),
        packed["w_pack"], packed["w2"], packed["vecs"],
    )
    return out2.reshape(L, N, E)


# --------------------------- parameters ----------------------------------------
def init_raw_params(key):
    """Torch-like raw parameters (for the pure-JAX reference)."""
    keys = jax.random.split(key, 8)
    E, F = D_MODEL, DIM_FF

    def mha_params(k):
        k1, k2, k3 = jax.random.split(k, 3)
        in_w = 0.02 * jax.random.normal(k1, (3 * E, E), jnp.float32)   # in_proj_weight
        in_b = 0.01 * jax.random.normal(k2, (3 * E,), jnp.float32)     # in_proj_bias
        out_w = 0.02 * jax.random.normal(k3, (E, E), jnp.float32)      # out_proj.weight
        out_b = jnp.zeros((E,), jnp.float32)
        return {
            "wq_t": in_w[:E].T, "wk_t": in_w[E:2 * E].T, "wv_t": in_w[2 * E:].T,
            "bq": in_b[:E], "bk": in_b[E:2 * E], "bv": in_b[2 * E:],
            "wo_t": out_w.T, "bo": out_b,
        }

    sa = mha_params(keys[0])
    ca = mha_params(keys[1])
    w1 = 0.02 * jax.random.normal(keys[2], (F, E), jnp.float32)   # linear1.weight
    b1 = 0.01 * jax.random.normal(keys[3], (F,), jnp.float32)
    w2 = 0.02 * jax.random.normal(keys[4], (E, F), jnp.float32)   # linear2.weight
    b2 = 0.01 * jax.random.normal(keys[5], (E,), jnp.float32)

    raw = {}
    for name, d in (("sa", sa), ("ca", ca)):
        for kk, v in d.items():
            raw[f"{name}_{kk}"] = v
    ones = jnp.ones((E,), jnp.float32)
    zeros = jnp.zeros((E,), jnp.float32)
    raw.update({
        "w1_t": w1.T, "b1": b1, "w2_t": w2.T, "b2": b2,
        "ln1_g": ones, "ln1_b": zeros,
        "ln2_g": ones, "ln2_b": zeros,
        "ln3_g": ones, "ln3_b": zeros,
    })
    return raw


def pack_params(p):
    """Fold the attention scale into Wq/bq and pack everything into 3 arrays."""
    E, F = D_MODEL, DIM_FF
    scale = 1.0 / math.sqrt(HEAD_DIM)

    w_pack = jnp.concatenate([
        p["sa_wq_t"] * scale, p["sa_wk_t"], p["sa_wv_t"], p["sa_wo_t"],
        p["ca_wq_t"] * scale, p["ca_wk_t"], p["ca_wv_t"], p["ca_wo_t"],
        p["w1_t"],
    ], axis=1)                                          # (E, 8E + F) = (32, 320)

    VW = 3 * E

    def row(v):
        return jnp.pad(v, (0, VW - v.shape[0]))

    vecs = jnp.stack([
        row(jnp.concatenate([p["sa_bq"] * scale, p["sa_bk"], p["sa_bv"]])),
        row(jnp.concatenate([p["ca_bq"] * scale, p["ca_bk"], p["ca_bv"]])),
        row(p["b1"]),
        row(p["sa_bo"]), row(p["ca_bo"]), row(p["b2"]),
        row(p["ln1_g"]), row(p["ln1_b"]),
        row(p["ln2_g"]), row(p["ln2_b"]),
        row(p["ln3_g"]), row(p["ln3_b"]),
    ], axis=0)                                          # (12, 96)

    return {"w_pack": w_pack, "w2": p["w2_t"], "vecs": vecs}


# ---------------------------- pure-JAX reference -------------------------------
def ref_forward(tgt, memory, query_pos, pos, p):
    HIGH = jax.lax.Precision.HIGHEST

    def ln(x, g, b):
        mu = jnp.mean(x, -1, keepdims=True)
        var = jnp.mean((x - mu) ** 2, -1, keepdims=True)
        return (x - mu) / jnp.sqrt(var + LN_EPS) * g + b

    def mha(q_in, k_in, v_in, wq, bq, wk, bk, wv, bv, wo, bo):
        Q = jnp.dot(q_in, wq, precision=HIGH) + bq
        K = jnp.dot(k_in, wk, precision=HIGH) + bk
        V = jnp.dot(v_in, wv, precision=HIGH) + bv
        outs = []
        for h in range(NHEAD):
            sl = slice(h * HEAD_DIM, (h + 1) * HEAD_DIM)
            s = jnp.dot(Q[:, sl], K[:, sl].T, precision=HIGH) / math.sqrt(HEAD_DIM)
            a = jax.nn.softmax(s, axis=-1)
            outs.append(jnp.dot(a, V[:, sl], precision=HIGH))
        return jnp.dot(jnp.concatenate(outs, -1), wo, precision=HIGH) + bo

    def one(t, m, qp, ps):
        sa = mha(t + qp, t + qp, t,
                 p["sa_wq_t"], p["sa_bq"], p["sa_wk_t"], p["sa_bk"],
                 p["sa_wv_t"], p["sa_bv"], p["sa_wo_t"], p["sa_bo"])
        x = ln(t + sa, p["ln1_g"], p["ln1_b"])
        ca = mha(x + qp, m + ps, m,
                 p["ca_wq_t"], p["ca_bq"], p["ca_wk_t"], p["ca_bk"],
                 p["ca_wv_t"], p["ca_bv"], p["ca_wo_t"], p["ca_bo"])
        x = ln(x + ca, p["ln2_g"], p["ln2_b"])
        hdn = jnp.maximum(jnp.dot(x, p["w1_t"], precision=HIGH) + p["b1"], 0.0)
        ff = jnp.dot(hdn, p["w2_t"], precision=HIGH) + p["b2"]
        return ln(x + ff, p["ln3_g"], p["ln3_b"])

    return jax.vmap(one, in_axes=1, out_axes=1)(tgt, memory, query_pos, pos)


# ----------------------------------- main --------------------------------------
if __name__ == "__main__":
    key = jax.random.PRNGKey(0)
    k_tgt, k_mem, k_qp, k_pos, k_par = jax.random.split(key, 5)

    tgt = jax.random.normal(k_tgt, (L_TGT, BATCH, D_MODEL), jnp.float32)
    memory = jax.random.normal(k_mem, (S_MEM, BATCH, D_MODEL), jnp.float32)
    query_pos = jax.random.normal(k_qp, (L_TGT, BATCH, D_MODEL), jnp.float32)
    pos = jax.random.normal(k_pos, (S_MEM, BATCH, D_MODEL), jnp.float32)

    raw = init_raw_params(k_par)
    packed = pack_params(raw)

    out = jax.block_until_ready(decoder_layer_forward(tgt, memory, query_pos, pos, packed))
    ref = jax.block_until_ready(ref_forward(tgt, memory, query_pos, pos, raw))

    assert out.shape == (L_TGT, BATCH, D_MODEL)
    # f32 everywhere except the EUP approx reciprocal in softmax -> tight tolerance.
    max_err = jnp.max(jnp.abs(out - ref))
    assert jnp.allclose(out, ref, rtol=2e-3, atol=2e-3), f"mismatch vs reference (max abs err {max_err})"

    print("KERNEL_OK")
</pallas_src>

<mosaic_0001>
module attributes {stable_mosaic.version = 11 : i64} {
  func.func @kernel(%arg0: memref<16x32xf32, #tpu.memory_space<vmem>>, %arg1: memref<16x32xf32, #tpu.memory_space<vmem>>, %arg2: memref<32x32xf32, #tpu.memory_space<vmem>>, %arg3: memref<32x32xf32, #tpu.memory_space<vmem>>, %arg4: memref<32x320xf32, #tpu.memory_space<vmem>>, %arg5: memref<64x32xf32, #tpu.memory_space<vmem>>, %arg6: memref<12x96xf32, #tpu.memory_space<vmem>>, %arg7: memref<16x32xf32, #tpu.memory_space<vmem>>) attributes {dimension_semantics = [], scalar_prefetch = 0 : i64, scratch_operands = 0 : i64, tpu.core_type = #tpu.core_type<tc>} {
    %c0 = arith.constant 0 : index
    %c0_0 = arith.constant 0 : index
    %0 = vector.load %arg0[%c0, %c0_0] : memref<16x32xf32, #tpu.memory_space<vmem>>, vector<16x32xf32>
    %c0_1 = arith.constant 0 : index
    %c0_2 = arith.constant 0 : index
    %1 = vector.load %arg1[%c0_1, %c0_2] : memref<16x32xf32, #tpu.memory_space<vmem>>, vector<16x32xf32>
    %c0_3 = arith.constant 0 : index
    %c0_4 = arith.constant 0 : index
    %2 = vector.load %arg2[%c0_3, %c0_4] : memref<32x32xf32, #tpu.memory_space<vmem>>, vector<32x32xf32>
    %c0_5 = arith.constant 0 : index
    %c0_6 = arith.constant 0 : index
    %3 = vector.load %arg3[%c0_5, %c0_6] : memref<32x32xf32, #tpu.memory_space<vmem>>, vector<32x32xf32>
    %c0_7 = arith.constant 0 : index
    %c0_8 = arith.constant 0 : index
    %4 = vector.load %arg4[%c0_7, %c0_8] : memref<32x320xf32, #tpu.memory_space<vmem>>, vector<32x320xf32>
    %c0_9 = arith.constant 0 : index
    %c0_10 = arith.constant 0 : index
    %5 = vector.load %arg5[%c0_9, %c0_10] : memref<64x32xf32, #tpu.memory_space<vmem>>, vector<64x32xf32>
    %c0_11 = arith.constant 0 : index
    %c0_12 = arith.constant 0 : index
    %6 = vector.load %arg6[%c0_11, %c0_12] : memref<12x96xf32, #tpu.memory_space<vmem>>, vector<12x96xf32>
    %7 = vector.extract_strided_slice %4 {offsets = [0, 0], sizes = [32, 64], strides = [1, 1]} : vector<32x320xf32> to vector<32x64xf32>
    %8 = vector.extract_strided_slice %4 {offsets = [0, 64], sizes = [32, 32], strides = [1, 1]} : vector<32x320xf32> to vector<32x32xf32>
    %9 = vector.extract_strided_slice %4 {offsets = [0, 96], sizes = [32, 32], strides = [1, 1]} : vector<32x320xf32> to vector<32x32xf32>
    %10 = vector.extract_strided_slice %4 {offsets = [0, 128], sizes = [32, 32], strides = [1, 1]} : vector<32x320xf32> to vector<32x32xf32>
    %11 = vector.extract_strided_slice %4 {offsets = [0, 160], sizes = [32, 32], strides = [1, 1]} : vector<32x320xf32> to vector<32x32xf32>
    %12 = vector.extract_strided_slice %4 {offsets = [0, 192], sizes = [32, 32], strides = [1, 1]} : vector<32x320xf32> to vector<32x32xf32>
    %13 = vector.extract_strided_slice %4 {offsets = [0, 224], sizes = [32, 32], strides = [1, 1]} : vector<32x320xf32> to vector<32x32xf32>
    %14 = vector.extract_strided_slice %4 {offsets = [0, 256], sizes = [32, 64], strides = [1, 1]} : vector<32x320xf32> to vector<32x64xf32>
    %15 = vector.extract_strided_slice %6 {offsets = [0, 0], sizes = [1, 64], strides = [1, 1]} : vector<12x96xf32> to vector<1x64xf32>
    %16 = vector.extract_strided_slice %6 {offsets = [0, 64], sizes = [1, 32], strides = [1, 1]} : vector<12x96xf32> to vector<1x32xf32>
    %17 = vector.extract_strided_slice %6 {offsets = [1, 0], sizes = [1, 32], strides = [1, 1]} : vector<12x96xf32> to vector<1x32xf32>
    %18 = vector.extract_strided_slice %6 {offsets = [1, 32], sizes = [1, 32], strides = [1, 1]} : vector<12x96xf32> to vector<1x32xf32>
    %19 = vector.extract_strided_slice %6 {offsets = [1, 64], sizes = [1, 32], strides = [1, 1]} : vector<12x96xf32> to vector<1x32xf32>
    %20 = vector.extract_strided_slice %6 {offsets = [2, 0], sizes = [1, 64], strides = [1, 1]} : vector<12x96xf32> to vector<1x64xf32>
    %21 = vector.extract_strided_slice %6 {offsets = [3, 0], sizes = [1, 32], strides = [1, 1]} : vector<12x96xf32> to vector<1x32xf32>
    %22 = vector.extract_strided_slice %6 {offsets = [4, 0], sizes = [1, 32], strides = [1, 1]} : vector<12x96xf32> to vector<1x32xf32>
    %23 = vector.extract_strided_slice %6 {offsets = [5, 0], sizes = [1, 32], strides = [1, 1]} : vector<12x96xf32> to vector<1x32xf32>
    %24 = vector.extract_strided_slice %6 {offsets = [6, 0], sizes = [1, 32], strides = [1, 1]} : vector<12x96xf32> to vector<1x32xf32>
    %25 = vector.extract_strided_slice %6 {offsets = [7, 0], sizes = [1, 32], strides = [1, 1]} : vector<12x96xf32> to vector<1x32xf32>
    %26 = vector.extract_strided_slice %6 {offsets = [8, 0], sizes = [1, 32], strides = [1, 1]} : vector<12x96xf32> to vector<1x32xf32>
    %27 = vector.extract_strided_slice %6 {offsets = [9, 0], sizes = [1, 32], strides = [1, 1]} : vector<12x96xf32> to vector<1x32xf32>
    %28 = vector.extract_strided_slice %6 {offsets = [10, 0], sizes = [1, 32], strides = [1, 1]} : vector<12x96xf32> to vector<1x32xf32>
    %29 = vector.extract_strided_slice %6 {offsets = [11, 0], sizes = [1, 32], strides = [1, 1]} : vector<12x96xf32> to vector<1x32xf32>
    %30 = tpu.iota {dimensions = array<i32: 0>} : vector<16x16xi32>
    %31 = tpu.iota {dimensions = array<i32: 1>} : vector<16x16xi32>
    %c1_i32 = arith.constant 1 : i32
    %32 = vector.broadcast %c1_i32 : i32 to vector<16x16xi32>
    %33 = arith.andi %30, %32 : vector<16x16xi32>
    %c1_i32_13 = arith.constant 1 : i32
    %34 = vector.broadcast %c1_i32_13 : i32 to vector<16x16xi32>
    %35 = arith.andi %31, %34 : vector<16x16xi32>
    %36 = arith.cmpi eq, %33, %35 : vector<16x16xi32>
    %37 = tpu.iota {dimensions = array<i32: 0>} : vector<16x32xi32>
    %38 = tpu.iota {dimensions = array<i32: 1>} : vector<16x32xi32>
    %c1_i32_14 = arith.constant 1 : i32
    %39 = vector.broadcast %c1_i32_14 : i32 to vector<16x32xi32>
    %40 = arith.andi %37, %39 : vector<16x32xi32>
    %c1_i32_15 = arith.constant 1 : i32
    %41 = vector.broadcast %c1_i32_15 : i32 to vector<16x32xi32>
    %42 = arith.andi %38, %41 : vector<16x32xi32>
    %43 = arith.cmpi eq, %40, %42 : vector<16x32xi32>
    %44 = arith.addf %0, %1 : vector<16x32xf32>
    %cst = arith.constant dense<0.000000e+00> : vector<16x64xf32>
    %45 = tpu.matmul %44, %7, %cst {dimension_numbers = #tpu.dot_dimension_numbers<[1], [0], [0], [1], [0, 0, 1, 1], [], []>} : vector<16x32xf32>, vector<32x64xf32>, vector<16x64xf32> -> vector<16x64xf32>
    %46 = vector.broadcast %15 : vector<1x64xf32> to vector<16x64xf32>
    %47 = arith.addf %45, %46 : vector<16x64xf32>
    %cst_16 = arith.constant dense<0.000000e+00> : vector<16x32xf32>
    %48 = tpu.matmul %0, %8, %cst_16 {dimension_numbers = #tpu.dot_dimension_numbers<[1], [0], [0], [1], [0, 0, 1, 1], [], []>} : vector<16x32xf32>, vector<32x32xf32>, vector<16x32xf32> -> vector<16x32xf32>
    %49 = vector.broadcast %16 : vector<1x32xf32> to vector<16x32xf32>
    %50 = arith.addf %48, %49 : vector<16x32xf32>
    %51 = vector.extract_strided_slice %47 {offsets = [0, 0], sizes = [16, 32], strides = [1, 1]} : vector<16x64xf32> to vector<16x32xf32>
    %52 = vector.extract_strided_slice %47 {offsets = [0, 32], sizes = [16, 32], strides = [1, 1]} : vector<16x64xf32> to vector<16x32xf32>
    %cst_17 = arith.constant 0.000000e+00 : f32
    %53 = vector.broadcast %cst_17 : f32 to vector<16x32xf32>
    %54 = vector.extract_strided_slice %51 {offsets = [0, 0], sizes = [16, 8], strides = [1, 1]} : vector<16x32xf32> to vector<16x8xf32>
    %55 = vector.extract_strided_slice %52 {offsets = [0, 0], sizes = [16, 8], strides = [1, 1]} : vector<16x32xf32> to vector<16x8xf32>
    %56 = tpu.transpose %55, [1, 0] : vector<16x8xf32> -> vector<8x16xf32>
    %cst_18 = arith.constant dense<0.000000e+00> : vector<16x16xf32>
    %57 = tpu.matmul %54, %56, %cst_18 {dimension_numbers = #tpu.dot_dimension_numbers<[1], [0], [0], [1], [0, 0, 1, 1], [], []>} : vector<16x8xf32>, vector<8x16xf32>, vector<16x16xf32> -> vector<16x16xf32>
    %cst_19 = arith.constant -1.000000e+30 : f32
    %58 = vector.broadcast %cst_19 : f32 to vector<16x16xf32>
    %59 = arith.select %36, %57, %58 : vector<16x16xi1>, vector<16x16xf32>
    %cst_20 = arith.constant dense<0xFF800000> : vector<16xf32>
    %60 = vector.multi_reduction <maximumf>, %59, %cst_20 [1] : vector<16x16xf32> to vector<16xf32>
    %61 = vector.shape_cast %60 : vector<16xf32> to vector<16x1xf32>
    %62 = vector.broadcast %61 : vector<16x1xf32> to vector<16x16xf32>
    %63 = arith.subf %59, %62 : vector<16x16xf32>
    %64 = math.exp %63 : vector<16x16xf32>
    %cst_21 = arith.constant dense<0.000000e+00> : vector<16xf32>
    %65 = vector.multi_reduction <add>, %64, %cst_21 [1] : vector<16x16xf32> to vector<16xf32>
    %66 = vector.shape_cast %65 : vector<16xf32> to vector<16x1xf32>
    %67 = tpu.reciprocal %66 {approx = true} : vector<16x1xf32> -> vector<16x1xf32>
    %68 = vector.broadcast %67 : vector<16x1xf32> to vector<16x16xf32>
    %69 = arith.mulf %64, %68 : vector<16x16xf32>
    %70 = vector.extract_strided_slice %50 {offsets = [0, 0], sizes = [16, 8], strides = [1, 1]} : vector<16x32xf32> to vector<16x8xf32>
    %cst_22 = arith.constant dense<0.000000e+00> : vector<16x8xf32>
    %71 = tpu.matmul %69, %70, %cst_22 {dimension_numbers = #tpu.dot_dimension_numbers<[1], [0], [0], [1], [0, 0, 1, 1], [], []>} : vector<16x16xf32>, vector<16x8xf32>, vector<16x8xf32> -> vector<16x8xf32>
    %72 = vector.extract_strided_slice %9 {offsets = [0, 0], sizes = [8, 32], strides = [1, 1]} : vector<32x32xf32> to vector<8x32xf32>
    %cst_23 = arith.constant dense<0.000000e+00> : vector<16x32xf32>
    %73 = tpu.matmul %71, %72, %cst_23 {dimension_numbers = #tpu.dot_dimension_numbers<[1], [0], [0], [1], [0, 0, 1, 1], [], []>} : vector<16x8xf32>, vector<8x32xf32>, vector<16x32xf32> -> vector<16x32xf32>
    %74 = arith.addf %53, %73 : vector<16x32xf32>
    %75 = vector.extract_strided_slice %51 {offsets = [0, 8], sizes = [16, 8], strides = [1, 1]} : vector<16x32xf32> to vector<16x8xf32>
    %76 = vector.extract_strided_slice %52 {offsets = [0, 8], sizes = [16, 8], strides = [1, 1]} : vector<16x32xf32> to vector<16x8xf32>
    %77 = tpu.transpose %76, [1, 0] : vector<16x8xf32> -> vector<8x16xf32>
    %cst_24 = arith.constant dense<0.000000e+00> : vector<16x16xf32>
    %78 = tpu.matmul %75, %77, %cst_24 {dimension_numbers = #tpu.dot_dimension_numbers<[1], [0], [0], [1], [0, 0, 1, 1], [], []>} : vector<16x8xf32>, vector<8x16xf32>, vector<16x16xf32> -> vector<16x16xf32>
    %cst_25 = arith.constant -1.000000e+30 : f32
    %79 = vector.broadcast %cst_25 : f32 to vector<16x16xf32>
    %80 = arith.select %36, %78, %79 : vector<16x16xi1>, vector<16x16xf32>
    %cst_26 = arith.constant dense<0xFF800000> : vector<16xf32>
    %81 = vector.multi_reduction <maximumf>, %80, %cst_26 [1] : vector<16x16xf32> to vector<16xf32>
    %82 = vector.shape_cast %81 : vector<16xf32> to vector<16x1xf32>
    %83 = vector.broadcast %82 : vector<16x1xf32> to vector<16x16xf32>
    %84 = arith.subf %80, %83 : vector<16x16xf32>
    %85 = math.exp %84 : vector<16x16xf32>
    %cst_27 = arith.constant dense<0.000000e+00> : vector<16xf32>
    %86 = vector.multi_reduction <add>, %85, %cst_27 [1] : vector<16x16xf32> to vector<16xf32>
    %87 = vector.shape_cast %86 : vector<16xf32> to vector<16x1xf32>
    %88 = tpu.reciprocal %87 {approx = true} : vector<16x1xf32> -> vector<16x1xf32>
    %89 = vector.broadcast %88 : vector<16x1xf32> to vector<16x16xf32>
    %90 = arith.mulf %85, %89 : vector<16x16xf32>
    %91 = vector.extract_strided_slice %50 {offsets = [0, 8], sizes = [16, 8], strides = [1, 1]} : vector<16x32xf32> to vector<16x8xf32>
    %cst_28 = arith.constant dense<0.000000e+00> : vector<16x8xf32>
    %92 = tpu.matmul %90, %91, %cst_28 {dimension_numbers = #tpu.dot_dimension_numbers<[1], [0], [0], [1], [0, 0, 1, 1], [], []>} : vector<16x16xf32>, vector<16x8xf32>, vector<16x8xf32> -> vector<16x8xf32>
    %93 = vector.extract_strided_slice %9 {offsets = [8, 0], sizes = [8, 32], strides = [1, 1]} : vector<32x32xf32> to vector<8x32xf32>
    %cst_29 = arith.constant dense<0.000000e+00> : vector<16x32xf32>
    %94 = tpu.matmul %92, %93, %cst_29 {dimension_numbers = #tpu.dot_dimension_numbers<[1], [0], [0], [1], [0, 0, 1, 1], [], []>} : vector<16x8xf32>, vector<8x32xf32>, vector<16x32xf32> -> vector<16x32xf32>
    %95 = arith.addf %74, %94 : vector<16x32xf32>
    %96 = vector.extract_strided_slice %51 {offsets = [0, 16], sizes = [16, 8], strides = [1, 1]} : vector<16x32xf32> to vector<16x8xf32>
    %97 = vector.extract_strided_slice %52 {offsets = [0, 16], sizes = [16, 8], strides = [1, 1]} : vector<16x32xf32> to vector<16x8xf32>
    %98 = tpu.transpose %97, [1, 0] : vector<16x8xf32> -> vector<8x16xf32>
    %cst_30 = arith.constant dense<0.000000e+00> : vector<16x16xf32>
    %99 = tpu.matmul %96, %98, %cst_30 {dimension_numbers = #tpu.dot_dimension_numbers<[1], [0], [0], [1], [0, 0, 1, 1], [], []>} : vector<16x8xf32>, vector<8x16xf32>, vector<16x16xf32> -> vector<16x16xf32>
    %cst_31 = arith.constant -1.000000e+30 : f32
    %100 = vector.broadcast %cst_31 : f32 to vector<16x16xf32>
    %101 = arith.select %36, %99, %100 : vector<16x16xi1>, vector<16x16xf32>
    %cst_32 = arith.constant dense<0xFF800000> : vector<16xf32>
    %102 = vector.multi_reduction <maximumf>, %101, %cst_32 [1] : vector<16x16xf32> to vector<16xf32>
    %103 = vector.shape_cast %102 : vector<16xf32> to vector<16x1xf32>
    %104 = vector.broadcast %103 : vector<16x1xf32> to vector<16x16xf32>
    %105 = arith.subf %101, %104 : vector<16x16xf32>
    %106 = math.exp %105 : vector<16x16xf32>
    %cst_33 = arith.constant dense<0.000000e+00> : vector<16xf32>
    %107 = vector.multi_reduction <add>, %106, %cst_33 [1] : vector<16x16xf32> to vector<16xf32>
    %108 = vector.shape_cast %107 : vector<16xf32> to vector<16x1xf32>
    %109 = tpu.reciprocal %108 {approx = true} : vector<16x1xf32> -> vector<16x1xf32>
    %110 = vector.broadcast %109 : vector<16x1xf32> to vector<16x16xf32>
    %111 = arith.mulf %106, %110 : vector<16x16xf32>
    %112 = vector.extract_strided_slice %50 {offsets = [0, 16], sizes = [16, 8], strides = [1, 1]} : vector<16x32xf32> to vector<16x8xf32>
    %cst_34 = arith.constant dense<0.000000e+00> : vector<16x8xf32>
    %113 = tpu.matmul %111, %112, %cst_34 {dimension_numbers = #tpu.dot_dimension_numbers<[1], [0], [0], [1], [0, 0, 1, 1], [], []>} : vector<16x16xf32>, vector<16x8xf32>, vector<16x8xf32> -> vector<16x8xf32>
    %114 = vector.extract_strided_slice %9 {offsets = [16, 0], sizes = [8, 32], strides = [1, 1]} : vector<32x32xf32> to vector<8x32xf32>
    %cst_35 = arith.constant dense<0.000000e+00> : vector<16x32xf32>
    %115 = tpu.matmul %113, %114, %cst_35 {dimension_numbers = #tpu.dot_dimension_numbers<[1], [0], [0], [1], [0, 0, 1, 1], [], []>} : vector<16x8xf32>, vector<8x32xf32>, vector<16x32xf32> -> vector<16x32xf32>
    %116 = arith.addf %95, %115 : vector<16x32xf32>
    %117 = vector.extract_strided_slice %51 {offsets = [0, 24], sizes = [16, 8], strides = [1, 1]} : vector<16x32xf32> to vector<16x8xf32>
    %118 = vector.extract_strided_slice %52 {offsets = [0, 24], sizes = [16, 8], strides = [1, 1]} : vector<16x32xf32> to vector<16x8xf32>
    %119 = tpu.transpose %118, [1, 0] : vector<16x8xf32> -> vector<8x16xf32>
    %cst_36 = arith.constant dense<0.000000e+00> : vector<16x16xf32>
    %120 = tpu.matmul %117, %119, %cst_36 {dimension_numbers = #tpu.dot_dimension_numbers<[1], [0], [0], [1], [0, 0, 1, 1], [], []>} : vector<16x8xf32>, vector<8x16xf32>, vector<16x16xf32> -> vector<16x16xf32>
    %cst_37 = arith.constant -1.000000e+30 : f32
    %121 = vector.broadcast %cst_37 : f32 to vector<16x16xf32>
    %122 = arith.select %36, %120, %121 : vector<16x16xi1>, vector<16x16xf32>
    %cst_38 = arith.constant dense<0xFF800000> : vector<16xf32>
    %123 = vector.multi_reduction <maximumf>, %122, %cst_38 [1] : vector<16x16xf32> to vector<16xf32>
    %124 = vector.shape_cast %123 : vector<16xf32> to vector<16x1xf32>
    %125 = vector.broadcast %124 : vector<16x1xf32> to vector<16x16xf32>
    %126 = arith.subf %122, %125 : vector<16x16xf32>
    %127 = math.exp %126 : vector<16x16xf32>
    %cst_39 = arith.constant dense<0.000000e+00> : vector<16xf32>
    %128 = vector.multi_reduction <add>, %127, %cst_39 [1] : vector<16x16xf32> to vector<16xf32>
    %129 = vector.shape_cast %128 : vector<16xf32> to vector<16x1xf32>
    %130 = tpu.reciprocal %129 {approx = true} : vector<16x1xf32> -> vector<16x1xf32>
    %131 = vector.broadcast %130 : vector<16x1xf32> to vector<16x16xf32>
    %132 = arith.mulf %127, %131 : vector<16x16xf32>
    %133 = vector.extract_strided_slice %50 {offsets = [0, 24], sizes = [16, 8], strides = [1, 1]} : vector<16x32xf32> to vector<16x8xf32>
    %cst_40 = arith.constant dense<0.000000e+00> : vector<16x8xf32>
    %134 = tpu.matmul %132, %133, %cst_40 {dimension_numbers = #tpu.dot_dimension_numbers<[1], [0], [0], [1], [0, 0, 1, 1], [], []>} : vector<16x16xf32>, vector<16x8xf32>, vector<16x8xf32> -> vector<16x8xf32>
    %135 = vector.extract_strided_slice %9 {offsets = [24, 0], sizes = [8, 32], strides = [1, 1]} : vector<32x32xf32> to vector<8x32xf32>
    %cst_41 = arith.constant dense<0.000000e+00> : vector<16x32xf32>
    %136 = tpu.matmul %134, %135, %cst_41 {dimension_numbers = #tpu.dot_dimension_numbers<[1], [0], [0], [1], [0, 0, 1, 1], [], []>} : vector<16x8xf32>, vector<8x32xf32>, vector<16x32xf32> -> vector<16x32xf32>
    %137 = arith.addf %116, %136 : vector<16x32xf32>
    %138 = vector.broadcast %21 : vector<1x32xf32> to vector<16x32xf32>
    %139 = arith.addf %137, %138 : vector<16x32xf32>
    %140 = arith.addf %0, %139 : vector<16x32xf32>
    %cst_42 = arith.constant dense<0.000000e+00> : vector<16xf32>
    %141 = vector.multi_reduction <add>, %140, %cst_42 [1] : vector<16x32xf32> to vector<16xf32>
    %142 = vector.shape_cast %141 : vector<16xf32> to vector<16x1xf32>
    %cst_43 = arith.constant 3.200000e+01 : f32
    %143 = vector.broadcast %cst_43 : f32 to vector<16x1xf32>
    %144 = arith.divf %142, %143 : vector<16x1xf32>
    %145 = vector.broadcast %144 : vector<16x1xf32> to vector<16x32xf32>
    %146 = arith.subf %140, %145 : vector<16x32xf32>
    %147 = arith.mulf %146, %146 : vector<16x32xf32>
    %cst_44 = arith.constant dense<0.000000e+00> : vector<16xf32>
    %148 = vector.multi_reduction <add>, %147, %cst_44 [1] : vector<16x32xf32> to vector<16xf32>
    %149 = vector.shape_cast %148 : vector<16xf32> to vector<16x1xf32>
    %cst_45 = arith.constant 3.200000e+01 : f32
    %150 = vector.broadcast %cst_45 : f32 to vector<16x1xf32>
    %151 = arith.divf %149, %150 : vector<16x1xf32>
    %152 = vector.broadcast %144 : vector<16x1xf32> to vector<16x32xf32>
    %153 = arith.subf %140, %152 : vector<16x32xf32>
    %cst_46 = arith.constant 9.99999974E-6 : f32
    %154 = vector.broadcast %cst_46 : f32 to vector<16x1xf32>
    %155 = arith.addf %151, %154 : vector<16x1xf32>
    %156 = math.rsqrt %155 : vector<16x1xf32>
    %157 = vector.broadcast %156 : vector<16x1xf32> to vector<16x32xf32>
    %158 = arith.mulf %153, %157 : vector<16x32xf32>
    %159 = vector.broadcast %24 : vector<1x32xf32> to vector<16x32xf32>
    %160 = arith.mulf %158, %159 : vector<16x32xf32>
    %161 = vector.broadcast %25 : vector<1x32xf32> to vector<16x32xf32>
    %162 = arith.addf %160, %161 : vector<16x32xf32>
    %163 = arith.addf %162, %1 : vector<16x32xf32>
    %cst_47 = arith.constant dense<0.000000e+00> : vector<16x32xf32>
    %164 = tpu.matmul %163, %10, %cst_47 {dimension_numbers = #tpu.dot_dimension_numbers<[1], [0], [0], [1], [0, 0, 1, 1], [], []>} : vector<16x32xf32>, vector<32x32xf32>, vector<16x32xf32> -> vector<16x32xf32>
    %165 = vector.broadcast %17 : vector<1x32xf32> to vector<16x32xf32>
    %166 = arith.addf %164, %165 : vector<16x32xf32>
    %167 = arith.addf %2, %3 : vector<32x32xf32>
    %cst_48 = arith.constant dense<0.000000e+00> : vector<32x32xf32>
    %168 = tpu.matmul %167, %11, %cst_48 {dimension_numbers = #tpu.dot_dimension_numbers<[1], [0], [0], [1], [0, 0, 1, 1], [], []>} : vector<32x32xf32>, vector<32x32xf32>, vector<32x32xf32> -> vector<32x32xf32>
    %169 = vector.broadcast %18 : vector<1x32xf32> to vector<32x32xf32>
    %170 = arith.addf %168, %169 : vector<32x32xf32>
    %cst_49 = arith.constant dense<0.000000e+00> : vector<32x32xf32>
    %171 = tpu.matmul %2, %12, %cst_49 {dimension_numbers = #tpu.dot_dimension_numbers<[1], [0], [0], [1], [0, 0, 1, 1], [], []>} : vector<32x32xf32>, vector<32x32xf32>, vector<32x32xf32> -> vector<32x32xf32>
    %172 = vector.broadcast %19 : vector<1x32xf32> to vector<32x32xf32>
    %173 = arith.addf %171, %172 : vector<32x32xf32>
    %cst_50 = arith.constant 0.000000e+00 : f32
    %174 = vector.broadcast %cst_50 : f32 to vector<16x32xf32>
    %175 = vector.extract_strided_slice %166 {offsets = [0, 0], sizes = [16, 8], strides = [1, 1]} : vector<16x32xf32> to vector<16x8xf32>
    %176 = vector.extract_strided_slice %170 {offsets = [0, 0], sizes = [32, 8], strides = [1, 1]} : vector<32x32xf32> to vector<32x8xf32>
    %177 = tpu.transpose %176, [1, 0] : vector<32x8xf32> -> vector<8x32xf32>
    %cst_51 = arith.constant dense<0.000000e+00> : vector<16x32xf32>
    %178 = tpu.matmul %175, %177, %cst_51 {dimension_numbers = #tpu.dot_dimension_numbers<[1], [0], [0], [1], [0, 0, 1, 1], [], []>} : vector<16x8xf32>, vector<8x32xf32>, vector<16x32xf32> -> vector<16x32xf32>
    %cst_52 = arith.constant -1.000000e+30 : f32
    %179 = vector.broadcast %cst_52 : f32 to vector<16x32xf32>
    %180 = arith.select %43, %178, %179 : vector<16x32xi1>, vector<16x32xf32>
    %cst_53 = arith.constant dense<0xFF800000> : vector<16xf32>
    %181 = vector.multi_reduction <maximumf>, %180, %cst_53 [1] : vector<16x32xf32> to vector<16xf32>
    %182 = vector.shape_cast %181 : vector<16xf32> to vector<16x1xf32>
    %183 = vector.broadcast %182 : vector<16x1xf32> to vector<16x32xf32>
    %184 = arith.subf %180, %183 : vector<16x32xf32>
    %185 = math.exp %184 : vector<16x32xf32>
    %cst_54 = arith.constant dense<0.000000e+00> : vector<16xf32>
    %186 = vector.multi_reduction <add>, %185, %cst_54 [1] : vector<16x32xf32> to vector<16xf32>
    %187 = vector.shape_cast %186 : vector<16xf32> to vector<16x1xf32>
    %188 = tpu.reciprocal %187 {approx = true} : vector<16x1xf32> -> vector<16x1xf32>
    %189 = vector.broadcast %188 : vector<16x1xf32> to vector<16x32xf32>
    %190 = arith.mulf %185, %189 : vector<16x32xf32>
    %191 = vector.extract_strided_slice %173 {offsets = [0, 0], sizes = [32, 8], strides = [1, 1]} : vector<32x32xf32> to vector<32x8xf32>
    %cst_55 = arith.constant dense<0.000000e+00> : vector<16x8xf32>
    %192 = tpu.matmul %190, %191, %cst_55 {dimension_numbers = #tpu.dot_dimension_numbers<[1], [0], [0], [1], [0, 0, 1, 1], [], []>} : vector<16x32xf32>, vector<32x8xf32>, vector<16x8xf32> -> vector<16x8xf32>
    %193 = vector.extract_strided_slice %13 {offsets = [0, 0], sizes = [8, 32], strides = [1, 1]} : vector<32x32xf32> to vector<8x32xf32>
    %cst_56 = arith.constant dense<0.000000e+00> : vector<16x32xf32>
    %194 = tpu.matmul %192, %193, %cst_56 {dimension_numbers = #tpu.dot_dimension_numbers<[1], [0], [0], [1], [0, 0, 1, 1], [], []>} : vector<16x8xf32>, vector<8x32xf32>, vector<16x32xf32> -> vector<16x32xf32>
    %195 = arith.addf %174, %194 : vector<16x32xf32>
    %196 = vector.extract_strided_slice %166 {offsets = [0, 8], sizes = [16, 8], strides = [1, 1]} : vector<16x32xf32> to vector<16x8xf32>
    %197 = vector.extract_strided_slice %170 {offsets = [0, 8], sizes = [32, 8], strides = [1, 1]} : vector<32x32xf32> to vector<32x8xf32>
    %198 = tpu.transpose %197, [1, 0] : vector<32x8xf32> -> vector<8x32xf32>
    %cst_57 = arith.constant dense<0.000000e+00> : vector<16x32xf32>
    %199 = tpu.matmul %196, %198, %cst_57 {dimension_numbers = #tpu.dot_dimension_numbers<[1], [0], [0], [1], [0, 0, 1, 1], [], []>} : vector<16x8xf32>, vector<8x32xf32>, vector<16x32xf32> -> vector<16x32xf32>
    %cst_58 = arith.constant -1.000000e+30 : f32
    %200 = vector.broadcast %cst_58 : f32 to vector<16x32xf32>
    %201 = arith.select %43, %199, %200 : vector<16x32xi1>, vector<16x32xf32>
    %cst_59 = arith.constant dense<0xFF800000> : vector<16xf32>
    %202 = vector.multi_reduction <maximumf>, %201, %cst_59 [1] : vector<16x32xf32> to vector<16xf32>
    %203 = vector.shape_cast %202 : vector<16xf32> to vector<16x1xf32>
    %204 = vector.broadcast %203 : vector<16x1xf32> to vector<16x32xf32>
    %205 = arith.subf %201, %204 : vector<16x32xf32>
    %206 = math.exp %205 : vector<16x32xf32>
    %cst_60 = arith.constant dense<0.000000e+00> : vector<16xf32>
    %207 = vector.multi_reduction <add>, %206, %cst_60 [1] : vector<16x32xf32> to vector<16xf32>
    %208 = vector.shape_cast %207 : vector<16xf32> to vector<16x1xf32>
    %209 = tpu.reciprocal %208 {approx = true} : vector<16x1xf32> -> vector<16x1xf32>
    %210 = vector.broadcast %209 : vector<16x1xf32> to vector<16x32xf32>
    %211 = arith.mulf %206, %210 : vector<16x32xf32>
    %212 = vector.extract_strided_slice %173 {offsets = [0, 8], sizes = [32, 8], strides = [1, 1]} : vector<32x32xf32> to vector<32x8xf32>
    %cst_61 = arith.constant dense<0.000000e+00> : vector<16x8xf32>
    %213 = tpu.matmul %211, %212, %cst_61 {dimension_numbers = #tpu.dot_dimension_numbers<[1], [0], [0], [1], [0, 0, 1, 1], [], []>} : vector<16x32xf32>, vector<32x8xf32>, vector<16x8xf32> -> vector<16x8xf32>
    %214 = vector.extract_strided_slice %13 {offsets = [8, 0], sizes = [8, 32], strides = [1, 1]} : vector<32x32xf32> to vector<8x32xf32>
    %cst_62 = arith.constant dense<0.000000e+00> : vector<16x32xf32>
    %215 = tpu.matmul %213, %214, %cst_62 {dimension_numbers = #tpu.dot_dimension_numbers<[1], [0], [0], [1], [0, 0, 1, 1], [], []>} : vector<16x8xf32>, vector<8x32xf32>, vector<16x32xf32> -> vector<16x32xf32>
    %216 = arith.addf %195, %215 : vector<16x32xf32>
    %217 = vector.extract_strided_slice %166 {offsets = [0, 16], sizes = [16, 8], strides = [1, 1]} : vector<16x32xf32> to vector<16x8xf32>
    %218 = vector.extract_strided_slice %170 {offsets = [0, 16], sizes = [32, 8], strides = [1, 1]} : vector<32x32xf32> to vector<32x8xf32>
    %219 = tpu.transpose %218, [1, 0] : vector<32x8xf32> -> vector<8x32xf32>
    %cst_63 = arith.constant dense<0.000000e+00> : vector<16x32xf32>
    %220 = tpu.matmul %217, %219, %cst_63 {dimension_numbers = #tpu.dot_dimension_numbers<[1], [0], [0], [1], [0, 0, 1, 1], [], []>} : vector<16x8xf32>, vector<8x32xf32>, vector<16x32xf32> -> vector<16x32xf32>
    %cst_64 = arith.constant -1.000000e+30 : f32
    %221 = vector.broadcast %cst_64 : f32 to vector<16x32xf32>
    %222 = arith.select %43, %220, %221 : vector<16x32xi1>, vector<16x32xf32>
    %cst_65 = arith.constant dense<0xFF800000> : vector<16xf32>
    %223 = vector.multi_reduction <maximumf>, %222, %cst_65 [1] : vector<16x32xf32> to vector<16xf32>
    %224 = vector.shape_cast %223 : vector<16xf32> to vector<16x1xf32>
    %225 = vector.broadcast %224 : vector<16x1xf32> to vector<16x32xf32>
    %226 = arith.subf %222, %225 : vector<16x32xf32>
    %227 = math.exp %226 : vector<16x32xf32>
    %cst_66 = arith.constant dense<0.000000e+00> : vector<16xf32>
    %228 = vector.multi_reduction <add>, %227, %cst_66 [1] : vector<16x32xf32> to vector<16xf32>
    %229 = vector.shape_cast %228 : vector<16xf32> to vector<16x1xf32>
    %230 = tpu.reciprocal %229 {approx = true} : vector<16x1xf32> -> vector<16x1xf32>
    %231 = vector.broadcast %230 : vector<16x1xf32> to vector<16x32xf32>
    %232 = arith.mulf %227, %231 : vector<16x32xf32>
    %233 = vector.extract_strided_slice %173 {offsets = [0, 16], sizes = [32, 8], strides = [1, 1]} : vector<32x32xf32> to vector<32x8xf32>
    %cst_67 = arith.constant dense<0.000000e+00> : vector<16x8xf32>
    %234 = tpu.matmul %232, %233, %cst_67 {dimension_numbers = #tpu.dot_dimension_numbers<[1], [0], [0], [1], [0, 0, 1, 1], [], []>} : vector<16x32xf32>, vector<32x8xf32>, vector<16x8xf32> -> vector<16x8xf32>
    %235 = vector.extract_strided_slice %13 {offsets = [16, 0], sizes = [8, 32], strides = [1, 1]} : vector<32x32xf32> to vector<8x32xf32>
    %cst_68 = arith.constant dense<0.000000e+00> : vector<16x32xf32>
    %236 = tpu.matmul %234, %235, %cst_68 {dimension_numbers = #tpu.dot_dimension_numbers<[1], [0], [0], [1], [0, 0, 1, 1], [], []>} : vector<16x8xf32>, vector<8x32xf32>, vector<16x32xf32> -> vector<16x32xf32>
    %237 = arith.addf %216, %236 : vector<16x32xf32>
    %238 = vector.extract_strided_slice %166 {offsets = [0, 24], sizes = [16, 8], strides = [1, 1]} : vector<16x32xf32> to vector<16x8xf32>
    %239 = vector.extract_strided_slice %170 {offsets = [0, 24], sizes = [32, 8], strides = [1, 1]} : vector<32x32xf32> to vector<32x8xf32>
    %240 = tpu.transpose %239, [1, 0] : vector<32x8xf32> -> vector<8x32xf32>
    %cst_69 = arith.constant dense<0.000000e+00> : vector<16x32xf32>
    %241 = tpu.matmul %238, %240, %cst_69 {dimension_numbers = #tpu.dot_dimension_numbers<[1], [0], [0], [1], [0, 0, 1, 1], [], []>} : vector<16x8xf32>, vector<8x32xf32>, vector<16x32xf32> -> vector<16x32xf32>
    %cst_70 = arith.constant -1.000000e+30 : f32
    %242 = vector.broadcast %cst_70 : f32 to vector<16x32xf32>
    %243 = arith.select %43, %241, %242 : vector<16x32xi1>, vector<16x32xf32>
    %cst_71 = arith.constant dense<0xFF800000> : vector<16xf32>
    %244 = vector.multi_reduction <maximumf>, %243, %cst_71 [1] : vector<16x32xf32> to vector<16xf32>
    %245 = vector.shape_cast %244 : vector<16xf32> to vector<16x1xf32>
    %246 = vector.broadcast %245 : vector<16x1xf32> to vector<16x32xf32>
    %247 = arith.subf %243, %246 : vector<16x32xf32>
    %248 = math.exp %247 : vector<16x32xf32>
    %cst_72 = arith.constant dense<0.000000e+00> : vector<16xf32>
    %249 = vector.multi_reduction <add>, %248, %cst_72 [1] : vector<16x32xf32> to vector<16xf32>
    %250 = vector.shape_cast %249 : vector<16xf32> to vector<16x1xf32>
    %251 = tpu.reciprocal %250 {approx = true} : vector<16x1xf32> -> vector<16x1xf32>
    %252 = vector.broadcast %251 : vector<16x1xf32> to vector<16x32xf32>
    %253 = arith.mulf %248, %252 : vector<16x32xf32>
    %254 = vector.extract_strided_slice %173 {offsets = [0, 24], sizes = [32, 8], strides = [1, 1]} : vector<32x32xf32> to vector<32x8xf32>
    %cst_73 = arith.constant dense<0.000000e+00> : vector<16x8xf32>
    %255 = tpu.matmul %253, %254, %cst_73 {dimension_numbers = #tpu.dot_dimension_numbers<[1], [0], [0], [1], [0, 0, 1, 1], [], []>} : vector<16x32xf32>, vector<32x8xf32>, vector<16x8xf32> -> vector<16x8xf32>
    %256 = vector.extract_strided_slice %13 {offsets = [24, 0], sizes = [8, 32], strides = [1, 1]} : vector<32x32xf32> to vector<8x32xf32>
    %cst_74 = arith.constant dense<0.000000e+00> : vector<16x32xf32>
    %257 = tpu.matmul %255, %256, %cst_74 {dimension_numbers = #tpu.dot_dimension_numbers<[1], [0], [0], [1], [0, 0, 1, 1], [], []>} : vector<16x8xf32>, vector<8x32xf32>, vector<16x32xf32> -> vector<16x32xf32>
    %258 = arith.addf %237, %257 : vector<16x32xf32>
    %259 = vector.broadcast %22 : vector<1x32xf32> to vector<16x32xf32>
    %260 = arith.addf %258, %259 : vector<16x32xf32>
    %261 = arith.addf %162, %260 : vector<16x32xf32>
    %cst_75 = arith.constant dense<0.000000e+00> : vector<16xf32>
    %262 = vector.multi_reduction <add>, %261, %cst_75 [1] : vector<16x32xf32> to vector<16xf32>
    %263 = vector.shape_cast %262 : vector<16xf32> to vector<16x1xf32>
    %cst_76 = arith.constant 3.200000e+01 : f32
    %264 = vector.broadcast %cst_76 : f32 to vector<16x1xf32>
    %265 = arith.divf %263, %264 : vector<16x1xf32>
    %266 = vector.broadcast %265 : vector<16x1xf32> to vector<16x32xf32>
    %267 = arith.subf %261, %266 : vector<16x32xf32>
    %268 = arith.mulf %267, %267 : vector<16x32xf32>
    %cst_77 = arith.constant dense<0.000000e+00> : vector<16xf32>
    %269 = vector.multi_reduction <add>, %268, %cst_77 [1] : vector<16x32xf32> to vector<16xf32>
    %270 = vector.shape_cast %269 : vector<16xf32> to vector<16x1xf32>
    %cst_78 = arith.constant 3.200000e+01 : f32
    %271 = vector.broadcast %cst_78 : f32 to vector<16x1xf32>
    %272 = arith.divf %270, %271 : vector<16x1xf32>
    %273 = vector.broadcast %265 : vector<16x1xf32> to vector<16x32xf32>
    %274 = arith.subf %261, %273 : vector<16x32xf32>
    %cst_79 = arith.constant 9.99999974E-6 : f32
    %275 = vector.broadcast %cst_79 : f32 to vector<16x1xf32>
    %276 = arith.addf %272, %275 : vector<16x1xf32>
    %277 = math.rsqrt %276 : vector<16x1xf32>
    %278 = vector.broadcast %277 : vector<16x1xf32> to vector<16x32xf32>
    %279 = arith.mulf %274, %278 : vector<16x32xf32>
    %280 = vector.broadcast %26 : vector<1x32xf32> to vector<16x32xf32>
    %281 = arith.mulf %279, %280 : vector<16x32xf32>
    %282 = vector.broadcast %27 : vector<1x32xf32> to vector<16x32xf32>
    %283 = arith.addf %281, %282 : vector<16x32xf32>
    %cst_80 = arith.constant dense<0.000000e+00> : vector<16x64xf32>
    %284 = tpu.matmul %283, %14, %cst_80 {dimension_numbers = #tpu.dot_dimension_numbers<[1], [0], [0], [1], [0, 0, 1, 1], [], []>} : vector<16x32xf32>, vector<32x64xf32>, vector<16x64xf32> -> vector<16x64xf32>
    %285 = vector.broadcast %20 : vector<1x64xf32> to vector<16x64xf32>
    %286 = arith.addf %284, %285 : vector<16x64xf32>
    %cst_81 = arith.constant 0.000000e+00 : f32
    %287 = vector.broadcast %cst_81 : f32 to vector<16x64xf32>
    %288 = arith.maximumf %286, %287 : vector<16x64xf32>
    %cst_82 = arith.constant dense<0.000000e+00> : vector<16x32xf32>
    %289 = tpu.matmul %288, %5, %cst_82 {dimension_numbers = #tpu.dot_dimension_numbers<[1], [0], [0], [1], [0, 0, 1, 1], [], []>} : vector<16x64xf32>, vector<64x32xf32>, vector<16x32xf32> -> vector<16x32xf32>
    %290 = vector.broadcast %23 : vector<1x32xf32> to vector<16x32xf32>
    %291 = arith.addf %289, %290 : vector<16x32xf32>
    %292 = arith.addf %283, %291 : vector<16x32xf32>
    %cst_83 = arith.constant dense<0.000000e+00> : vector<16xf32>
    %293 = vector.multi_reduction <add>, %292, %cst_83 [1] : vector<16x32xf32> to vector<16xf32>
    %294 = vector.shape_cast %293 : vector<16xf32> to vector<16x1xf32>
    %cst_84 = arith.constant 3.200000e+01 : f32
    %295 = vector.broadcast %cst_84 : f32 to vector<16x1xf32>
    %296 = arith.divf %294, %295 : vector<16x1xf32>
    %297 = vector.broadcast %296 : vector<16x1xf32> to vector<16x32xf32>
    %298 = arith.subf %292, %297 : vector<16x32xf32>
    %299 = arith.mulf %298, %298 : vector<16x32xf32>
    %cst_85 = arith.constant dense<0.000000e+00> : vector<16xf32>
    %300 = vector.multi_reduction <add>, %299, %cst_85 [1] : vector<16x32xf32> to vector<16xf32>
    %301 = vector.shape_cast %300 : vector<16xf32> to vector<16x1xf32>
    %cst_86 = arith.constant 3.200000e+01 : f32
    %302 = vector.broadcast %cst_86 : f32 to vector<16x1xf32>
    %303 = arith.divf %301, %302 : vector<16x1xf32>
    %304 = vector.broadcast %296 : vector<16x1xf32> to vector<16x32xf32>
    %305 = arith.subf %292, %304 : vector<16x32xf32>
    %cst_87 = arith.constant 9.99999974E-6 : f32
    %306 = vector.broadcast %cst_87 : f32 to vector<16x1xf32>
    %307 = arith.addf %303, %306 : vector<16x1xf32>
    %308 = math.rsqrt %307 : vector<16x1xf32>
    %309 = vector.broadcast %308 : vector<16x1xf32> to vector<16x32xf32>
    %310 = arith.mulf %305, %309 : vector<16x32xf32>
    %311 = vector.broadcast %28 : vector<1x32xf32> to vector<16x32xf32>
    %312 = arith.mulf %310, %311 : vector<16x32xf32>
    %313 = vector.broadcast %29 : vector<1x32xf32> to vector<16x32xf32>
    %314 = arith.addf %312, %313 : vector<16x32xf32>
    %c0_88 = arith.constant 0 : index
    %c0_89 = arith.constant 0 : index
    %315 = vector.load %arg7[%c0_88, %c0_89] : memref<16x32xf32, #tpu.memory_space<vmem>>, vector<16x32xf32>
    tpu.vector_store %arg7[%c0_88, %c0_89], %314 {strides = array<i32>} : memref<16x32xf32, #tpu.memory_space<vmem>>, vector<16x32xf32>,
    return
  }
}

</mosaic_0001>

<llo_original>
// kernel: decoder_layer_forward.1
$region0: #{decoder_layer_forward.1}
  #allocation0 [shape = 'u32[]', space=smem, size = 0x4, offset = 0x4, fixed_abs, tag = 'smem constant byte address 0x4 - core index']
  #allocation1 [shape = 'u32[144,128]{1,0:T(1,128)}', space=vmem, size = 0x12000, scoped, tag = 'internal scratch']
  %s0 = inlined_call_operand.hbm [shape: f32[16,32], index: 0, kind: input, shape index: {}]
  %s1 = inlined_call_operand.hbm [shape: f32[16,32], index: 1, kind: input, shape index: {}]
  %s2 = inlined_call_operand.vmem [shape: f32[32,32], index: 2, kind: input, shape index: {}]
  %s3 = inlined_call_operand.hbm [shape: f32[32,32], index: 3, kind: input, shape index: {}]
  %s4 = inlined_call_operand.vmem [shape: f32[32,320], index: 4, kind: input, shape index: {}]
  %s5 = inlined_call_operand.vmem [shape: f32[64,32], index: 5, kind: input, shape index: {}]
  %s6 = inlined_call_operand.hbm [shape: f32[12,96], index: 6, kind: input, shape index: {}]
  %s7 = inlined_call_operand.hbm [shape: f32[16,32], index: 7, kind: output, shape index: {}]
  %s8 = sld [smem:[#allocation0]]
  $region54: #{decoder_layer_forward.1} parent=0
    _
  %s10 = ssub.s32 1, %s8
  %s11 = scalar_select 0, %s10, %s8
  $region1: #{decoder_layer_forward.1} parent=0
    #allocation2 [shape = 'u8[8192]{0}', space=vmem, size = 0x2000, scoped, tag = 'input window, operand 0, single buffered']
    #allocation3 [shape = 's32[1]{0}', space=sflag, size = 0x4, scoped, tag = 'scoped memory for decoder_layer_forward.1']
    #allocation4 [shape = 's32[1]{0}', space=sflag, size = 0x4, scoped, tag = 'scoped memory for decoder_layer_forward.1']
    #allocation5 [shape = 'u8[8192]{0}', space=vmem, size = 0x2000, scoped, tag = 'input window, operand 1, single buffered']
    #allocation6 [shape = 's32[1]{0}', space=sflag, size = 0x4, scoped, tag = 'scoped memory for decoder_layer_forward.1']
    #allocation7 [shape = 'u8[16384]{0}', space=vmem, size = 0x4000, scoped, tag = 'input window, operand 3, single buffered']
    #allocation8 [shape = 'u8[8192]{0}', space=vmem, size = 0x2000, scoped, tag = 'input window, operand 6, single buffered']
    #allocation9 [shape = 's32[1]{0}', space=sflag, size = 0x4, scoped, tag = 'scoped memory for decoder_layer_forward.1']
    #allocation10 [shape = 'u8[8192]{0}', space=vmem, size = 0x2000, scoped, tag = 'output window, operand 0, single buffered']
    %12 = vsyncpa [#allocation3], 0
    %13 = vsyncpa [#allocation6], 0
    %14 = vsyncpa [#allocation9], 0
    %15 = vsyncpa [#allocation4], 0
    // Predicated region
    $region2: #{decoder_layer_forward.1} parent=1 // pred_check
      _
    $region3: #{decoder_layer_forward.1} parent=1 // pred_check_branch
      %17 = sbr.rel (0) target = $region5
    $region4: #{decoder_layer_forward.1} parent=1 // pred_region
      %s19 = ssub.s32 256, 256
      %20 = vsyncadd [#allocation3], %s19
      %s21 = sshll.u32 [#allocation2], 4
      %s22 = int_to_ptr.vmem [resolvable:$true] %s21
      %27 = dma.hbm_to_vmem [thread:$0]  %s0, 256, %s22, [#allocation3], 128, 128, 8
    $region5: #{decoder_layer_forward.1} parent=1 // pred_fallthru
      _
    // Predicated region
    $region6: #{decoder_layer_forward.1} parent=1 // pred_check
      _
    $region7: #{decoder_layer_forward.1} parent=1 // pred_check_branch
      %29 = sbr.rel (0) target = $region9
    $region8: #{decoder_layer_forward.1} parent=1 // pred_region
      %s31 = ssub.s32 256, 256
      %32 = vsyncadd [#allocation6], %s31
      %s33 = sshll.u32 [#allocation5], 4
      %s34 = int_to_ptr.vmem [resolvable:$true] %s33
      %39 = dma.hbm_to_vmem [thread:$0]  %s1, 256, %s34, [#allocation6], 128, 128, 8
    $region9: #{decoder_layer_forward.1} parent=1 // pred_fallthru
      _
    // Predicated region
    $region10: #{decoder_layer_forward.1} parent=1 // pred_check
      _
    $region11: #{decoder_layer_forward.1} parent=1 // pred_check_branch
      %41 = sbr.rel (0) target = $region13
    $region12: #{decoder_layer_forward.1} parent=1 // pred_region
      _
    $region13: #{decoder_layer_forward.1} parent=1 // pred_fallthru
      _
    // Predicated region
    $region14: #{decoder_layer_forward.1} parent=1 // pred_check
      _
    $region15: #{decoder_layer_forward.1} parent=1 // pred_check_branch
      %43 = sbr.rel (0) target = $region17
    $region16: #{decoder_layer_forward.1} parent=1 // pred_region
      %s45 = ssub.s32 512, 512
      %46 = vsyncadd [#allocation6], %s45
      %s47 = sshll.u32 [#allocation7], 4
      %s48 = int_to_ptr.vmem [resolvable:$true] %s47
      %53 = dma.hbm_to_vmem [thread:$0]  %s3, 512, %s48, [#allocation6], 128, 128, 8
    $region17: #{decoder_layer_forward.1} parent=1 // pred_fallthru
      _
    // Predicated region
    $region18: #{decoder_layer_forward.1} parent=1 // pred_check
      _
    $region19: #{decoder_layer_forward.1} parent=1 // pred_check_branch
      %55 = sbr.rel (0) target = $region21
    $region20: #{decoder_layer_forward.1} parent=1 // pred_region
      _
    $region21: #{decoder_layer_forward.1} parent=1 // pred_fallthru
      _
    // Predicated region
    $region22: #{decoder_layer_forward.1} parent=1 // pred_check
      _
    $region23: #{decoder_layer_forward.1} parent=1 // pred_check_branch
      %57 = sbr.rel (0) target = $region25
    $region24: #{decoder_layer_forward.1} parent=1 // pred_region
      _
    $region25: #{decoder_layer_forward.1} parent=1 // pred_fallthru
      _
    // Predicated region
    $region26: #{decoder_layer_forward.1} parent=1 // pred_check
      _
    $region27: #{decoder_layer_forward.1} parent=1 // pred_check_branch
      %59 = sbr.rel (0) target = $region29
    $region28: #{decoder_layer_forward.1} parent=1 // pred_region
      %s61 = ssub.s32 256, 256
      %62 = vsyncadd [#allocation9], %s61
      %s63 = sshll.u32 [#allocation8], 4
      %s64 = int_to_ptr.vmem [resolvable:$true] %s63
      %69 = dma.hbm_to_vmem [thread:$0]  %s6, 256, %s64, [#allocation9], 128, 128, 8
    $region29: #{decoder_layer_forward.1} parent=1 // pred_fallthru
      _
    // Predicated region
    $region30: #{decoder_layer_forward.1} parent=1 // pred_check
      _
    $region31: #{decoder_layer_forward.1} parent=1 // pred_check_branch
      %71 = sbr.rel (0) target = $region33
    $region32: #{decoder_layer_forward.1} parent=1 // pred_region
      %72 = dma.done [#allocation3], 256
    $region33: #{decoder_layer_forward.1} parent=1 // pred_fallthru
      _
    // Predicated region
    $region34: #{decoder_layer_forward.1} parent=1 // pred_check
      _
    $region35: #{decoder_layer_forward.1} parent=1 // pred_check_branch
      %74 = sbr.rel (0) target = $region37
    $region36: #{decoder_layer_forward.1} parent=1 // pred_region
      %75 = dma.done [#allocation6], 256
    $region37: #{decoder_layer_forward.1} parent=1 // pred_fallthru
      _
    // Predicated region
    $region38: #{decoder_layer_forward.1} parent=1 // pred_check
      _
    $region39: #{decoder_layer_forward.1} parent=1 // pred_check_branch
      %77 = sbr.rel (0) target = $region41
    $region40: #{decoder_layer_forward.1} parent=1 // pred_region
      %78 = dma.done [#allocation6], 512
    $region41: #{decoder_layer_forward.1} parent=1 // pred_fallthru
      _
    // Predicated region
    $region42: #{decoder_layer_forward.1} parent=1 // pred_check
      _
    $region43: #{decoder_layer_forward.1} parent=1 // pred_check_branch
      %80 = sbr.rel (0) target = $region45
    $region44: #{decoder_layer_forward.1} parent=1 // pred_region
      %81 = dma.done [#allocation9], 256
    $region45: #{decoder_layer_forward.1} parent=1 // pred_fallthru
      _
    %v82 = vld [vmem:[#allocation2] sm:$0xff]
    %v83 = vld [vmem:[#allocation2 + $0x8] sm:$0xff]
    %v84 = vld [vmem:[#allocation5] sm:$0xff]
    %v85 = vld [vmem:[#allocation5 + $0x8] sm:$0xff]
    %v86 = vld [vmem:[%s2] sm:$0xff]
    %v87 = vld [vmem:[%s2 + $0x8] sm:$0xff]
    %v88 = vld [vmem:[%s2 + $0x10] sm:$0xff]
    %v89 = vld [vmem:[%s2 + $0x18] sm:$0xff]
    %v90 = vld [vmem:[#allocation7] sm:$0xff]
    %v91 = vld [vmem:[#allocation7 + $0x8] sm:$0xff]
    %v92 = vld [vmem:[#allocation7 + $0x10] sm:$0xff]
    %v93 = vld [vmem:[#allocation7 + $0x18] sm:$0xff]
    %v94 = vld [vmem:[%s4] sm:$0xff]
    %v95 = vld [vmem:[%s4 + $0x8] sm:$0xff]
    %v96 = vld [vmem:[%s4 + $0x10] sm:$0xff]
    %v97 = vld [vmem:[%s4 + $0x18] sm:$0xff]
    %v98 = vld [vmem:[%s4 + $0x20] sm:$0xff]
    %v99 = vld [vmem:[%s4 + $0x28] sm:$0xff]
    %v100 = vld [vmem:[%s4 + $0x30] sm:$0xff]
    %v101 = vld [vmem:[%s4 + $0x38] sm:$0xff]
    %v102 = vld [vmem:[%s4 + $0x40] sm:$0xff]
    %v103 = vld [vmem:[%s4 + $0x48] sm:$0xff]
    %v104 = vld [vmem:[%s4 + $0x50] sm:$0xff]
    %v105 = vld [vmem:[%s4 + $0x58] sm:$0xff]
    %v106 = vld [vmem:[%s5] sm:$0xff]
    %v107 = vld [vmem:[%s5 + $0x8] sm:$0xff]
    %v108 = vld [vmem:[%s5 + $0x10] sm:$0xff]
    %v109 = vld [vmem:[%s5 + $0x18] sm:$0xff]
    %v110 = vld [vmem:[%s5 + $0x20] sm:$0xff]
    %v111 = vld [vmem:[%s5 + $0x28] sm:$0xff]
    %v112 = vld [vmem:[%s5 + $0x30] sm:$0xff]
    %v113 = vld [vmem:[%s5 + $0x38] sm:$0xff]
    %v114 = vld [vmem:[#allocation8] sm:$0xff]
    %v115 = vld [vmem:[#allocation8 + $0x8] sm:$0xf]
    %v116 = vlaneseq
    %v117 = vshrl.u32 %v116, 7
    %v118 = vadd.s32 %v117, 8
    %v119 = vlaneseq
    %v120 = vand.u32 %v119, 127
    %v121 = vand.u32 %v117, 1
    %v122 = vand.u32 %v118, 1
    %v123 = vand.u32 %v120, 1
    %vm124 = vcmp.eq.s32.totalorder %v121, %v123
    %vm125 = vcmp.eq.s32.totalorder %v122, %v123
    %v126 = vadd.f32 %v82, %v84
    %v127 = vadd.f32 %v83, %v85
    %v128 = vlaneseq
    %v129 = vshrl.u32 %v128, 7
    %v130 = vsub.s32 0, %v129
    %v131 = vrot.slane %v114, %v130
    %vm132 = vcmask 261120
    %v134 = vsel %vm132, %v126, 0
    %v137 = vsel %vm132, %v127, 0
    %139 = vmatprep.subr.mxu0 0.0
    %140 = vmatpush1.msra.mxu0 %v94
    %141 = vmatprep.subr.mxu0 0.0
    %142 = vmatpush1.msra.mxu0 %v97
    %143 = vmatprep.subr.mxu0 0.0
    %144 = vmatpush1.msra.mxu0 %v100
    %145 = vmatprep.subr.mxu0 0.0
    %146 = vmatpush1.msra.mxu0 %v103
    %147 = vmatprep.subr.mxu0 0.0
    %148 = vmatpush1.msra.mxu0 0.0
    %149 = vmatprep.subr.mxu0 0.0
    %150 = vmatpush1.msra.mxu0 0.0
    %151 = vmatprep.subr.mxu0 0.0
    %152 = vmatpush1.msra.mxu0 0.0
    %153 = vmatprep.subr.mxu0 0.0
    %154 = vmatpush1.msra.mxu0 0.0
    %155 = vmatprep.subr.mxu0 0.0
    %156 = vmatpush1.msra.mxu0 0.0
    %157 = vmatprep.subr.mxu0 0.0
    %158 = vmatpush1.msra.mxu0 0.0
    %159 = vmatprep.subr.mxu0 0.0
    %160 = vmatpush1.msra.mxu0 0.0
    %161 = vmatprep.subr.mxu0 0.0
    %162 = vmatpush1.msra.mxu0 0.0
    %163 = vmatprep.subr.mxu0 0.0
    %164 = vmatpush1.msra.mxu0 0.0
    %165 = vmatprep.subr.mxu0 0.0
    %166 = vmatpush1.msra.mxu0 0.0
    %167 = vmatprep.subr.mxu0 0.0
    %168 = vmatpush1.msra.mxu0 0.0
    %169 = vmatprep.subr.mxu0 0.0
    %170 = vmatpush1.msra.mxu0 0.0
    %171 = vmatprep.subr.mxu0 0.0
    %172 = vmatpush1.msra.mxu0 0.0
    %173 = vmatprep.subr.mxu0 0.0
    %174 = vmatpush1.msra.mxu0 0.0
    %175 = vmatprep.subr.mxu0 0.0
    %176 = vmatpush1.msra.mxu0 0.0
    %177 = vmatprep.subr.mxu0 0.0
    %178 = vmatpush1.msra.mxu0 0.0
    %179 = vmatprep.subr.mxu0 0.0
    %180 = vmatpush1.msra.mxu0 0.0
    %181 = vmatprep.subr.mxu0 0.0
    %182 = vmatpush1.msra.mxu0 0.0
    %183 = vmatprep.subr.mxu0 0.0
    %184 = vmatpush1.msra.mxu0 0.0
    %185 = vmatprep.subr.mxu0 0.0
    %186 = vmatpush1.msra.mxu0 0.0
    %187 = vmatprep.subr.mxu0 0.0
    %188 = vmatpush1.msra.mxu0 0.0
    %189 = vmatprep.subr.mxu0 0.0
    %190 = vmatpush1.msra.mxu0 0.0
    %191 = vmatprep.subr.mxu0 0.0
    %192 = vmatpush1.msra.mxu0 0.0
    %193 = vmatprep.subr.mxu0 0.0
    %194 = vmatpush1.msra.mxu0 0.0
    %195 = vmatprep.subr.mxu0 0.0
    %196 = vmatpush1.msra.mxu0 0.0
    %197 = vmatprep.subr.mxu0 0.0
    %198 = vmatpush1.msra.mxu0 0.0
    %199 = vmatprep.subr.mxu0 0.0
    %200 = vmatpush1.msra.mxu0 0.0
    %201 = vmatprep.subr.mxu0 0.0
    %202 = vmatpush1.msra.mxu0 0.0
    %203 = vmatprep.mubr.f32.mxu0 0.0
    %204 = vmatmul.mubr.f32.gmra.mrb[0].mxu0 %v134
    %v205 = vpop.f32.mrb[0].mxu0
    %v206 = vadd.f32 %v131, %v205
    %v207 = vpop.f32.mrb[0].mxu0
    %208 = vmatprep.mubr.f32.mxu0 0.0
    %209 = vmatmul.mubr.f32.gmra.mrb[0].mxu0 %v137
    %v210 = vpop.f32.mrb[0].mxu0
    %v211 = vadd.f32 %v131, %v210
    %v212 = vpop.f32.mrb[0].mxu0
    %213 = vdwg.mxu0
    %218 = vrot.lane.b32.xlu0 %v94, 64
    %v219 = vpop.permute.xlu0 %218
    %220 = vrot.lane.b32.xlu0 %v97, 64
    %v221 = vpop.permute.xlu0 %220
    %222 = vrot.lane.b32.xlu0 %v100, 64
    %v223 = vpop.permute.xlu0 %222
    %224 = vrot.lane.b32.xlu0 %v103, 64
    %v225 = vpop.permute.xlu0 %224
    %231 = vrot.lane.b32.xlu0 %v131, 64
    %v232 = vpop.permute.xlu0 %231
    %v235 = vsel %vm132, %v82, 0
    %v238 = vsel %vm132, %v83, 0
    %240 = vmatprep.subr.mxu0 0.0
    %241 = vmatpush1.msra.mxu0 %v219
    %242 = vmatprep.subr.mxu0 0.0
    %243 = vmatpush1.msra.mxu0 %v221
    %244 = vmatprep.subr.mxu0 0.0
    %245 = vmatpush1.msra.mxu0 %v223
    %246 = vmatprep.subr.mxu0 0.0
    %247 = vmatpush1.msra.mxu0 %v225
    %248 = vmatprep.subr.mxu0 0.0
    %249 = vmatpush1.msra.mxu0 0.0
    %250 = vmatprep.subr.mxu0 0.0
    %251 = vmatpush1.msra.mxu0 0.0
    %252 = vmatprep.subr.mxu0 0.0
    %253 = vmatpush1.msra.mxu0 0.0
    %254 = vmatprep.subr.mxu0 0.0
    %255 = vmatpush1.msra.mxu0 0.0
    %256 = vmatprep.subr.mxu0 0.0
    %257 = vmatpush1.msra.mxu0 0.0
    %258 = vmatprep.subr.mxu0 0.0
    %259 = vmatpush1.msra.mxu0 0.0
    %260 = vmatprep.subr.mxu0 0.0
    %261 = vmatpush1.msra.mxu0 0.0
    %262 = vmatprep.subr.mxu0 0.0
    %263 = vmatpush1.msra.mxu0 0.0
    %264 = vmatprep.subr.mxu0 0.0
    %265 = vmatpush1.msra.mxu0 0.0
    %266 = vmatprep.subr.mxu0 0.0
    %267 = vmatpush1.msra.mxu0 0.0
    %268 = vmatprep.subr.mxu0 0.0
    %269 = vmatpush1.msra.mxu0 0.0
    %270 = vmatprep.subr.mxu0 0.0
    %271 = vmatpush1.msra.mxu0 0.0
    %272 = vmatprep.subr.mxu0 0.0
    %273 = vmatpush1.msra.mxu0 0.0
    %274 = vmatprep.subr.mxu0 0.0
    %275 = vmatpush1.msra.mxu0 0.0
    %276 = vmatprep.subr.mxu0 0.0
    %277 = vmatpush1.msra.mxu0 0.0
    %278 = vmatprep.subr.mxu0 0.0
    %279 = vmatpush1.msra.mxu0 0.0
    %280 = vmatprep.subr.mxu0 0.0
    %281 = vmatpush1.msra.mxu0 0.0
    %282 = vmatprep.subr.mxu0 0.0
    %283 = vmatpush1.msra.mxu0 0.0
    %284 = vmatprep.subr.mxu0 0.0
    %285 = vmatpush1.msra.mxu0 0.0
    %286 = vmatprep.subr.mxu0 0.0
    %287 = vmatpush1.msra.mxu0 0.0
    %288 = vmatprep.subr.mxu0 0.0
    %289 = vmatpush1.msra.mxu0 0.0
    %290 = vmatprep.subr.mxu0 0.0
    %291 = vmatpush1.msra.mxu0 0.0
    %292 = vmatprep.subr.mxu0 0.0
    %293 = vmatpush1.msra.mxu0 0.0
    %294 = vmatprep.subr.mxu0 0.0
    %295 = vmatpush1.msra.mxu0 0.0
    %296 = vmatprep.subr.mxu0 0.0
    %297 = vmatpush1.msra.mxu0 0.0
    %298 = vmatprep.subr.mxu0 0.0
    %299 = vmatpush1.msra.mxu0 0.0
    %300 = vmatprep.subr.mxu0 0.0
    %301 = vmatpush1.msra.mxu0 0.0
    %302 = vmatprep.subr.mxu0 0.0
    %303 = vmatpush1.msra.mxu0 0.0
    %304 = vmatprep.mubr.f32.mxu0 0.0
    %305 = vmatmul.mubr.f32.gmra.mrb[0].mxu0 %v235
    %v306 = vpop.f32.mrb[0].mxu0
    %v307 = vadd.f32 %v232, %v306
    %v308 = vpop.f32.mrb[0].mxu0
    %309 = vmatprep.mubr.f32.mxu0 0.0
    %310 = vmatmul.mubr.f32.gmra.mrb[0].mxu0 %v238
    %v311 = vpop.f32.mrb[0].mxu0
    %v312 = vadd.f32 %v232, %v311
    %v313 = vpop.f32.mrb[0].mxu0
    %314 = vdwg.mxu0
    %317 = vrot.lane.b32.xlu0 %v206, 96
    %v318 = vpop.permute.xlu0 %317
    %319 = vrot.lane.b32.xlu0 %v211, 96
    %v320 = vpop.permute.xlu0 %319
    %vm321 = vcmask 64512
    %v322 = vsel %vm321, %v206, 0
    %v324 = vsel %vm321, %v211, 0
    %v326 = vsel %vm321, %v318, 0
    %v328 = vsel %vm321, %v320, 0
    %330 = vmatprep.subr.mxu0 0.0
    %331 = vmatpush1.xpose.msra.mxu0 %v326
    %332 = vmatprep.subr.mxu0 0.0
    %333 = vmatpush1.xpose.msra.mxu0 %v328
    %334 = vmatprep.subr.mxu0 0.0
    %335 = vmatpush1.xpose.msra.mxu0 0.0
    %336 = vmatprep.subr.mxu0 0.0
    %337 = vmatpush1.xpose.msra.mxu0 0.0
    %338 = vmatprep.subr.mxu0 0.0
    %339 = vmatpush1.xpose.msra.mxu0 0.0
    %340 = vmatprep.subr.mxu0 0.0
    %341 = vmatpush1.xpose.msra.mxu0 0.0
    %342 = vmatprep.subr.mxu0 0.0
    %343 = vmatpush1.xpose.msra.mxu0 0.0
    %344 = vmatprep.subr.mxu0 0.0
    %345 = vmatpush1.xpose.msra.mxu0 0.0
    %346 = vmatprep.subr.mxu0 0.0
    %347 = vmatpush1.xpose.msra.mxu0 0.0
    %348 = vmatprep.subr.mxu0 0.0
    %349 = vmatpush1.xpose.msra.mxu0 0.0
    %350 = vmatprep.subr.mxu0 0.0
    %351 = vmatpush1.xpose.msra.mxu0 0.0
    %352 = vmatprep.subr.mxu0 0.0
    %353 = vmatpush1.xpose.msra.mxu0 0.0
    %354 = vmatprep.subr.mxu0 0.0
    %355 = vmatpush1.xpose.msra.mxu0 0.0
    %356 = vmatprep.subr.mxu0 0.0
    %357 = vmatpush1.xpose.msra.mxu0 0.0
    %358 = vmatprep.subr.mxu0 0.0
    %359 = vmatpush1.xpose.msra.mxu0 0.0
    %360 = vmatprep.subr.mxu0 0.0
    %361 = vmatpush1.xpose.msra.mxu0 0.0
    %362 = vmatprep.subr.mxu0 0.0
    %363 = vmatpush1.xpose.msra.mxu0 0.0
    %364 = vmatprep.subr.mxu0 0.0
    %365 = vmatpush1.xpose.msra.mxu0 0.0
    %366 = vmatprep.subr.mxu0 0.0
    %367 = vmatpush1.xpose.msra.mxu0 0.0
    %368 = vmatprep.subr.mxu0 0.0
    %369 = vmatpush1.xpose.msra.mxu0 0.0
    %370 = vmatprep.subr.mxu0 0.0
    %371 = vmatpush1.xpose.msra.mxu0 0.0
    %372 = vmatprep.subr.mxu0 0.0
    %373 = vmatpush1.xpose.msra.mxu0 0.0
    %374 = vmatprep.subr.mxu0 0.0
    %375 = vmatpush1.xpose.msra.mxu0 0.0
    %376 = vmatprep.subr.mxu0 0.0
    %377 = vmatpush1.xpose.msra.mxu0 0.0
    %378 = vmatprep.subr.mxu0 0.0
    %379 = vmatpush1.xpose.msra.mxu0 0.0
    %380 = vmatprep.subr.mxu0 0.0
    %381 = vmatpush1.xpose.msra.mxu0 0.0
    %382 = vmatprep.subr.mxu0 0.0
    %383 = vmatpush1.xpose.msra.mxu0 0.0
    %384 = vmatprep.subr.mxu0 0.0
    %385 = vmatpush1.xpose.msra.mxu0 0.0
    %386 = vmatprep.subr.mxu0 0.0
    %387 = vmatpush1.xpose.msra.mxu0 0.0
    %388 = vmatprep.subr.mxu0 0.0
    %389 = vmatpush1.xpose.msra.mxu0 0.0
    %390 = vmatprep.subr.mxu0 0.0
    %391 = vmatpush1.xpose.msra.mxu0 0.0
    %392 = vmatprep.subr.mxu0 0.0
    %393 = vmatpush1.xpose.msra.mxu0 0.0
    %394 = vmatprep.mubr.f32.mxu0 0.0
    %395 = vmatmul.mubr.f32.gmra.mrb[0].mxu0 %v322
    %v396 = vpop.f32.mrb[0].mxu0
    %v397 = vadd.f32 0.0, %v396
    %v398 = vpop.f32.mrb[0].mxu0
    %399 = vmatprep.mubr.f32.mxu0 0.0
    %400 = vmatmul.mubr.f32.gmra.mrb[0].mxu0 %v324
    %v401 = vpop.f32.mrb[0].mxu0
    %v402 = vadd.f32 0.0, %v401
    %v403 = vpop.f32.mrb[0].mxu0
    %404 = vdwg.mxu0
    %v405 = vsel %vm124, %v397, -1e+30
    %v406 = vsel %vm125, %v402, -1e+30
    %vm407 = vcmask 130048
    %v408 = vsel %vm407, %v405, -inf
    %409 = vmax.xlane.f32.xlu0 %v408
    %v410 = vpop.xlane.xlu0 %409
    %v411 = vsel %vm407, %v406, -inf
    %412 = vmax.xlane.f32.xlu0 %v411
    %v413 = vpop.xlane.xlu0 %412
    %v414 = vsub.f32 %v405, %v410
    %v415 = vsub.f32 %v406, %v413
    %v416 = vmul.f32 %v414, 1.442695
    %v417 = vpow.pop %v416
    %v418 = vmul.f32 %v415, 1.442695
    %v419 = vpow.pop %v418
    %v420 = vsel %vm407, %v417, 0.0
    %421 = vadd.xlane.f32.xlu0 %v420
    %v422 = vpop.xlane.xlu0 %421
    %v423 = vsel %vm407, %v419, 0.0
    %424 = vadd.xlane.f32.xlu0 %v423
    %v425 = vpop.xlane.xlu0 %424
    %v426 = vrcp.pop %v422
    %v427 = vrcp.pop %v425
    %v428 = vmul.f32 %v417, %v426
    %v429 = vmul.f32 %v419, %v427
    %v431 = vsel %vm407, %v428, 0
    %v434 = vsel %vm407, %v429, 0
    %436 = vmatprep.subr.mxu0 0.0
    %437 = vmatpush1.msra.mxu0 %v307
    %438 = vmatprep.subr.mxu0 0.0
    %439 = vmatpush1.msra.mxu0 %v312
    %440 = vmatprep.subr.mxu0 0.0
    %441 = vmatpush1.msra.mxu0 0.0
    %442 = vmatprep.subr.mxu0 0.0
    %443 = vmatpush1.msra.mxu0 0.0
    %444 = vmatprep.subr.mxu0 0.0
    %445 = vmatpush1.msra.mxu0 0.0
    %446 = vmatprep.subr.mxu0 0.0
    %447 = vmatpush1.msra.mxu0 0.0
    %448 = vmatprep.subr.mxu0 0.0
    %449 = vmatpush1.msra.mxu0 0.0
    %450 = vmatprep.subr.mxu0 0.0
    %451 = vmatpush1.msra.mxu0 0.0
    %452 = vmatprep.subr.mxu0 0.0
    %453 = vmatpush1.msra.mxu0 0.0
    %454 = vmatprep.subr.mxu0 0.0
    %455 = vmatpush1.msra.mxu0 0.0
    %456 = vmatprep.subr.mxu0 0.0
    %457 = vmatpush1.msra.mxu0 0.0
    %458 = vmatprep.subr.mxu0 0.0
    %459 = vmatpush1.msra.mxu0 0.0
    %460 = vmatprep.subr.mxu0 0.0
    %461 = vmatpush1.msra.mxu0 0.0
    %462 = vmatprep.subr.mxu0 0.0
    %463 = vmatpush1.msra.mxu0 0.0
    %464 = vmatprep.subr.mxu0 0.0
    %465 = vmatpush1.msra.mxu0 0.0
    %466 = vmatprep.subr.mxu0 0.0
    %467 = vmatpush1.msra.mxu0 0.0
    %468 = vmatprep.subr.mxu0 0.0
    %469 = vmatpush1.msra.mxu0 0.0
    %470 = vmatprep.subr.mxu0 0.0
    %471 = vmatpush1.msra.mxu0 0.0
    %472 = vmatprep.subr.mxu0 0.0
    %473 = vmatpush1.msra.mxu0 0.0
    %474 = vmatprep.subr.mxu0 0.0
    %475 = vmatpush1.msra.mxu0 0.0
    %476 = vmatprep.subr.mxu0 0.0
    %477 = vmatpush1.msra.mxu0 0.0
    %478 = vmatprep.subr.mxu0 0.0
    %479 = vmatpush1.msra.mxu0 0.0
    %480 = vmatprep.subr.mxu0 0.0
    %481 = vmatpush1.msra.mxu0 0.0
    %482 = vmatprep.subr.mxu0 0.0
    %483 = vmatpush1.msra.mxu0 0.0
    %484 = vmatprep.subr.mxu0 0.0
    %485 = vmatpush1.msra.mxu0 0.0
    %486 = vmatprep.subr.mxu0 0.0
    %487 = vmatpush1.msra.mxu0 0.0
    %488 = vmatprep.subr.mxu0 0.0
    %489 = vmatpush1.msra.mxu0 0.0
    %490 = vmatprep.subr.mxu0 0.0
    %491 = vmatpush1.msra.mxu0 0.0
    %492 = vmatprep.subr.mxu0 0.0
    %493 = vmatpush1.msra.mxu0 0.0
    %494 = vmatprep.subr.mxu0 0.0
    %495 = vmatpush1.msra.mxu0 0.0
    %496 = vmatprep.subr.mxu0 0.0
    %497 = vmatpush1.msra.mxu0 0.0
    %498 = vmatprep.subr.mxu0 0.0
    %499 = vmatpush1.msra.mxu0 0.0
    %500 = vmatprep.mubr.f32.mxu0 0.0
    %501 = vmatmul.mubr.f32.gmra.mrb[0].mxu0 %v431
    %v502 = vpop.f32.mrb[0].mxu0
    %v503 = vadd.f32 0.0, %v502
    %v504 = vpop.f32.mrb[0].mxu0
    %505 = vmatprep.mubr.f32.mxu0 0.0
    %506 = vmatmul.mubr.f32.gmra.mrb[0].mxu0 %v434
    %v507 = vpop.f32.mrb[0].mxu0
    %v508 = vadd.f32 0.0, %v507
    %v509 = vpop.f32.mrb[0].mxu0
    %510 = vdwg.mxu0
    %511 = vrot.lane.b32.xlu0 %v206, 120
    %v512 = vpop.permute.xlu0 %511
    %513 = vrot.lane.b32.xlu0 %v211, 120
    %v514 = vpop.permute.xlu0 %513
    %515 = vrot.lane.b32.xlu0 %v206, 88
    %v516 = vpop.permute.xlu0 %515
    %517 = vrot.lane.b32.xlu0 %v211, 88
    %v518 = vpop.permute.xlu0 %517
    %v519 = vsel %vm321, %v512, 0
    %v521 = vsel %vm321, %v514, 0
    %v523 = vsel %vm321, %v516, 0
    %v525 = vsel %vm321, %v518, 0
    %527 = vmatprep.subr.mxu0 0.0
    %528 = vmatpush1.xpose.msra.mxu0 %v523
    %529 = vmatprep.subr.mxu0 0.0
    %530 = vmatpush1.xpose.msra.mxu0 %v525
    %531 = vmatprep.subr.mxu0 0.0
    %532 = vmatpush1.xpose.msra.mxu0 0.0
    %533 = vmatprep.subr.mxu0 0.0
    %534 = vmatpush1.xpose.msra.mxu0 0.0
    %535 = vmatprep.subr.mxu0 0.0
    %536 = vmatpush1.xpose.msra.mxu0 0.0
    %537 = vmatprep.subr.mxu0 0.0
    %538 = vmatpush1.xpose.msra.mxu0 0.0
    %539 = vmatprep.subr.mxu0 0.0
    %540 = vmatpush1.xpose.msra.mxu0 0.0
    %541 = vmatprep.subr.mxu0 0.0
    %542 = vmatpush1.xpose.msra.mxu0 0.0
    %543 = vmatprep.subr.mxu0 0.0
    %544 = vmatpush1.xpose.msra.mxu0 0.0
    %545 = vmatprep.subr.mxu0 0.0
    %546 = vmatpush1.xpose.msra.mxu0 0.0
    %547 = vmatprep.subr.mxu0 0.0
    %548 = vmatpush1.xpose.msra.mxu0 0.0
    %549 = vmatprep.subr.mxu0 0.0
    %550 = vmatpush1.xpose.msra.mxu0 0.0
    %551 = vmatprep.subr.mxu0 0.0
    %552 = vmatpush1.xpose.msra.mxu0 0.0
    %553 = vmatprep.subr.mxu0 0.0
    %554 = vmatpush1.xpose.msra.mxu0 0.0
    %555 = vmatprep.subr.mxu0 0.0
    %556 = vmatpush1.xpose.msra.mxu0 0.0
    %557 = vmatprep.subr.mxu0 0.0
    %558 = vmatpush1.xpose.msra.mxu0 0.0
    %559 = vmatprep.subr.mxu0 0.0
    %560 = vmatpush1.xpose.msra.mxu0 0.0
    %561 = vmatprep.subr.mxu0 0.0
    %562 = vmatpush1.xpose.msra.mxu0 0.0
    %563 = vmatprep.subr.mxu0 0.0
    %564 = vmatpush1.xpose.msra.mxu0 0.0
    %565 = vmatprep.subr.mxu0 0.0
    %566 = vmatpush1.xpose.msra.mxu0 0.0
    %567 = vmatprep.subr.mxu0 0.0
    %568 = vmatpush1.xpose.msra.mxu0 0.0
    %569 = vmatprep.subr.mxu0 0.0
    %570 = vmatpush1.xpose.msra.mxu0 0.0
    %571 = vmatprep.subr.mxu0 0.0
    %572 = vmatpush1.xpose.msra.mxu0 0.0
    %573 = vmatprep.subr.mxu0 0.0
    %574 = vmatpush1.xpose.msra.mxu0 0.0
    %575 = vmatprep.subr.mxu0 0.0
    %576 = vmatpush1.xpose.msra.mxu0 0.0
    %577 = vmatprep.subr.mxu0 0.0
    %578 = vmatpush1.xpose.msra.mxu0 0.0
    %579 = vmatprep.subr.mxu0 0.0
    %580 = vmatpush1.xpose.msra.mxu0 0.0
    %581 = vmatprep.subr.mxu0 0.0
    %582 = vmatpush1.xpose.msra.mxu0 0.0
    %583 = vmatprep.subr.mxu0 0.0
    %584 = vmatpush1.xpose.msra.mxu0 0.0
    %585 = vmatprep.subr.mxu0 0.0
    %586 = vmatpush1.xpose.msra.mxu0 0.0
    %587 = vmatprep.subr.mxu0 0.0
    %588 = vmatpush1.xpose.msra.mxu0 0.0
    %589 = vmatprep.subr.mxu0 0.0
    %590 = vmatpush1.xpose.msra.mxu0 0.0
    %591 = vmatprep.mubr.f32.mxu0 0.0
    %592 = vmatmul.mubr.f32.gmra.mrb[0].mxu0 %v519
    %v593 = vpop.f32.mrb[0].mxu0
    %v594 = vadd.f32 0.0, %v593
    %v595 = vpop.f32.mrb[0].mxu0
    %596 = vmatprep.mubr.f32.mxu0 0.0
    %597 = vmatmul.mubr.f32.gmra.mrb[0].mxu0 %v521
    %v598 = vpop.f32.mrb[0].mxu0
    %v599 = vadd.f32 0.0, %v598
    %v600 = vpop.f32.mrb[0].mxu0
    %601 = vdwg.mxu0
    %v602 = vsel %vm124, %v594, -1e+30
    %v603 = vsel %vm125, %v599, -1e+30
    %v604 = vsel %vm407, %v602, -inf
    %605 = vmax.xlane.f32.xlu0 %v604
    %v606 = vpop.xlane.xlu0 %605
    %v607 = vsel %vm407, %v603, -inf
    %608 = vmax.xlane.f32.xlu0 %v607
    %v609 = vpop.xlane.xlu0 %608
    %v610 = vsub.f32 %v602, %v606
    %v611 = vsub.f32 %v603, %v609
    %v612 = vmul.f32 %v610, 1.442695
    %v613 = vpow.pop %v612
    %v614 = vmul.f32 %v611, 1.442695
    %v615 = vpow.pop %v614
    %v616 = vsel %vm407, %v613, 0.0
    %617 = vadd.xlane.f32.xlu0 %v616
    %v618 = vpop.xlane.xlu0 %617
    %v619 = vsel %vm407, %v615, 0.0
    %620 = vadd.xlane.f32.xlu0 %v619
    %v621 = vpop.xlane.xlu0 %620
    %v622 = vrcp.pop %v618
    %v623 = vrcp.pop %v621
    %v624 = vmul.f32 %v613, %v622
    %v625 = vmul.f32 %v615, %v623
    %628 = vrot.lane.b32.xlu0 %v307, 120
    %v629 = vpop.permute.xlu0 %628
    %630 = vrot.lane.b32.xlu0 %v312, 120
    %v631 = vpop.permute.xlu0 %630
    %v635 = vsel %vm407, %v624, 0
    %v638 = vsel %vm407, %v625, 0
    %640 = vmatprep.subr.mxu0 0.0
    %641 = vmatpush1.msra.mxu0 %v629
    %642 = vmatprep.subr.mxu0 0.0
    %643 = vmatpush1.msra.mxu0 %v631
    %644 = vmatprep.subr.mxu0 0.0
    %645 = vmatpush1.msra.mxu0 0.0
    %646 = vmatprep.subr.mxu0 0.0
    %647 = vmatpush1.msra.mxu0 0.0
    %648 = vmatprep.subr.mxu0 0.0
    %649 = vmatpush1.msra.mxu0 0.0
    %650 = vmatprep.subr.mxu0 0.0
    %651 = vmatpush1.msra.mxu0 0.0
    %652 = vmatprep.subr.mxu0 0.0
    %653 = vmatpush1.msra.mxu0 0.0
    %654 = vmatprep.subr.mxu0 0.0
    %655 = vmatpush1.msra.mxu0 0.0
    %656 = vmatprep.subr.mxu0 0.0
    %657 = vmatpush1.msra.mxu0 0.0
    %658 = vmatprep.subr.mxu0 0.0
    %659 = vmatpush1.msra.mxu0 0.0
    %660 = vmatprep.subr.mxu0 0.0
    %661 = vmatpush1.msra.mxu0 0.0
    %662 = vmatprep.subr.mxu0 0.0
    %663 = vmatpush1.msra.mxu0 0.0
    %664 = vmatprep.subr.mxu0 0.0
    %665 = vmatpush1.msra.mxu0 0.0
    %666 = vmatprep.subr.mxu0 0.0
    %667 = vmatpush1.msra.mxu0 0.0
    %668 = vmatprep.subr.mxu0 0.0
    %669 = vmatpush1.msra.mxu0 0.0
    %670 = vmatprep.subr.mxu0 0.0
    %671 = vmatpush1.msra.mxu0 0.0
    %672 = vmatprep.subr.mxu0 0.0
    %673 = vmatpush1.msra.mxu0 0.0
    %674 = vmatprep.subr.mxu0 0.0
    %675 = vmatpush1.msra.mxu0 0.0
    %676 = vmatprep.subr.mxu0 0.0
    %677 = vmatpush1.msra.mxu0 0.0
    %678 = vmatprep.subr.mxu0 0.0
    %679 = vmatpush1.msra.mxu0 0.0
    %680 = vmatprep.subr.mxu0 0.0
    %681 = vmatpush1.msra.mxu0 0.0
    %682 = vmatprep.subr.mxu0 0.0
    %683 = vmatpush1.msra.mxu0 0.0
    %684 = vmatprep.subr.mxu0 0.0
    %685 = vmatpush1.msra.mxu0 0.0
    %686 = vmatprep.subr.mxu0 0.0
    %687 = vmatpush1.msra.mxu0 0.0
    %688 = vmatprep.subr.mxu0 0.0
    %689 = vmatpush1.msra.mxu0 0.0
    %690 = vmatprep.subr.mxu0 0.0
    %691 = vmatpush1.msra.mxu0 0.0
    %692 = vmatprep.subr.mxu0 0.0
    %693 = vmatpush1.msra.mxu0 0.0
    %694 = vmatprep.subr.mxu0 0.0
    %695 = vmatpush1.msra.mxu0 0.0
    %696 = vmatprep.subr.mxu0 0.0
    %697 = vmatpush1.msra.mxu0 0.0
    %698 = vmatprep.subr.mxu0 0.0
    %699 = vmatpush1.msra.mxu0 0.0
    %700 = vmatprep.subr.mxu0 0.0
    %701 = vmatpush1.msra.mxu0 0.0
    %702 = vmatprep.subr.mxu0 0.0
    %703 = vmatpush1.msra.mxu0 0.0
    %704 = vmatprep.mubr.f32.mxu0 0.0
    %705 = vmatmul.mubr.f32.gmra.mrb[0].mxu0 %v635
    %v706 = vpop.f32.mrb[0].mxu0
    %v707 = vadd.f32 0.0, %v706
    %v708 = vpop.f32.mrb[0].mxu0
    %709 = vmatprep.mubr.f32.mxu0 0.0
    %710 = vmatmul.mubr.f32.gmra.mrb[0].mxu0 %v638
    %v711 = vpop.f32.mrb[0].mxu0
    %v712 = vadd.f32 0.0, %v711
    %v713 = vpop.f32.mrb[0].mxu0
    %714 = vdwg.mxu0
    %715 = vrot.lane.b32.xlu0 %v97, 32
    %v716 = vpop.permute.xlu0 %715
    %v719 = vsel %vm321, %v707, 0
    %v722 = vsel %vm321, %v712, 0
    %724 = vmatprep.subr.mxu0 0.0
    %725 = vmatpush1.msra.mxu0 %v716
    %726 = vmatprep.subr.mxu0 0.0
    %727 = vmatpush1.msra.mxu0 0.0
    %728 = vmatprep.subr.mxu0 0.0
    %729 = vmatpush1.msra.mxu0 0.0
    %730 = vmatprep.subr.mxu0 0.0
    %731 = vmatpush1.msra.mxu0 0.0
    %732 = vmatprep.subr.mxu0 0.0
    %733 = vmatpush1.msra.mxu0 0.0
    %734 = vmatprep.subr.mxu0 0.0
    %735 = vmatpush1.msra.mxu0 0.0
    %736 = vmatprep.subr.mxu0 0.0
    %737 = vmatpush1.msra.mxu0 0.0
    %738 = vmatprep.subr.mxu0 0.0
    %739 = vmatpush1.msra.mxu0 0.0
    %740 = vmatprep.subr.mxu0 0.0
    %741 = vmatpush1.msra.mxu0 0.0
    %742 = vmatprep.subr.mxu0 0.0
    %743 = vmatpush1.msra.mxu0 0.0
    %744 = vmatprep.subr.mxu0 0.0
    %745 = vmatpush1.msra.mxu0 0.0
    %746 = vmatprep.subr.mxu0 0.0
    %747 = vmatpush1.msra.mxu0 0.0
    %748 = vmatprep.subr.mxu0 0.0
    %749 = vmatpush1.msra.mxu0 0.0
    %750 = vmatprep.subr.mxu0 0.0
    %751 = vmatpush1.msra.mxu0 0.0
    %752 = vmatprep.subr.mxu0 0.0
    %753 = vmatpush1.msra.mxu0 0.0
    %754 = vmatprep.subr.mxu0 0.0
    %755 = vmatpush1.msra.mxu0 0.0
    %756 = vmatprep.subr.mxu0 0.0
    %757 = vmatpush1.msra.mxu0 0.0
    %758 = vmatprep.subr.mxu0 0.0
    %759 = vmatpush1.msra.mxu0 0.0
    %760 = vmatprep.subr.mxu0 0.0
    %761 = vmatpush1.msra.mxu0 0.0
    %762 = vmatprep.subr.mxu0 0.0
    %763 = vmatpush1.msra.mxu0 0.0
    %764 = vmatprep.subr.mxu0 0.0
    %765 = vmatpush1.msra.mxu0 0.0
    %766 = vmatprep.subr.mxu0 0.0
    %767 = vmatpush1.msra.mxu0 0.0
    %768 = vmatprep.subr.mxu0 0.0
    %769 = vmatpush1.msra.mxu0 0.0
    %770 = vmatprep.subr.mxu0 0.0
    %771 = vmatpush1.msra.mxu0 0.0
    %772 = vmatprep.subr.mxu0 0.0
    %773 = vmatpush1.msra.mxu0 0.0
    %774 = vmatprep.subr.mxu0 0.0
    %775 = vmatpush1.msra.mxu0 0.0
    %776 = vmatprep.subr.mxu0 0.0
    %777 = vmatpush1.msra.mxu0 0.0
    %778 = vmatprep.subr.mxu0 0.0
    %779 = vmatpush1.msra.mxu0 0.0
    %780 = vmatprep.subr.mxu0 0.0
    %781 = vmatpush1.msra.mxu0 0.0
    %782 = vmatprep.subr.mxu0 0.0
    %783 = vmatpush1.msra.mxu0 0.0
    %784 = vmatprep.subr.mxu0 0.0
    %785 = vmatpush1.msra.mxu0 0.0
    %786 = vmatprep.subr.mxu0 0.0
    %787 = vmatpush1.msra.mxu0 0.0
    %788 = vmatprep.mubr.f32.mxu0 0.0
    %789 = vmatmul.mubr.f32.gmra.mrb[0].mxu0 %v719
    %v790 = vpop.f32.mrb[0].mxu0
    %v791 = vadd.f32 0.0, %v790
    %v792 = vpop.f32.mrb[0].mxu0
    %793 = vmatprep.mubr.f32.mxu0 0.0
    %794 = vmatmul.mubr.f32.gmra.mrb[0].mxu0 %v722
    %v795 = vpop.f32.mrb[0].mxu0
    %v796 = vadd.f32 0.0, %v795
    %v797 = vpop.f32.mrb[0].mxu0
    %798 = vdwg.mxu0
    %799 = vrot.lane.b32.xlu0 %v94, 32
    %v800 = vpop.permute.xlu0 %799
    %v803 = vsel %vm321, %v503, 0
    %v806 = vsel %vm321, %v508, 0
    %808 = vmatprep.subr.mxu0 0.0
    %809 = vmatpush1.msra.mxu0 %v800
    %810 = vmatprep.subr.mxu0 0.0
    %811 = vmatpush1.msra.mxu0 0.0
    %812 = vmatprep.subr.mxu0 0.0
    %813 = vmatpush1.msra.mxu0 0.0
    %814 = vmatprep.subr.mxu0 0.0
    %815 = vmatpush1.msra.mxu0 0.0
    %816 = vmatprep.subr.mxu0 0.0
    %817 = vmatpush1.msra.mxu0 0.0
    %818 = vmatprep.subr.mxu0 0.0
    %819 = vmatpush1.msra.mxu0 0.0
    %820 = vmatprep.subr.mxu0 0.0
    %821 = vmatpush1.msra.mxu0 0.0
    %822 = vmatprep.subr.mxu0 0.0
    %823 = vmatpush1.msra.mxu0 0.0
    %824 = vmatprep.subr.mxu0 0.0
    %825 = vmatpush1.msra.mxu0 0.0
    %826 = vmatprep.subr.mxu0 0.0
    %827 = vmatpush1.msra.mxu0 0.0
    %828 = vmatprep.subr.mxu0 0.0
    %829 = vmatpush1.msra.mxu0 0.0
    %830 = vmatprep.subr.mxu0 0.0
    %831 = vmatpush1.msra.mxu0 0.0
    %832 = vmatprep.subr.mxu0 0.0
    %833 = vmatpush1.msra.mxu0 0.0
    %834 = vmatprep.subr.mxu0 0.0
    %835 = vmatpush1.msra.mxu0 0.0
    %836 = vmatprep.subr.mxu0 0.0
    %837 = vmatpush1.msra.mxu0 0.0
    %838 = vmatprep.subr.mxu0 0.0
    %839 = vmatpush1.msra.mxu0 0.0
    %840 = vmatprep.subr.mxu0 0.0
    %841 = vmatpush1.msra.mxu0 0.0
    %842 = vmatprep.subr.mxu0 0.0
    %843 = vmatpush1.msra.mxu0 0.0
    %844 = vmatprep.subr.mxu0 0.0
    %845 = vmatpush1.msra.mxu0 0.0
    %846 = vmatprep.subr.mxu0 0.0
    %847 = vmatpush1.msra.mxu0 0.0
    %848 = vmatprep.subr.mxu0 0.0
    %849 = vmatpush1.msra.mxu0 0.0
    %850 = vmatprep.subr.mxu0 0.0
    %851 = vmatpush1.msra.mxu0 0.0
    %852 = vmatprep.subr.mxu0 0.0
    %853 = vmatpush1.msra.mxu0 0.0
    %854 = vmatprep.subr.mxu0 0.0
    %855 = vmatpush1.msra.mxu0 0.0
    %856 = vmatprep.subr.mxu0 0.0
    %857 = vmatpush1.msra.mxu0 0.0
    %858 = vmatprep.subr.mxu0 0.0
    %859 = vmatpush1.msra.mxu0 0.0
    %860 = vmatprep.subr.mxu0 0.0
    %861 = vmatpush1.msra.mxu0 0.0
    %862 = vmatprep.subr.mxu0 0.0
    %863 = vmatpush1.msra.mxu0 0.0
    %864 = vmatprep.subr.mxu0 0.0
    %865 = vmatpush1.msra.mxu0 0.0
    %866 = vmatprep.subr.mxu0 0.0
    %867 = vmatpush1.msra.mxu0 0.0
    %868 = vmatprep.subr.mxu0 0.0
    %869 = vmatpush1.msra.mxu0 0.0
    %870 = vmatprep.subr.mxu0 0.0
    %871 = vmatpush1.msra.mxu0 0.0
    %872 = vmatprep.mubr.f32.mxu0 0.0
    %873 = vmatmul.mubr.f32.gmra.mrb[0].mxu0 %v803
    %v874 = vpop.f32.mrb[0].mxu0
    %v875 = vadd.f32 %v791, %v874
    %v876 = vpop.f32.mrb[0].mxu0
    %877 = vmatprep.mubr.f32.mxu0 0.0
    %878 = vmatmul.mubr.f32.gmra.mrb[0].mxu0 %v806
    %v879 = vpop.f32.mrb[0].mxu0
    %v880 = vadd.f32 %v796, %v879
    %v881 = vpop.f32.mrb[0].mxu0
    %882 = vdwg.mxu0
    %883 = vrot.lane.b32.xlu0 %v206, 112
    %v884 = vpop.permute.xlu0 %883
    %885 = vrot.lane.b32.xlu0 %v211, 112
    %v886 = vpop.permute.xlu0 %885
    %887 = vrot.lane.b32.xlu0 %v206, 80
    %v888 = vpop.permute.xlu0 %887
    %889 = vrot.lane.b32.xlu0 %v211, 80
    %v890 = vpop.permute.xlu0 %889
    %v891 = vsel %vm321, %v884, 0
    %v893 = vsel %vm321, %v886, 0
    %v895 = vsel %vm321, %v888, 0
    %v897 = vsel %vm321, %v890, 0
    %899 = vmatprep.subr.mxu0 0.0
    %900 = vmatpush1.xpose.msra.mxu0 %v895
    %901 = vmatprep.subr.mxu0 0.0
    %902 = vmatpush1.xpose.msra.mxu0 %v897
    %903 = vmatprep.subr.mxu0 0.0
    %904 = vmatpush1.xpose.msra.mxu0 0.0
    %905 = vmatprep.subr.mxu0 0.0
    %906 = vmatpush1.xpose.msra.mxu0 0.0
    %907 = vmatprep.subr.mxu0 0.0
    %908 = vmatpush1.xpose.msra.mxu0 0.0
    %909 = vmatprep.subr.mxu0 0.0
    %910 = vmatpush1.xpose.msra.mxu0 0.0
    %911 = vmatprep.subr.mxu0 0.0
    %912 = vmatpush1.xpose.msra.mxu0 0.0
    %913 = vmatprep.subr.mxu0 0.0
    %914 = vmatpush1.xpose.msra.mxu0 0.0
    %915 = vmatprep.subr.mxu0 0.0
    %916 = vmatpush1.xpose.msra.mxu0 0.0
    %917 = vmatprep.subr.mxu0 0.0
    %918 = vmatpush1.xpose.msra.mxu0 0.0
    %919 = vmatprep.subr.mxu0 0.0
    %920 = vmatpush1.xpose.msra.mxu0 0.0
    %921 = vmatprep.subr.mxu0 0.0
    %922 = vmatpush1.xpose.msra.mxu0 0.0
    %923 = vmatprep.subr.mxu0 0.0
    %924 = vmatpush1.xpose.msra.mxu0 0.0
    %925 = vmatprep.subr.mxu0 0.0
    %926 = vmatpush1.xpose.msra.mxu0 0.0
    %927 = vmatprep.subr.mxu0 0.0
    %928 = vmatpush1.xpose.msra.mxu0 0.0
    %929 = vmatprep.subr.mxu0 0.0
    %930 = vmatpush1.xpose.msra.mxu0 0.0
    %931 = vmatprep.subr.mxu0 0.0
    %932 = vmatpush1.xpose.msra.mxu0 0.0
    %933 = vmatprep.subr.mxu0 0.0
    %934 = vmatpush1.xpose.msra.mxu0 0.0
    %935 = vmatprep.subr.mxu0 0.0
    %936 = vmatpush1.xpose.msra.mxu0 0.0
    %937 = vmatprep.subr.mxu0 0.0
    %938 = vmatpush1.xpose.msra.mxu0 0.0
    %939 = vmatprep.subr.mxu0 0.0
    %940 = vmatpush1.xpose.msra.mxu0 0.0
    %941 = vmatprep.subr.mxu0 0.0
    %942 = vmatpush1.xpose.msra.mxu0 0.0
    %943 = vmatprep.subr.mxu0 0.0
    %944 = vmatpush1.xpose.msra.mxu0 0.0
    %945 = vmatprep.subr.mxu0 0.0
    %946 = vmatpush1.xpose.msra.mxu0 0.0
    %947 = vmatprep.subr.mxu0 0.0
    %948 = vmatpush1.xpose.msra.mxu0 0.0
    %949 = vmatprep.subr.mxu0 0.0
    %950 = vmatpush1.xpose.msra.mxu0 0.0
    %951 = vmatprep.subr.mxu0 0.0
    %952 = vmatpush1.xpose.msra.mxu0 0.0
    %953 = vmatprep.subr.mxu0 0.0
    %954 = vmatpush1.xpose.msra.mxu0 0.0
    %955 = vmatprep.subr.mxu0 0.0
    %956 = vmatpush1.xpose.msra.mxu0 0.0
    %957 = vmatprep.subr.mxu0 0.0
    %958 = vmatpush1.xpose.msra.mxu0 0.0
    %959 = vmatprep.subr.mxu0 0.0
    %960 = vmatpush1.xpose.msra.mxu0 0.0
    %961 = vmatprep.subr.mxu0 0.0
    %962 = vmatpush1.xpose.msra.mxu0 0.0
    %963 = vmatprep.mubr.f32.mxu0 0.0
    %964 = vmatmul.mubr.f32.gmra.mrb[0].mxu0 %v891
    %v965 = vpop.f32.mrb[0].mxu0
    %v966 = vadd.f32 0.0, %v965
    %v967 = vpop.f32.mrb[0].mxu0
    %968 = vmatprep.mubr.f32.mxu0 0.0
    %969 = vmatmul.mubr.f32.gmra.mrb[0].mxu0 %v893
    %v970 = vpop.f32.mrb[0].mxu0
    %v971 = vadd.f32 0.0, %v970
    %v972 = vpop.f32.mrb[0].mxu0
    %973 = vdwg.mxu0
    %v974 = vsel %vm124, %v966, -1e+30
    %v975 = vsel %vm125, %v971, -1e+30
    %v976 = vsel %vm407, %v974, -inf
    %977 = vmax.xlane.f32.xlu0 %v976
    %v978 = vpop.xlane.xlu0 %977
    %v979 = vsel %vm407, %v975, -inf
    %980 = vmax.xlane.f32.xlu0 %v979
    %v981 = vpop.xlane.xlu0 %980
    %v982 = vsub.f32 %v974, %v978
    %v983 = vsub.f32 %v975, %v981
    %v984 = vmul.f32 %v982, 1.442695
    %v985 = vpow.pop %v984
    %v986 = vmul.f32 %v983, 1.442695
    %v987 = vpow.pop %v986
    %v988 = vsel %vm407, %v985, 0.0
    %989 = vadd.xlane.f32.xlu0 %v988
    %v990 = vpop.xlane.xlu0 %989
    %v991 = vsel %vm407, %v987, 0.0
    %992 = vadd.xlane.f32.xlu0 %v991
    %v993 = vpop.xlane.xlu0 %992
    %v994 = vrcp.pop %v990
    %v995 = vrcp.pop %v993
    %v996 = vmul.f32 %v985, %v994
    %v997 = vmul.f32 %v987, %v995
    %998 = vrot.lane.b32.xlu0 %v307, 112
    %v999 = vpop.permute.xlu0 %998
    %1000 = vrot.lane.b32.xlu0 %v312, 112
    %v1001 = vpop.permute.xlu0 %1000
    %v1005 = vsel %vm407, %v996, 0
    %v1008 = vsel %vm407, %v997, 0
    %1010 = vmatprep.subr.mxu0 0.0
    %1011 = vmatpush1.msra.mxu0 %v999
    %1012 = vmatprep.subr.mxu0 0.0
    %1013 = vmatpush1.msra.mxu0 %v1001
    %1014 = vmatprep.subr.mxu0 0.0
    %1015 = vmatpush1.msra.mxu0 0.0
    %1016 = vmatprep.subr.mxu0 0.0
    %1017 = vmatpush1.msra.mxu0 0.0
    %1018 = vmatprep.subr.mxu0 0.0
    %1019 = vmatpush1.msra.mxu0 0.0
    %1020 = vmatprep.subr.mxu0 0.0
    %1021 = vmatpush1.msra.mxu0 0.0
    %1022 = vmatprep.subr.mxu0 0.0
    %1023 = vmatpush1.msra.mxu0 0.0
    %1024 = vmatprep.subr.mxu0 0.0
    %1025 = vmatpush1.msra.mxu0 0.0
    %1026 = vmatprep.subr.mxu0 0.0
    %1027 = vmatpush1.msra.mxu0 0.0
    %1028 = vmatprep.subr.mxu0 0.0
    %1029 = vmatpush1.msra.mxu0 0.0
    %1030 = vmatprep.subr.mxu0 0.0
    %1031 = vmatpush1.msra.mxu0 0.0
    %1032 = vmatprep.subr.mxu0 0.0
    %1033 = vmatpush1.msra.mxu0 0.0
    %1034 = vmatprep.subr.mxu0 0.0
    %1035 = vmatpush1.msra.mxu0 0.0
    %1036 = vmatprep.subr.mxu0 0.0
    %1037 = vmatpush1.msra.mxu0 0.0
    %1038 = vmatprep.subr.mxu0 0.0
    %1039 = vmatpush1.msra.mxu0 0.0
    %1040 = vmatprep.subr.mxu0 0.0
    %1041 = vmatpush1.msra.mxu0 0.0
    %1042 = vmatprep.subr.mxu0 0.0
    %1043 = vmatpush1.msra.mxu0 0.0
    %1044 = vmatprep.subr.mxu0 0.0
    %1045 = vmatpush1.msra.mxu0 0.0
    %1046 = vmatprep.subr.mxu0 0.0
    %1047 = vmatpush1.msra.mxu0 0.0
    %1048 = vmatprep.subr.mxu0 0.0
    %1049 = vmatpush1.msra.mxu0 0.0
    %1050 = vmatprep.subr.mxu0 0.0
    %1051 = vmatpush1.msra.mxu0 0.0
    %1052 = vmatprep.subr.mxu0 0.0
    %1053 = vmatpush1.msra.mxu0 0.0
    %1054 = vmatprep.subr.mxu0 0.0
    %1055 = vmatpush1.msra.mxu0 0.0
    %1056 = vmatprep.subr.mxu0 0.0
    %1057 = vmatpush1.msra.mxu0 0.0
    %1058 = vmatprep.subr.mxu0 0.0
    %1059 = vmatpush1.msra.mxu0 0.0
    %1060 = vmatprep.subr.mxu0 0.0
    %1061 = vmatpush1.msra.mxu0 0.0
    %1062 = vmatprep.subr.mxu0 0.0
    %1063 = vmatpush1.msra.mxu0 0.0
    %1064 = vmatprep.subr.mxu0 0.0
    %1065 = vmatpush1.msra.mxu0 0.0
    %1066 = vmatprep.subr.mxu0 0.0
    %1067 = vmatpush1.msra.mxu0 0.0
    %1068 = vmatprep.subr.mxu0 0.0
    %1069 = vmatpush1.msra.mxu0 0.0
    %1070 = vmatprep.subr.mxu0 0.0
    %1071 = vmatpush1.msra.mxu0 0.0
    %1072 = vmatprep.subr.mxu0 0.0
    %1073 = vmatpush1.msra.mxu0 0.0
    %1074 = vmatprep.mubr.f32.mxu0 0.0
    %1075 = vmatmul.mubr.f32.gmra.mrb[0].mxu0 %v1005
    %v1076 = vpop.f32.mrb[0].mxu0
    %v1077 = vadd.f32 0.0, %v1076
    %v1078 = vpop.f32.mrb[0].mxu0
    %1079 = vmatprep.mubr.f32.mxu0 0.0
    %1080 = vmatmul.mubr.f32.gmra.mrb[0].mxu0 %v1008
    %v1081 = vpop.f32.mrb[0].mxu0
    %v1082 = vadd.f32 0.0, %v1081
    %v1083 = vpop.f32.mrb[0].mxu0
    %1084 = vdwg.mxu0
    %1085 = vrot.lane.b32.xlu0 %v100, 32
    %v1086 = vpop.permute.xlu0 %1085
    %v1089 = vsel %vm321, %v1077, 0
    %v1092 = vsel %vm321, %v1082, 0
    %1094 = vmatprep.subr.mxu0 0.0
    %1095 = vmatpush1.msra.mxu0 %v1086
    %1096 = vmatprep.subr.mxu0 0.0
    %1097 = vmatpush1.msra.mxu0 0.0
    %1098 = vmatprep.subr.mxu0 0.0
    %1099 = vmatpush1.msra.mxu0 0.0
    %1100 = vmatprep.subr.mxu0 0.0
    %1101 = vmatpush1.msra.mxu0 0.0
    %1102 = vmatprep.subr.mxu0 0.0
    %1103 = vmatpush1.msra.mxu0 0.0
    %1104 = vmatprep.subr.mxu0 0.0
    %1105 = vmatpush1.msra.mxu0 0.0
    %1106 = vmatprep.subr.mxu0 0.0
    %1107 = vmatpush1.msra.mxu0 0.0
    %1108 = vmatprep.subr.mxu0 0.0
    %1109 = vmatpush1.msra.mxu0 0.0
    %1110 = vmatprep.subr.mxu0 0.0
    %1111 = vmatpush1.msra.mxu0 0.0
    %1112 = vmatprep.subr.mxu0 0.0
    %1113 = vmatpush1.msra.mxu0 0.0
    %1114 = vmatprep.subr.mxu0 0.0
    %1115 = vmatpush1.msra.mxu0 0.0
    %1116 = vmatprep.subr.mxu0 0.0
    %1117 = vmatpush1.msra.mxu0 0.0
    %1118 = vmatprep.subr.mxu0 0.0
    %1119 = vmatpush1.msra.mxu0 0.0
    %1120 = vmatprep.subr.mxu0 0.0
    %1121 = vmatpush1.msra.mxu0 0.0
    %1122 = vmatprep.subr.mxu0 0.0
    %1123 = vmatpush1.msra.mxu0 0.0
    %1124 = vmatprep.subr.mxu0 0.0
    %1125 = vmatpush1.msra.mxu0 0.0
    %1126 = vmatprep.subr.mxu0 0.0
    %1127 = vmatpush1.msra.mxu0 0.0
    %1128 = vmatprep.subr.mxu0 0.0
    %1129 = vmatpush1.msra.mxu0 0.0
    %1130 = vmatprep.subr.mxu0 0.0
    %1131 = vmatpush1.msra.mxu0 0.0
    %1132 = vmatprep.subr.mxu0 0.0
    %1133 = vmatpush1.msra.mxu0 0.0
    %1134 = vmatprep.subr.mxu0 0.0
    %1135 = vmatpush1.msra.mxu0 0.0
    %1136 = vmatprep.subr.mxu0 0.0
    %1137 = vmatpush1.msra.mxu0 0.0
    %1138 = vmatprep.subr.mxu0 0.0
    %1139 = vmatpush1.msra.mxu0 0.0
    %1140 = vmatprep.subr.mxu0 0.0
    %1141 = vmatpush1.msra.mxu0 0.0
    %1142 = vmatprep.subr.mxu0 0.0
    %1143 = vmatpush1.msra.mxu0 0.0
    %1144 = vmatprep.subr.mxu0 0.0
    %1145 = vmatpush1.msra.mxu0 0.0
    %1146 = vmatprep.subr.mxu0 0.0
    %1147 = vmatpush1.msra.mxu0 0.0
    %1148 = vmatprep.subr.mxu0 0.0
    %1149 = vmatpush1.msra.mxu0 0.0
    %1150 = vmatprep.subr.mxu0 0.0
    %1151 = vmatpush1.msra.mxu0 0.0
    %1152 = vmatprep.subr.mxu0 0.0
    %1153 = vmatpush1.msra.mxu0 0.0
    %1154 = vmatprep.subr.mxu0 0.0
    %1155 = vmatpush1.msra.mxu0 0.0
    %1156 = vmatprep.subr.mxu0 0.0
    %1157 = vmatpush1.msra.mxu0 0.0
    %1158 = vmatprep.mubr.f32.mxu0 0.0
    %1159 = vmatmul.mubr.f32.gmra.mrb[0].mxu0 %v1089
    %v1160 = vpop.f32.mrb[0].mxu0
    %v1161 = vadd.f32 0.0, %v1160
    %v1162 = vpop.f32.mrb[0].mxu0
    %1163 = vmatprep.mubr.f32.mxu0 0.0
    %1164 = vmatmul.mubr.f32.gmra.mrb[0].mxu0 %v1092
    %v1165 = vpop.f32.mrb[0].mxu0
    %v1166 = vadd.f32 0.0, %v1165
    %v1167 = vpop.f32.mrb[0].mxu0
    %1168 = vdwg.mxu0
    %v1169 = vadd.f32 %v875, %v1161
    %v1170 = vadd.f32 %v880, %v1166
    %1171 = vrot.lane.b32.xlu0 %v206, 104
    %v1172 = vpop.permute.xlu0 %1171
    %1173 = vrot.lane.b32.xlu0 %v211, 104
    %v1174 = vpop.permute.xlu0 %1173
    %1175 = vrot.lane.b32.xlu0 %v206, 72
    %v1176 = vpop.permute.xlu0 %1175
    %1177 = vrot.lane.b32.xlu0 %v211, 72
    %v1178 = vpop.permute.xlu0 %1177
    %v1179 = vsel %vm321, %v1172, 0
    %v1181 = vsel %vm321, %v1174, 0
    %v1183 = vsel %vm321, %v1176, 0
    %v1185 = vsel %vm321, %v1178, 0
    %1187 = vmatprep.subr.mxu0 0.0
    %1188 = vmatpush1.xpose.msra.mxu0 %v1183
    %1189 = vmatprep.subr.mxu0 0.0
    %1190 = vmatpush1.xpose.msra.mxu0 %v1185
    %1191 = vmatprep.subr.mxu0 0.0
    %1192 = vmatpush1.xpose.msra.mxu0 0.0
    %1193 = vmatprep.subr.mxu0 0.0
    %1194 = vmatpush1.xpose.msra.mxu0 0.0
    %1195 = vmatprep.subr.mxu0 0.0
    %1196 = vmatpush1.xpose.msra.mxu0 0.0
    %1197 = vmatprep.subr.mxu0 0.0
    %1198 = vmatpush1.xpose.msra.mxu0 0.0
    %1199 = vmatprep.subr.mxu0 0.0
    %1200 = vmatpush1.xpose.msra.mxu0 0.0
    %1201 = vmatprep.subr.mxu0 0.0
    %1202 = vmatpush1.xpose.msra.mxu0 0.0
    %1203 = vmatprep.subr.mxu0 0.0
    %1204 = vmatpush1.xpose.msra.mxu0 0.0
    %1205 = vmatprep.subr.mxu0 0.0
    %1206 = vmatpush1.xpose.msra.mxu0 0.0
    %1207 = vmatprep.subr.mxu0 0.0
    %1208 = vmatpush1.xpose.msra.mxu0 0.0
    %1209 = vmatprep.subr.mxu0 0.0
    %1210 = vmatpush1.xpose.msra.mxu0 0.0
    %1211 = vmatprep.subr.mxu0 0.0
    %1212 = vmatpush1.xpose.msra.mxu0 0.0
    %1213 = vmatprep.subr.mxu0 0.0
    %1214 = vmatpush1.xpose.msra.mxu0 0.0
    %1215 = vmatprep.subr.mxu0 0.0
    %1216 = vmatpush1.xpose.msra.mxu0 0.0
    %1217 = vmatprep.subr.mxu0 0.0
    %1218 = vmatpush1.xpose.msra.mxu0 0.0
    %1219 = vmatprep.subr.mxu0 0.0
    %1220 = vmatpush1.xpose.msra.mxu0 0.0
    %1221 = vmatprep.subr.mxu0 0.0
    %1222 = vmatpush1.xpose.msra.mxu0 0.0
    %1223 = vmatprep.subr.mxu0 0.0
    %1224 = vmatpush1.xpose.msra.mxu0 0.0
    %1225 = vmatprep.subr.mxu0 0.0
    %1226 = vmatpush1.xpose.msra.mxu0 0.0
    %1227 = vmatprep.subr.mxu0 0.0
    %1228 = vmatpush1.xpose.msra.mxu0 0.0
    %1229 = vmatprep.subr.mxu0 0.0
    %1230 = vmatpush1.xpose.msra.mxu0 0.0
    %1231 = vmatprep.subr.mxu0 0.0
    %1232 = vmatpush1.xpose.msra.mxu0 0.0
    %1233 = vmatprep.subr.mxu0 0.0
    %1234 = vmatpush1.xpose.msra.mxu0 0.0
    %1235 = vmatprep.subr.mxu0 0.0
    %1236 = vmatpush1.xpose.msra.mxu0 0.0
    %1237 = vmatprep.subr.mxu0 0.0
    %1238 = vmatpush1.xpose.msra.mxu0 0.0
    %1239 = vmatprep.subr.mxu0 0.0
    %1240 = vmatpush1.xpose.msra.mxu0 0.0
    %1241 = vmatprep.subr.mxu0 0.0
    %1242 = vmatpush1.xpose.msra.mxu0 0.0
    %1243 = vmatprep.subr.mxu0 0.0
    %1244 = vmatpush1.xpose.msra.mxu0 0.0
    %1245 = vmatprep.subr.mxu0 0.0
    %1246 = vmatpush1.xpose.msra.mxu0 0.0
    %1247 = vmatprep.subr.mxu0 0.0
    %1248 = vmatpush1.xpose.msra.mxu0 0.0
    %1249 = vmatprep.subr.mxu0 0.0
    %1250 = vmatpush1.xpose.msra.mxu0 0.0
    %1251 = vmatprep.mubr.f32.mxu0 0.0
    %1252 = vmatmul.mubr.f32.gmra.mrb[0].mxu0 %v1179
    %v1253 = vpop.f32.mrb[0].mxu0
    %v1254 = vadd.f32 0.0, %v1253
    %v1255 = vpop.f32.mrb[0].mxu0
    %1256 = vmatprep.mubr.f32.mxu0 0.0
    %1257 = vmatmul.mubr.f32.gmra.mrb[0].mxu0 %v1181
    %v1258 = vpop.f32.mrb[0].mxu0
    %v1259 = vadd.f32 0.0, %v1258
    %v1260 = vpop.f32.mrb[0].mxu0
    %1261 = vdwg.mxu0
    %v1262 = vsel %vm124, %v1254, -1e+30
    %v1263 = vsel %vm125, %v1259, -1e+30
    %v1264 = vsel %vm407, %v1262, -inf
    %1265 = vmax.xlane.f32.xlu0 %v1264
    %v1266 = vpop.xlane.xlu0 %1265
    %v1267 = vsel %vm407, %v1263, -inf
    %1268 = vmax.xlane.f32.xlu0 %v1267
    %v1269 = vpop.xlane.xlu0 %1268
    %v1270 = vsub.f32 %v1262, %v1266
    %v1271 = vsub.f32 %v1263, %v1269
    %v1272 = vmul.f32 %v1270, 1.442695
    %v1273 = vpow.pop %v1272
    %v1274 = vmul.f32 %v1271, 1.442695
    %v1275 = vpow.pop %v1274
    %v1276 = vsel %vm407, %v1273, 0.0
    %1277 = vadd.xlane.f32.xlu0 %v1276
    %v1278 = vpop.xlane.xlu0 %1277
    %v1279 = vsel %vm407, %v1275, 0.0
    %1280 = vadd.xlane.f32.xlu0 %v1279
    %v1281 = vpop.xlane.xlu0 %1280
    %v1282 = vrcp.pop %v1278
    %v1283 = vrcp.pop %v1281
    %v1284 = vmul.f32 %v1273, %v1282
    %v1285 = vmul.f32 %v1275, %v1283
    %1286 = vrot.lane.b32.xlu0 %v307, 104
    %v1287 = vpop.permute.xlu0 %1286
    %1288 = vrot.lane.b32.xlu0 %v312, 104
    %v1289 = vpop.permute.xlu0 %1288
    %v1293 = vsel %vm407, %v1284, 0
    %v1296 = vsel %vm407, %v1285, 0
    %1298 = vmatprep.subr.mxu0 0.0
    %1299 = vmatpush1.msra.mxu0 %v1287
    %1300 = vmatprep.subr.mxu0 0.0
    %1301 = vmatpush1.msra.mxu0 %v1289
    %1302 = vmatprep.subr.mxu0 0.0
    %1303 = vmatpush1.msra.mxu0 0.0
    %1304 = vmatprep.subr.mxu0 0.0
    %1305 = vmatpush1.msra.mxu0 0.0
    %1306 = vmatprep.subr.mxu0 0.0
    %1307 = vmatpush1.msra.mxu0 0.0
    %1308 = vmatprep.subr.mxu0 0.0
    %1309 = vmatpush1.msra.mxu0 0.0
    %1310 = vmatprep.subr.mxu0 0.0
    %1311 = vmatpush1.msra.mxu0 0.0
    %1312 = vmatprep.subr.mxu0 0.0
    %1313 = vmatpush1.msra.mxu0 0.0
    %1314 = vmatprep.subr.mxu0 0.0
    %1315 = vmatpush1.msra.mxu0 0.0
    %1316 = vmatprep.subr.mxu0 0.0
    %1317 = vmatpush1.msra.mxu0 0.0
    %1318 = vmatprep.subr.mxu0 0.0
    %1319 = vmatpush1.msra.mxu0 0.0
    %1320 = vmatprep.subr.mxu0 0.0
    %1321 = vmatpush1.msra.mxu0 0.0
    %1322 = vmatprep.subr.mxu0 0.0
    %1323 = vmatpush1.msra.mxu0 0.0
    %1324 = vmatprep.subr.mxu0 0.0
    %1325 = vmatpush1.msra.mxu0 0.0
    %1326 = vmatprep.subr.mxu0 0.0
    %1327 = vmatpush1.msra.mxu0 0.0
    %1328 = vmatprep.subr.mxu0 0.0
    %1329 = vmatpush1.msra.mxu0 0.0
    %1330 = vmatprep.subr.mxu0 0.0
    %1331 = vmatpush1.msra.mxu0 0.0
    %1332 = vmatprep.subr.mxu0 0.0
    %1333 = vmatpush1.msra.mxu0 0.0
    %1334 = vmatprep.subr.mxu0 0.0
    %1335 = vmatpush1.msra.mxu0 0.0
    %1336 = vmatprep.subr.mxu0 0.0
    %1337 = vmatpush1.msra.mxu0 0.0
    %1338 = vmatprep.subr.mxu0 0.0
    %1339 = vmatpush1.msra.mxu0 0.0
    %1340 = vmatprep.subr.mxu0 0.0
    %1341 = vmatpush1.msra.mxu0 0.0
    %1342 = vmatprep.subr.mxu0 0.0
    %1343 = vmatpush1.msra.mxu0 0.0
    %1344 = vmatprep.subr.mxu0 0.0
    %1345 = vmatpush1.msra.mxu0 0.0
    %1346 = vmatprep.subr.mxu0 0.0
    %1347 = vmatpush1.msra.mxu0 0.0
    %1348 = vmatprep.subr.mxu0 0.0
    %1349 = vmatpush1.msra.mxu0 0.0
    %1350 = vmatprep.subr.mxu0 0.0
    %1351 = vmatpush1.msra.mxu0 0.0
    %1352 = vmatprep.subr.mxu0 0.0
    %1353 = vmatpush1.msra.mxu0 0.0
    %1354 = vmatprep.subr.mxu0 0.0
    %1355 = vmatpush1.msra.mxu0 0.0
    %1356 = vmatprep.subr.mxu0 0.0
    %1357 = vmatpush1.msra.mxu0 0.0
    %1358 = vmatprep.subr.mxu0 0.0
    %1359 = vmatpush1.msra.mxu0 0.0
    %1360 = vmatprep.subr.mxu0 0.0
    %1361 = vmatpush1.msra.mxu0 0.0
    %1362 = vmatprep.mubr.f32.mxu0 0.0
    %1363 = vmatmul.mubr.f32.gmra.mrb[0].mxu0 %v1293
    %v1364 = vpop.f32.mrb[0].mxu0
    %v1365 = vadd.f32 0.0, %v1364
    %v1366 = vpop.f32.mrb[0].mxu0
    %1367 = vmatprep.mubr.f32.mxu0 0.0
    %1368 = vmatmul.mubr.f32.gmra.mrb[0].mxu0 %v1296
    %v1369 = vpop.f32.mrb[0].mxu0
    %v1370 = vadd.f32 0.0, %v1369
    %v1371 = vpop.f32.mrb[0].mxu0
    %1372 = vdwg.mxu0
    %1373 = vrot.lane.b32.xlu0 %v103, 32
    %v1374 = vpop.permute.xlu0 %1373
    %v1377 = vsel %vm321, %v1365, 0
    %v1380 = vsel %vm321, %v1370, 0
    %1382 = vmatprep.subr.mxu0 0.0
    %1383 = vmatpush1.msra.mxu0 %v1374
    %1384 = vmatprep.subr.mxu0 0.0
    %1385 = vmatpush1.msra.mxu0 0.0
    %1386 = vmatprep.subr.mxu0 0.0
    %1387 = vmatpush1.msra.mxu0 0.0
    %1388 = vmatprep.subr.mxu0 0.0
    %1389 = vmatpush1.msra.mxu0 0.0
    %1390 = vmatprep.subr.mxu0 0.0
    %1391 = vmatpush1.msra.mxu0 0.0
    %1392 = vmatprep.subr.mxu0 0.0
    %1393 = vmatpush1.msra.mxu0 0.0
    %1394 = vmatprep.subr.mxu0 0.0
    %1395 = vmatpush1.msra.mxu0 0.0
    %1396 = vmatprep.subr.mxu0 0.0
    %1397 = vmatpush1.msra.mxu0 0.0
    %1398 = vmatprep.subr.mxu0 0.0
    %1399 = vmatpush1.msra.mxu0 0.0
    %1400 = vmatprep.subr.mxu0 0.0
    %1401 = vmatpush1.msra.mxu0 0.0
    %1402 = vmatprep.subr.mxu0 0.0
    %1403 = vmatpush1.msra.mxu0 0.0
    %1404 = vmatprep.subr.mxu0 0.0
    %1405 = vmatpush1.msra.mxu0 0.0
    %1406 = vmatprep.subr.mxu0 0.0
    %1407 = vmatpush1.msra.mxu0 0.0
    %1408 = vmatprep.subr.mxu0 0.0
    %1409 = vmatpush1.msra.mxu0 0.0
    %1410 = vmatprep.subr.mxu0 0.0
    %1411 = vmatpush1.msra.mxu0 0.0
    %1412 = vmatprep.subr.mxu0 0.0
    %1413 = vmatpush1.msra.mxu0 0.0
    %1414 = vmatprep.subr.mxu0 0.0
    %1415 = vmatpush1.msra.mxu0 0.0
    %1416 = vmatprep.subr.mxu0 0.0
    %1417 = vmatpush1.msra.mxu0 0.0
    %1418 = vmatprep.subr.mxu0 0.0
    %1419 = vmatpush1.msra.mxu0 0.0
    %1420 = vmatprep.subr.mxu0 0.0
    %1421 = vmatpush1.msra.mxu0 0.0
    %1422 = vmatprep.subr.mxu0 0.0
    %1423 = vmatpush1.msra.mxu0 0.0
    %1424 = vmatprep.subr.mxu0 0.0
    %1425 = vmatpush1.msra.mxu0 0.0
    %1426 = vmatprep.subr.mxu0 0.0
    %1427 = vmatpush1.msra.mxu0 0.0
    %1428 = vmatprep.subr.mxu0 0.0
    %1429 = vmatpush1.msra.mxu0 0.0
    %1430 = vmatprep.subr.mxu0 0.0
    %1431 = vmatpush1.msra.mxu0 0.0
    %1432 = vmatprep.subr.mxu0 0.0
    %1433 = vmatpush1.msra.mxu0 0.0
    %1434 = vmatprep.subr.mxu0 0.0
    %1435 = vmatpush1.msra.mxu0 0.0
    %1436 = vmatprep.subr.mxu0 0.0
    %1437 = vmatpush1.msra.mxu0 0.0
    %1438 = vmatprep.subr.mxu0 0.0
    %1439 = vmatpush1.msra.mxu0 0.0
    %1440 = vmatprep.subr.mxu0 0.0
    %1441 = vmatpush1.msra.mxu0 0.0
    %1442 = vmatprep.subr.mxu0 0.0
    %1443 = vmatpush1.msra.mxu0 0.0
    %1444 = vmatprep.subr.mxu0 0.0
    %1445 = vmatpush1.msra.mxu0 0.0
    %1446 = vmatprep.mubr.f32.mxu0 0.0
    %1447 = vmatmul.mubr.f32.gmra.mrb[0].mxu0 %v1377
    %v1448 = vpop.f32.mrb[0].mxu0
    %v1449 = vadd.f32 0.0, %v1448
    %v1450 = vpop.f32.mrb[0].mxu0
    %1451 = vmatprep.mubr.f32.mxu0 0.0
    %1452 = vmatmul.mubr.f32.gmra.mrb[0].mxu0 %v1380
    %v1453 = vpop.f32.mrb[0].mxu0
    %v1454 = vadd.f32 0.0, %v1453
    %v1455 = vpop.f32.mrb[0].mxu0
    %1456 = vdwg.mxu0
    %v1457 = vadd.f32 %v1169, %v1449
    %v1458 = vadd.f32 %v1170, %v1454
    %v1459 = vlaneseq
    %v1460 = vshrl.u32 %v1459, 7
    %v1461 = vsub.s32 3, %v1460
    %v1462 = vrot.slane %v114, %v1461
    %v1463 = vadd.f32 %v1457, %v1462
    %v1464 = vadd.f32 %v1458, %v1462
    %v1465 = vadd.f32 %v82, %v1463
    %v1466 = vadd.f32 %v83, %v1464
    %v1467 = vsel %vm132, %v1465, 0.0
    %1468 = vadd.xlane.f32.xlu0 %v1467
    %v1469 = vpop.xlane.xlu0 %1468
    %v1470 = vsel %vm132, %v1466, 0.0
    %1471 = vadd.xlane.f32.xlu0 %v1470
    %v1472 = vpop.xlane.xlu0 %1471
    %v1473 = vrcp.pop 32.0
    %v1474 = vmul.f32 %v1469, %v1473
    %v1475 = vmul.f32 %v1472, %v1473
    %v1476 = vsub.f32 %v1465, %v1474
    %v1477 = vsub.f32 %v1466, %v1475
    %v1478 = vmul.f32 %v1476, %v1476
    %v1479 = vmul.f32 %v1477, %v1477
    %v1480 = vsel %vm132, %v1478, 0.0
    %1481 = vadd.xlane.f32.xlu0 %v1480
    %v1482 = vpop.xlane.xlu0 %1481
    %v1483 = vsel %vm132, %v1479, 0.0
    %1484 = vadd.xlane.f32.xlu0 %v1483
    %v1485 = vpop.xlane.xlu0 %1484
    %v1486 = vmul.f32 %v1482, %v1473
    %v1487 = vmul.f32 %v1485, %v1473
    %v1488 = vadd.f32 %v1486, 1e-05
    %v1489 = vadd.f32 %v1487, 1e-05
    %v1490 = vrsqrt.pop %v1488
    %v1491 = vrsqrt.pop %v1489
    %v1492 = vmul.f32 %v1476, %v1490
    %v1493 = vmul.f32 %v1477, %v1491
    %v1494 = vlaneseq
    %v1495 = vshrl.u32 %v1494, 7
    %v1496 = vsub.s32 6, %v1495
    %v1497 = vrot.slane %v114, %v1496
    %v1498 = vmul.f32 %v1492, %v1497
    %v1499 = vmul.f32 %v1493, %v1497
    %v1500 = vlaneseq
    %v1501 = vshrl.u32 %v1500, 7
    %v1502 = vsub.s32 7, %v1501
    %v1503 = vrot.slane %v114, %v1502
    %v1504 = vadd.f32 %v1498, %v1503
    %v1505 = vadd.f32 %v1499, %v1503
    %v1506 = vadd.f32 %v1504, %v84
    %v1507 = vadd.f32 %v1505, %v85
    %v1508 = vlaneseq
    %v1509 = vshrl.u32 %v1508, 7
    %v1510 = vsub.s32 1, %v1509
    %v1511 = vrot.slane %v114, %v1510
    %v1513 = vsel %vm132, %v1506, 0
    %v1516 = vsel %vm132, %v1507, 0
    %1518 = vmatprep.subr.mxu0 0.0
    %1519 = vmatpush1.msra.mxu0 %v95
    %1520 = vmatprep.subr.mxu0 0.0
    %1521 = vmatpush1.msra.mxu0 %v98
    %1522 = vmatprep.subr.mxu0 0.0
    %1523 = vmatpush1.msra.mxu0 %v101
    %1524 = vmatprep.subr.mxu0 0.0
    %1525 = vmatpush1.msra.mxu0 %v104
    %1526 = vmatprep.subr.mxu0 0.0
    %1527 = vmatpush1.msra.mxu0 0.0
    %1528 = vmatprep.subr.mxu0 0.0
    %1529 = vmatpush1.msra.mxu0 0.0
    %1530 = vmatprep.subr.mxu0 0.0
    %1531 = vmatpush1.msra.mxu0 0.0
    %1532 = vmatprep.subr.mxu0 0.0
    %1533 = vmatpush1.msra.mxu0 0.0
    %1534 = vmatprep.subr.mxu0 0.0
    %1535 = vmatpush1.msra.mxu0 0.0
    %1536 = vmatprep.subr.mxu0 0.0
    %1537 = vmatpush1.msra.mxu0 0.0
    %1538 = vmatprep.subr.mxu0 0.0
    %1539 = vmatpush1.msra.mxu0 0.0
    %1540 = vmatprep.subr.mxu0 0.0
    %1541 = vmatpush1.msra.mxu0 0.0
    %1542 = vmatprep.subr.mxu0 0.0
    %1543 = vmatpush1.msra.mxu0 0.0
    %1544 = vmatprep.subr.mxu0 0.0
    %1545 = vmatpush1.msra.mxu0 0.0
    %1546 = vmatprep.subr.mxu0 0.0
    %1547 = vmatpush1.msra.mxu0 0.0
    %1548 = vmatprep.subr.mxu0 0.0
    %1549 = vmatpush1.msra.mxu0 0.0
    %1550 = vmatprep.subr.mxu0 0.0
    %1551 = vmatpush1.msra.mxu0 0.0
    %1552 = vmatprep.subr.mxu0 0.0
    %1553 = vmatpush1.msra.mxu0 0.0
    %1554 = vmatprep.subr.mxu0 0.0
    %1555 = vmatpush1.msra.mxu0 0.0
    %1556 = vmatprep.subr.mxu0 0.0
    %1557 = vmatpush1.msra.mxu0 0.0
    %1558 = vmatprep.subr.mxu0 0.0
    %1559 = vmatpush1.msra.mxu0 0.0
    %1560 = vmatprep.subr.mxu0 0.0
    %1561 = vmatpush1.msra.mxu0 0.0
    %1562 = vmatprep.subr.mxu0 0.0
    %1563 = vmatpush1.msra.mxu0 0.0
    %1564 = vmatprep.subr.mxu0 0.0
    %1565 = vmatpush1.msra.mxu0 0.0
    %1566 = vmatprep.subr.mxu0 0.0
    %1567 = vmatpush1.msra.mxu0 0.0
    %1568 = vmatprep.subr.mxu0 0.0
    %1569 = vmatpush1.msra.mxu0 0.0
    %1570 = vmatprep.subr.mxu0 0.0
    %1571 = vmatpush1.msra.mxu0 0.0
    %1572 = vmatprep.subr.mxu0 0.0
    %1573 = vmatpush1.msra.mxu0 0.0
    %1574 = vmatprep.subr.mxu0 0.0
    %1575 = vmatpush1.msra.mxu0 0.0
    %1576 = vmatprep.subr.mxu0 0.0
    %1577 = vmatpush1.msra.mxu0 0.0
    %1578 = vmatprep.subr.mxu0 0.0
    %1579 = vmatpush1.msra.mxu0 0.0
    %1580 = vmatprep.subr.mxu0 0.0
    %1581 = vmatpush1.msra.mxu0 0.0
    %1582 = vmatprep.mubr.f32.mxu0 0.0
    %1583 = vmatmul.mubr.f32.gmra.mrb[0].mxu0 %v1513
    %v1584 = vpop.f32.mrb[0].mxu0
    %v1585 = vadd.f32 %v1511, %v1584
    %v1586 = vpop.f32.mrb[0].mxu0
    %1587 = vmatprep.mubr.f32.mxu0 0.0
    %1588 = vmatmul.mubr.f32.gmra.mrb[0].mxu0 %v1516
    %v1589 = vpop.f32.mrb[0].mxu0
    %v1590 = vadd.f32 %v1511, %v1589
    %v1591 = vpop.f32.mrb[0].mxu0
    %1592 = vdwg.mxu0
    %v1593 = vadd.f32 %v86, %v90
    %v1594 = vadd.f32 %v87, %v91
    %v1595 = vadd.f32 %v88, %v92
    %v1596 = vadd.f32 %v89, %v93
    %1601 = vrot.lane.b32.xlu0 %v95, 96
    %v1602 = vpop.permute.xlu0 %1601
    %1603 = vrot.lane.b32.xlu0 %v98, 96
    %v1604 = vpop.permute.xlu0 %1603
    %1605 = vrot.lane.b32.xlu0 %v101, 96
    %v1606 = vpop.permute.xlu0 %1605
    %1607 = vrot.lane.b32.xlu0 %v104, 96
    %v1608 = vpop.permute.xlu0 %1607
    %1614 = vrot.lane.b32.xlu0 %v1511, 96
    %v1615 = vpop.permute.xlu0 %1614
    %v1618 = vsel %vm132, %v1593, 0
    %v1621 = vsel %vm132, %v1594, 0
    %v1624 = vsel %vm132, %v1595, 0
    %v1627 = vsel %vm132, %v1596, 0
    %1629 = vmatprep.subr.mxu0 0.0
    %1630 = vmatpush1.msra.mxu0 %v1602
    %1631 = vmatprep.subr.mxu0 0.0
    %1632 = vmatpush1.msra.mxu0 %v1604
    %1633 = vmatprep.subr.mxu0 0.0
    %1634 = vmatpush1.msra.mxu0 %v1606
    %1635 = vmatprep.subr.mxu0 0.0
    %1636 = vmatpush1.msra.mxu0 %v1608
    %1637 = vmatprep.subr.mxu0 0.0
    %1638 = vmatpush1.msra.mxu0 0.0
    %1639 = vmatprep.subr.mxu0 0.0
    %1640 = vmatpush1.msra.mxu0 0.0
    %1641 = vmatprep.subr.mxu0 0.0
    %1642 = vmatpush1.msra.mxu0 0.0
    %1643 = vmatprep.subr.mxu0 0.0
    %1644 = vmatpush1.msra.mxu0 0.0
    %1645 = vmatprep.subr.mxu0 0.0
    %1646 = vmatpush1.msra.mxu0 0.0
    %1647 = vmatprep.subr.mxu0 0.0
    %1648 = vmatpush1.msra.mxu0 0.0
    %1649 = vmatprep.subr.mxu0 0.0
    %1650 = vmatpush1.msra.mxu0 0.0
    %1651 = vmatprep.subr.mxu0 0.0
    %1652 = vmatpush1.msra.mxu0 0.0
    %1653 = vmatprep.subr.mxu0 0.0
    %1654 = vmatpush1.msra.mxu0 0.0
    %1655 = vmatprep.subr.mxu0 0.0
    %1656 = vmatpush1.msra.mxu0 0.0
    %1657 = vmatprep.subr.mxu0 0.0
    %1658 = vmatpush1.msra.mxu0 0.0
    %1659 = vmatprep.subr.mxu0 0.0
    %1660 = vmatpush1.msra.mxu0 0.0
    %1661 = vmatprep.subr.mxu0 0.0
    %1662 = vmatpush1.msra.mxu0 0.0
    %1663 = vmatprep.subr.mxu0 0.0
    %1664 = vmatpush1.msra.mxu0 0.0
    %1665 = vmatprep.subr.mxu0 0.0
    %1666 = vmatpush1.msra.mxu0 0.0
    %1667 = vmatprep.subr.mxu0 0.0
    %1668 = vmatpush1.msra.mxu0 0.0
    %1669 = vmatprep.subr.mxu0 0.0
    %1670 = vmatpush1.msra.mxu0 0.0
    %1671 = vmatprep.subr.mxu0 0.0
    %1672 = vmatpush1.msra.mxu0 0.0
    %1673 = vmatprep.subr.mxu0 0.0
    %1674 = vmatpush1.msra.mxu0 0.0
    %1675 = vmatprep.subr.mxu0 0.0
    %1676 = vmatpush1.msra.mxu0 0.0
    %1677 = vmatprep.subr.mxu0 0.0
    %1678 = vmatpush1.msra.mxu0 0.0
    %1679 = vmatprep.subr.mxu0 0.0
    %1680 = vmatpush1.msra.mxu0 0.0
    %1681 = vmatprep.subr.mxu0 0.0
    %1682 = vmatpush1.msra.mxu0 0.0
    %1683 = vmatprep.subr.mxu0 0.0
    %1684 = vmatpush1.msra.mxu0 0.0
    %1685 = vmatprep.subr.mxu0 0.0
    %1686 = vmatpush1.msra.mxu0 0.0
    %1687 = vmatprep.subr.mxu0 0.0
    %1688 = vmatpush1.msra.mxu0 0.0
    %1689 = vmatprep.subr.mxu0 0.0
    %1690 = vmatpush1.msra.mxu0 0.0
    %1691 = vmatprep.subr.mxu0 0.0
    %1692 = vmatpush1.msra.mxu0 0.0
    %1693 = vmatprep.mubr.f32.mxu0 0.0
    %1694 = vmatmul.mubr.f32.gmra.mrb[0].mxu0 %v1618
    %v1695 = vpop.f32.mrb[0].mxu0
    %v1696 = vadd.f32 %v1615, %v1695
    %v1697 = vpop.f32.mrb[0].mxu0
    %1698 = vmatprep.mubr.f32.mxu0 0.0
    %1699 = vmatmul.mubr.f32.gmra.mrb[0].mxu0 %v1621
    %v1700 = vpop.f32.mrb[0].mxu0
    %v1701 = vadd.f32 %v1615, %v1700
    %v1702 = vpop.f32.mrb[0].mxu0
    %1703 = vmatprep.mubr.f32.mxu0 0.0
    %1704 = vmatmul.mubr.f32.gmra.mrb[0].mxu0 %v1624
    %v1705 = vpop.f32.mrb[0].mxu0
    %v1706 = vadd.f32 %v1615, %v1705
    %v1707 = vpop.f32.mrb[0].mxu0
    %1708 = vmatprep.mubr.f32.mxu0 0.0
    %1709 = vmatmul.mubr.f32.gmra.mrb[0].mxu0 %v1627
    %v1710 = vpop.f32.mrb[0].mxu0
    %v1711 = vadd.f32 %v1615, %v1710
    %v1712 = vpop.f32.mrb[0].mxu0
    %1713 = vdwg.mxu0
    %1714 = vrot.lane.b32.xlu0 %v95, 64
    %v1715 = vpop.permute.xlu0 %1714
    %1716 = vrot.lane.b32.xlu0 %v98, 64
    %v1717 = vpop.permute.xlu0 %1716
    %1718 = vrot.lane.b32.xlu0 %v101, 64
    %v1719 = vpop.permute.xlu0 %1718
    %1720 = vrot.lane.b32.xlu0 %v104, 64
    %v1721 = vpop.permute.xlu0 %1720
    %1726 = vrot.lane.b32.xlu0 %v1511, 64
    %v1727 = vpop.permute.xlu0 %1726
    %v1730 = vsel %vm132, %v86, 0
    %v1733 = vsel %vm132, %v87, 0
    %v1736 = vsel %vm132, %v88, 0
    %v1739 = vsel %vm132, %v89, 0
    %1741 = vmatprep.subr.mxu0 0.0
    %1742 = vmatpush1.msra.mxu0 %v1715
    %1743 = vmatprep.subr.mxu0 0.0
    %1744 = vmatpush1.msra.mxu0 %v1717
    %1745 = vmatprep.subr.mxu0 0.0
    %1746 = vmatpush1.msra.mxu0 %v1719
    %1747 = vmatprep.subr.mxu0 0.0
    %1748 = vmatpush1.msra.mxu0 %v1721
    %1749 = vmatprep.subr.mxu0 0.0
    %1750 = vmatpush1.msra.mxu0 0.0
    %1751 = vmatprep.subr.mxu0 0.0
    %1752 = vmatpush1.msra.mxu0 0.0
    %1753 = vmatprep.subr.mxu0 0.0
    %1754 = vmatpush1.msra.mxu0 0.0
    %1755 = vmatprep.subr.mxu0 0.0
    %1756 = vmatpush1.msra.mxu0 0.0
    %1757 = vmatprep.subr.mxu0 0.0
    %1758 = vmatpush1.msra.mxu0 0.0
    %1759 = vmatprep.subr.mxu0 0.0
    %1760 = vmatpush1.msra.mxu0 0.0
    %1761 = vmatprep.subr.mxu0 0.0
    %1762 = vmatpush1.msra.mxu0 0.0
    %1763 = vmatprep.subr.mxu0 0.0
    %1764 = vmatpush1.msra.mxu0 0.0
    %1765 = vmatprep.subr.mxu0 0.0
    %1766 = vmatpush1.msra.mxu0 0.0
    %1767 = vmatprep.subr.mxu0 0.0
    %1768 = vmatpush1.msra.mxu0 0.0
    %1769 = vmatprep.subr.mxu0 0.0
    %1770 = vmatpush1.msra.mxu0 0.0
    %1771 = vmatprep.subr.mxu0 0.0
    %1772 = vmatpush1.msra.mxu0 0.0
    %1773 = vmatprep.subr.mxu0 0.0
    %1774 = vmatpush1.msra.mxu0 0.0
    %1775 = vmatprep.subr.mxu0 0.0
    %1776 = vmatpush1.msra.mxu0 0.0
    %1777 = vmatprep.subr.mxu0 0.0
    %1778 = vmatpush1.msra.mxu0 0.0
    %1779 = vmatprep.subr.mxu0 0.0
    %1780 = vmatpush1.msra.mxu0 0.0
    %1781 = vmatprep.subr.mxu0 0.0
    %1782 = vmatpush1.msra.mxu0 0.0
    %1783 = vmatprep.subr.mxu0 0.0
    %1784 = vmatpush1.msra.mxu0 0.0
    %1785 = vmatprep.subr.mxu0 0.0
    %1786 = vmatpush1.msra.mxu0 0.0
    %1787 = vmatprep.subr.mxu0 0.0
    %1788 = vmatpush1.msra.mxu0 0.0
    %1789 = vmatprep.subr.mxu0 0.0
    %1790 = vmatpush1.msra.mxu0 0.0
    %1791 = vmatprep.subr.mxu0 0.0
    %1792 = vmatpush1.msra.mxu0 0.0
    %1793 = vmatprep.subr.mxu0 0.0
    %1794 = vmatpush1.msra.mxu0 0.0
    %1795 = vmatprep.subr.mxu0 0.0
    %1796 = vmatpush1.msra.mxu0 0.0
    %1797 = vmatprep.subr.mxu0 0.0
    %1798 = vmatpush1.msra.mxu0 0.0
    %1799 = vmatprep.subr.mxu0 0.0
    %1800 = vmatpush1.msra.mxu0 0.0
    %1801 = vmatprep.subr.mxu0 0.0
    %1802 = vmatpush1.msra.mxu0 0.0
    %1803 = vmatprep.subr.mxu0 0.0
    %1804 = vmatpush1.msra.mxu0 0.0
    %1805 = vmatprep.mubr.f32.mxu0 0.0
    %1806 = vmatmul.mubr.f32.gmra.mrb[0].mxu0 %v1730
    %v1807 = vpop.f32.mrb[0].mxu0
    %v1808 = vadd.f32 %v1727, %v1807
    %v1809 = vpop.f32.mrb[0].mxu0
    %1810 = vmatprep.mubr.f32.mxu0 0.0
    %1811 = vmatmul.mubr.f32.gmra.mrb[0].mxu0 %v1733
    %v1812 = vpop.f32.mrb[0].mxu0
    %v1813 = vadd.f32 %v1727, %v1812
    %v1814 = vpop.f32.mrb[0].mxu0
    %1815 = vmatprep.mubr.f32.mxu0 0.0
    %1816 = vmatmul.mubr.f32.gmra.mrb[0].mxu0 %v1736
    %v1817 = vpop.f32.mrb[0].mxu0
    %v1818 = vadd.f32 %v1727, %v1817
    %v1819 = vpop.f32.mrb[0].mxu0
    %1820 = vmatprep.mubr.f32.mxu0 0.0
    %1821 = vmatmul.mubr.f32.gmra.mrb[0].mxu0 %v1739
    %v1822 = vpop.f32.mrb[0].mxu0
    %v1823 = vadd.f32 %v1727, %v1822
    %v1824 = vpop.f32.mrb[0].mxu0
    %1825 = vdwg.mxu0
    %v1827 = vsel %vm321, %v1585, 0
    %v1830 = vsel %vm321, %v1590, 0
    %v1833 = vsel %vm321, %v1696, 0
    %v1836 = vsel %vm321, %v1701, 0
    %v1839 = vsel %vm321, %v1706, 0
    %v1842 = vsel %vm321, %v1711, 0
    %1844 = vmatprep.subr.mxu0 0.0
    %1845 = vmatpush1.xpose.msra.mxu0 %v1833
    %1846 = vmatprep.subr.mxu0 0.0
    %1847 = vmatpush1.xpose.msra.mxu0 %v1836
    %1848 = vmatprep.subr.mxu0 0.0
    %1849 = vmatpush1.xpose.msra.mxu0 %v1839
    %1850 = vmatprep.subr.mxu0 0.0
    %1851 = vmatpush1.xpose.msra.mxu0 %v1842
    %1852 = vmatprep.subr.mxu0 0.0
    %1853 = vmatpush1.xpose.msra.mxu0 0.0
    %1854 = vmatprep.subr.mxu0 0.0
    %1855 = vmatpush1.xpose.msra.mxu0 0.0
    %1856 = vmatprep.subr.mxu0 0.0
    %1857 = vmatpush1.xpose.msra.mxu0 0.0
    %1858 = vmatprep.subr.mxu0 0.0
    %1859 = vmatpush1.xpose.msra.mxu0 0.0
    %1860 = vmatprep.subr.mxu0 0.0
    %1861 = vmatpush1.xpose.msra.mxu0 0.0
    %1862 = vmatprep.subr.mxu0 0.0
    %1863 = vmatpush1.xpose.msra.mxu0 0.0
    %1864 = vmatprep.subr.mxu0 0.0
    %1865 = vmatpush1.xpose.msra.mxu0 0.0
    %1866 = vmatprep.subr.mxu0 0.0
    %1867 = vmatpush1.xpose.msra.mxu0 0.0
    %1868 = vmatprep.subr.mxu0 0.0
    %1869 = vmatpush1.xpose.msra.mxu0 0.0
    %1870 = vmatprep.subr.mxu0 0.0
    %1871 = vmatpush1.xpose.msra.mxu0 0.0
    %1872 = vmatprep.subr.mxu0 0.0
    %1873 = vmatpush1.xpose.msra.mxu0 0.0
    %1874 = vmatprep.subr.mxu0 0.0
    %1875 = vmatpush1.xpose.msra.mxu0 0.0
    %1876 = vmatprep.subr.mxu0 0.0
    %1877 = vmatpush1.xpose.msra.mxu0 0.0
    %1878 = vmatprep.subr.mxu0 0.0
    %1879 = vmatpush1.xpose.msra.mxu0 0.0
    %1880 = vmatprep.subr.mxu0 0.0
    %1881 = vmatpush1.xpose.msra.mxu0 0.0
    %1882 = vmatprep.subr.mxu0 0.0
    %1883 = vmatpush1.xpose.msra.mxu0 0.0
    %1884 = vmatprep.subr.mxu0 0.0
    %1885 = vmatpush1.xpose.msra.mxu0 0.0
    %1886 = vmatprep.subr.mxu0 0.0
    %1887 = vmatpush1.xpose.msra.mxu0 0.0
    %1888 = vmatprep.subr.mxu0 0.0
    %1889 = vmatpush1.xpose.msra.mxu0 0.0
    %1890 = vmatprep.subr.mxu0 0.0
    %1891 = vmatpush1.xpose.msra.mxu0 0.0
    %1892 = vmatprep.subr.mxu0 0.0
    %1893 = vmatpush1.xpose.msra.mxu0 0.0
    %1894 = vmatprep.subr.mxu0 0.0
    %1895 = vmatpush1.xpose.msra.mxu0 0.0
    %1896 = vmatprep.subr.mxu0 0.0
    %1897 = vmatpush1.xpose.msra.mxu0 0.0
    %1898 = vmatprep.subr.mxu0 0.0
    %1899 = vmatpush1.xpose.msra.mxu0 0.0
    %1900 = vmatprep.subr.mxu0 0.0
    %1901 = vmatpush1.xpose.msra.mxu0 0.0
    %1902 = vmatprep.subr.mxu0 0.0
    %1903 = vmatpush1.xpose.msra.mxu0 0.0
    %1904 = vmatprep.subr.mxu0 0.0
    %1905 = vmatpush1.xpose.msra.mxu0 0.0
    %1906 = vmatprep.subr.mxu0 0.0
    %1907 = vmatpush1.xpose.msra.mxu0 0.0
    %1908 = vmatprep.mubr.f32.mxu0 0.0
    %1909 = vmatmul.mubr.f32.gmra.mrb[0].mxu0 %v1827
    %v1910 = vpop.f32.mrb[0].mxu0
    %v1911 = vadd.f32 0.0, %v1910
    %v1912 = vpop.f32.mrb[0].mxu0
    %1913 = vmatprep.mubr.f32.mxu0 0.0
    %1914 = vmatmul.mubr.f32.gmra.mrb[0].mxu0 %v1830
    %v1915 = vpop.f32.mrb[0].mxu0
    %v1916 = vadd.f32 0.0, %v1915
    %v1917 = vpop.f32.mrb[0].mxu0
    %1918 = vdwg.mxu0
    %v1919 = vsel %vm124, %v1911, -1e+30
    %v1920 = vsel %vm125, %v1916, -1e+30
    %v1921 = vsel %vm132, %v1919, -inf
    %1922 = vmax.xlane.f32.xlu0 %v1921
    %v1923 = vpop.xlane.xlu0 %1922
    %v1924 = vsel %vm132, %v1920, -inf
    %1925 = vmax.xlane.f32.xlu0 %v1924
    %v1926 = vpop.xlane.xlu0 %1925
    %v1927 = vsub.f32 %v1919, %v1923
    %v1928 = vsub.f32 %v1920, %v1926
    %v1929 = vmul.f32 %v1927, 1.442695
    %v1930 = vpow.pop %v1929
    %v1931 = vmul.f32 %v1928, 1.442695
    %v1932 = vpow.pop %v1931
    %v1933 = vsel %vm132, %v1930, 0.0
    %1934 = vadd.xlane.f32.xlu0 %v1933
    %v1935 = vpop.xlane.xlu0 %1934
    %v1936 = vsel %vm132, %v1932, 0.0
    %1937 = vadd.xlane.f32.xlu0 %v1936
    %v1938 = vpop.xlane.xlu0 %1937
    %v1939 = vrcp.pop %v1935
    %v1940 = vrcp.pop %v1938
    %v1941 = vmul.f32 %v1930, %v1939
    %v1942 = vmul.f32 %v1932, %v1940
    %v1944 = vsel %vm132, %v1941, 0
    %v1947 = vsel %vm132, %v1942, 0
    %1949 = vmatprep.subr.mxu0 0.0
    %1950 = vmatpush1.msra.mxu0 %v1808
    %1951 = vmatprep.subr.mxu0 0.0
    %1952 = vmatpush1.msra.mxu0 %v1813
    %1953 = vmatprep.subr.mxu0 0.0
    %1954 = vmatpush1.msra.mxu0 %v1818
    %1955 = vmatprep.subr.mxu0 0.0
    %1956 = vmatpush1.msra.mxu0 %v1823
    %1957 = vmatprep.subr.mxu0 0.0
    %1958 = vmatpush1.msra.mxu0 0.0
    %1959 = vmatprep.subr.mxu0 0.0
    %1960 = vmatpush1.msra.mxu0 0.0
    %1961 = vmatprep.subr.mxu0 0.0
    %1962 = vmatpush1.msra.mxu0 0.0
    %1963 = vmatprep.subr.mxu0 0.0
    %1964 = vmatpush1.msra.mxu0 0.0
    %1965 = vmatprep.subr.mxu0 0.0
    %1966 = vmatpush1.msra.mxu0 0.0
    %1967 = vmatprep.subr.mxu0 0.0
    %1968 = vmatpush1.msra.mxu0 0.0
    %1969 = vmatprep.subr.mxu0 0.0
    %1970 = vmatpush1.msra.mxu0 0.0
    %1971 = vmatprep.subr.mxu0 0.0
    %1972 = vmatpush1.msra.mxu0 0.0
    %1973 = vmatprep.subr.mxu0 0.0
    %1974 = vmatpush1.msra.mxu0 0.0
    %1975 = vmatprep.subr.mxu0 0.0
    %1976 = vmatpush1.msra.mxu0 0.0
    %1977 = vmatprep.subr.mxu0 0.0
    %1978 = vmatpush1.msra.mxu0 0.0
    %1979 = vmatprep.subr.mxu0 0.0
    %1980 = vmatpush1.msra.mxu0 0.0
    %1981 = vmatprep.subr.mxu0 0.0
    %1982 = vmatpush1.msra.mxu0 0.0
    %1983 = vmatprep.subr.mxu0 0.0
    %1984 = vmatpush1.msra.mxu0 0.0
    %1985 = vmatprep.subr.mxu0 0.0
    %1986 = vmatpush1.msra.mxu0 0.0
    %1987 = vmatprep.subr.mxu0 0.0
    %1988 = vmatpush1.msra.mxu0 0.0
    %1989 = vmatprep.subr.mxu0 0.0
    %1990 = vmatpush1.msra.mxu0 0.0
    %1991 = vmatprep.subr.mxu0 0.0
    %1992 = vmatpush1.msra.mxu0 0.0
    %1993 = vmatprep.subr.mxu0 0.0
    %1994 = vmatpush1.msra.mxu0 0.0
    %1995 = vmatprep.subr.mxu0 0.0
    %1996 = vmatpush1.msra.mxu0 0.0
    %1997 = vmatprep.subr.mxu0 0.0
    %1998 = vmatpush1.msra.mxu0 0.0
    %1999 = vmatprep.subr.mxu0 0.0
    %2000 = vmatpush1.msra.mxu0 0.0
    %2001 = vmatprep.subr.mxu0 0.0
    %2002 = vmatpush1.msra.mxu0 0.0
    %2003 = vmatprep.subr.mxu0 0.0
    %2004 = vmatpush1.msra.mxu0 0.0
    %2005 = vmatprep.subr.mxu0 0.0
    %2006 = vmatpush1.msra.mxu0 0.0
    %2007 = vmatprep.subr.mxu0 0.0
    %2008 = vmatpush1.msra.mxu0 0.0
    %2009 = vmatprep.subr.mxu0 0.0
    %2010 = vmatpush1.msra.mxu0 0.0
    %2011 = vmatprep.subr.mxu0 0.0
    %2012 = vmatpush1.msra.mxu0 0.0
    %2013 = vmatprep.mubr.f32.mxu0 0.0
    %2014 = vmatmul.mubr.f32.gmra.mrb[0].mxu0 %v1944
    %v2015 = vpop.f32.mrb[0].mxu0
    %v2016 = vadd.f32 0.0, %v2015
    %v2017 = vpop.f32.mrb[0].mxu0
    %2018 = vmatprep.mubr.f32.mxu0 0.0
    %2019 = vmatmul.mubr.f32.gmra.mrb[0].mxu0 %v1947
    %v2020 = vpop.f32.mrb[0].mxu0
    %v2021 = vadd.f32 0.0, %v2020
    %v2022 = vpop.f32.mrb[0].mxu0
    %2023 = vdwg.mxu0
    %2024 = vrot.lane.b32.xlu0 %v1585, 120
    %v2025 = vpop.permute.xlu0 %2024
    %2026 = vrot.lane.b32.xlu0 %v1590, 120
    %v2027 = vpop.permute.xlu0 %2026
    %2028 = vrot.lane.b32.xlu0 %v1696, 120
    %v2029 = vpop.permute.xlu0 %2028
    %2030 = vrot.lane.b32.xlu0 %v1701, 120
    %v2031 = vpop.permute.xlu0 %2030
    %2032 = vrot.lane.b32.xlu0 %v1706, 120
    %v2033 = vpop.permute.xlu0 %2032
    %2034 = vrot.lane.b32.xlu0 %v1711, 120
    %v2035 = vpop.permute.xlu0 %2034
    %v2036 = vsel %vm321, %v2025, 0
    %v2038 = vsel %vm321, %v2027, 0
    %v2040 = vsel %vm321, %v2029, 0
    %v2042 = vsel %vm321, %v2031, 0
    %v2044 = vsel %vm321, %v2033, 0
    %v2046 = vsel %vm321, %v2035, 0
    %2048 = vmatprep.subr.mxu0 0.0
    %2049 = vmatpush1.xpose.msra.mxu0 %v2040
    %2050 = vmatprep.subr.mxu0 0.0
    %2051 = vmatpush1.xpose.msra.mxu0 %v2042
    %2052 = vmatprep.subr.mxu0 0.0
    %2053 = vmatpush1.xpose.msra.mxu0 %v2044
    %2054 = vmatprep.subr.mxu0 0.0
    %2055 = vmatpush1.xpose.msra.mxu0 %v2046
    %2056 = vmatprep.subr.mxu0 0.0
    %2057 = vmatpush1.xpose.msra.mxu0 0.0
    %2058 = vmatprep.subr.mxu0 0.0
    %2059 = vmatpush1.xpose.msra.mxu0 0.0
    %2060 = vmatprep.subr.mxu0 0.0
    %2061 = vmatpush1.xpose.msra.mxu0 0.0
    %2062 = vmatprep.subr.mxu0 0.0
    %2063 = vmatpush1.xpose.msra.mxu0 0.0
    %2064 = vmatprep.subr.mxu0 0.0
    %2065 = vmatpush1.xpose.msra.mxu0 0.0
    %2066 = vmatprep.subr.mxu0 0.0
    %2067 = vmatpush1.xpose.msra.mxu0 0.0
    %2068 = vmatprep.subr.mxu0 0.0
    %2069 = vmatpush1.xpose.msra.mxu0 0.0
    %2070 = vmatprep.subr.mxu0 0.0
    %2071 = vmatpush1.xpose.msra.mxu0 0.0
    %2072 = vmatprep.subr.mxu0 0.0
    %2073 = vmatpush1.xpose.msra.mxu0 0.0
    %2074 = vmatprep.subr.mxu0 0.0
    %2075 = vmatpush1.xpose.msra.mxu0 0.0
    %2076 = vmatprep.subr.mxu0 0.0
    %2077 = vmatpush1.xpose.msra.mxu0 0.0
    %2078 = vmatprep.subr.mxu0 0.0
    %2079 = vmatpush1.xpose.msra.mxu0 0.0
    %2080 = vmatprep.subr.mxu0 0.0
    %2081 = vmatpush1.xpose.msra.mxu0 0.0
    %2082 = vmatprep.subr.mxu0 0.0
    %2083 = vmatpush1.xpose.msra.mxu0 0.0
    %2084 = vmatprep.subr.mxu0 0.0
    %2085 = vmatpush1.xpose.msra.mxu0 0.0
    %2086 = vmatprep.subr.mxu0 0.0
    %2087 = vmatpush1.xpose.msra.mxu0 0.0
    %2088 = vmatprep.subr.mxu0 0.0
    %2089 = vmatpush1.xpose.msra.mxu0 0.0
    %2090 = vmatprep.subr.mxu0 0.0
    %2091 = vmatpush1.xpose.msra.mxu0 0.0
    %2092 = vmatprep.subr.mxu0 0.0
    %2093 = vmatpush1.xpose.msra.mxu0 0.0
    %2094 = vmatprep.subr.mxu0 0.0
    %2095 = vmatpush1.xpose.msra.mxu0 0.0
    %2096 = vmatprep.subr.mxu0 0.0
    %2097 = vmatpush1.xpose.msra.mxu0 0.0
    %2098 = vmatprep.subr.mxu0 0.0
    %2099 = vmatpush1.xpose.msra.mxu0 0.0
    %2100 = vmatprep.subr.mxu0 0.0
    %2101 = vmatpush1.xpose.msra.mxu0 0.0
    %2102 = vmatprep.subr.mxu0 0.0
    %2103 = vmatpush1.xpose.msra.mxu0 0.0
    %2104 = vmatprep.subr.mxu0 0.0
    %2105 = vmatpush1.xpose.msra.mxu0 0.0
    %2106 = vmatprep.subr.mxu0 0.0
    %2107 = vmatpush1.xpose.msra.mxu0 0.0
    %2108 = vmatprep.subr.mxu0 0.0
    %2109 = vmatpush1.xpose.msra.mxu0 0.0
    %2110 = vmatprep.subr.mxu0 0.0
    %2111 = vmatpush1.xpose.msra.mxu0 0.0
    %2112 = vmatprep.mubr.f32.mxu0 0.0
    %2113 = vmatmul.mubr.f32.gmra.mrb[0].mxu0 %v2036
    %v2114 = vpop.f32.mrb[0].mxu0
    %v2115 = vadd.f32 0.0, %v2114
    %v2116 = vpop.f32.mrb[0].mxu0
    %2117 = vmatprep.mubr.f32.mxu0 0.0
    %2118 = vmatmul.mubr.f32.gmra.mrb[0].mxu0 %v2038
    %v2119 = vpop.f32.mrb[0].mxu0
    %v2120 = vadd.f32 0.0, %v2119
    %v2121 = vpop.f32.mrb[0].mxu0
    %2122 = vdwg.mxu0
    %v2123 = vsel %vm124, %v2115, -1e+30
    %v2124 = vsel %vm125, %v2120, -1e+30
    %v2125 = vsel %vm132, %v2123, -inf
    %2126 = vmax.xlane.f32.xlu0 %v2125
    %v2127 = vpop.xlane.xlu0 %2126
    %v2128 = vsel %vm132, %v2124, -inf
    %2129 = vmax.xlane.f32.xlu0 %v2128
    %v2130 = vpop.xlane.xlu0 %2129
    %v2131 = vsub.f32 %v2123, %v2127
    %v2132 = vsub.f32 %v2124, %v2130
    %v2133 = vmul.f32 %v2131, 1.442695
    %v2134 = vpow.pop %v2133
    %v2135 = vmul.f32 %v2132, 1.442695
    %v2136 = vpow.pop %v2135
    %v2137 = vsel %vm132, %v2134, 0.0
    %2138 = vadd.xlane.f32.xlu0 %v2137
    %v2139 = vpop.xlane.xlu0 %2138
    %v2140 = vsel %vm132, %v2136, 0.0
    %2141 = vadd.xlane.f32.xlu0 %v2140
    %v2142 = vpop.xlane.xlu0 %2141
    %v2143 = vrcp.pop %v2139
    %v2144 = vrcp.pop %v2142
    %v2145 = vmul.f32 %v2134, %v2143
    %v2146 = vmul.f32 %v2136, %v2144
    %2151 = vrot.lane.b32.xlu0 %v1808, 120
    %v2152 = vpop.permute.xlu0 %2151
    %2153 = vrot.lane.b32.xlu0 %v1813, 120
    %v2154 = vpop.permute.xlu0 %2153
    %2155 = vrot.lane.b32.xlu0 %v1818, 120
    %v2156 = vpop.permute.xlu0 %2155
    %2157 = vrot.lane.b32.xlu0 %v1823, 120
    %v2158 = vpop.permute.xlu0 %2157
    %v2164 = vsel %vm132, %v2145, 0
    %v2167 = vsel %vm132, %v2146, 0
    %2169 = vmatprep.subr.mxu0 0.0
    %2170 = vmatpush1.msra.mxu0 %v2152
    %2171 = vmatprep.subr.mxu0 0.0
    %2172 = vmatpush1.msra.mxu0 %v2154
    %2173 = vmatprep.subr.mxu0 0.0
    %2174 = vmatpush1.msra.mxu0 %v2156
    %2175 = vmatprep.subr.mxu0 0.0
    %2176 = vmatpush1.msra.mxu0 %v2158
    %2177 = vmatprep.subr.mxu0 0.0
    %2178 = vmatpush1.msra.mxu0 0.0
    %2179 = vmatprep.subr.mxu0 0.0
    %2180 = vmatpush1.msra.mxu0 0.0
    %2181 = vmatprep.subr.mxu0 0.0
    %2182 = vmatpush1.msra.mxu0 0.0
    %2183 = vmatprep.subr.mxu0 0.0
    %2184 = vmatpush1.msra.mxu0 0.0
    %2185 = vmatprep.subr.mxu0 0.0
    %2186 = vmatpush1.msra.mxu0 0.0
    %2187 = vmatprep.subr.mxu0 0.0
    %2188 = vmatpush1.msra.mxu0 0.0
    %2189 = vmatprep.subr.mxu0 0.0
    %2190 = vmatpush1.msra.mxu0 0.0
    %2191 = vmatprep.subr.mxu0 0.0
    %2192 = vmatpush1.msra.mxu0 0.0
    %2193 = vmatprep.subr.mxu0 0.0
    %2194 = vmatpush1.msra.mxu0 0.0
    %2195 = vmatprep.subr.mxu0 0.0
    %2196 = vmatpush1.msra.mxu0 0.0
    %2197 = vmatprep.subr.mxu0 0.0
    %2198 = vmatpush1.msra.mxu0 0.0
    %2199 = vmatprep.subr.mxu0 0.0
    %2200 = vmatpush1.msra.mxu0 0.0
    %2201 = vmatprep.subr.mxu0 0.0
    %2202 = vmatpush1.msra.mxu0 0.0
    %2203 = vmatprep.subr.mxu0 0.0
    %2204 = vmatpush1.msra.mxu0 0.0
    %2205 = vmatprep.subr.mxu0 0.0
    %2206 = vmatpush1.msra.mxu0 0.0
    %2207 = vmatprep.subr.mxu0 0.0
    %2208 = vmatpush1.msra.mxu0 0.0
    %2209 = vmatprep.subr.mxu0 0.0
    %2210 = vmatpush1.msra.mxu0 0.0
    %2211 = vmatprep.subr.mxu0 0.0
    %2212 = vmatpush1.msra.mxu0 0.0
    %2213 = vmatprep.subr.mxu0 0.0
    %2214 = vmatpush1.msra.mxu0 0.0
    %2215 = vmatprep.subr.mxu0 0.0
    %2216 = vmatpush1.msra.mxu0 0.0
    %2217 = vmatprep.subr.mxu0 0.0
    %2218 = vmatpush1.msra.mxu0 0.0
    %2219 = vmatprep.subr.mxu0 0.0
    %2220 = vmatpush1.msra.mxu0 0.0
    %2221 = vmatprep.subr.mxu0 0.0
    %2222 = vmatpush1.msra.mxu0 0.0
    %2223 = vmatprep.subr.mxu0 0.0
    %2224 = vmatpush1.msra.mxu0 0.0
    %2225 = vmatprep.subr.mxu0 0.0
    %2226 = vmatpush1.msra.mxu0 0.0
    %2227 = vmatprep.subr.mxu0 0.0
    %2228 = vmatpush1.msra.mxu0 0.0
    %2229 = vmatprep.subr.mxu0 0.0
    %2230 = vmatpush1.msra.mxu0 0.0
    %2231 = vmatprep.subr.mxu0 0.0
    %2232 = vmatpush1.msra.mxu0 0.0
    %2233 = vmatprep.mubr.f32.mxu0 0.0
    %2234 = vmatmul.mubr.f32.gmra.mrb[0].mxu0 %v2164
    %v2235 = vpop.f32.mrb[0].mxu0
    %v2236 = vadd.f32 0.0, %v2235
    %v2237 = vpop.f32.mrb[0].mxu0
    %2238 = vmatprep.mubr.f32.mxu0 0.0
    %2239 = vmatmul.mubr.f32.gmra.mrb[0].mxu0 %v2167
    %v2240 = vpop.f32.mrb[0].mxu0
    %v2241 = vadd.f32 0.0, %v2240
    %v2242 = vpop.f32.mrb[0].mxu0
    %2243 = vdwg.mxu0
    %2244 = vrot.lane.b32.xlu0 %v98, 32
    %v2245 = vpop.permute.xlu0 %2244
    %v2248 = vsel %vm321, %v2236, 0
    %v2251 = vsel %vm321, %v2241, 0
    %2253 = vmatprep.subr.mxu0 0.0
    %2254 = vmatpush1.msra.mxu0 %v2245
    %2255 = vmatprep.subr.mxu0 0.0
    %2256 = vmatpush1.msra.mxu0 0.0
    %2257 = vmatprep.subr.mxu0 0.0
    %2258 = vmatpush1.msra.mxu0 0.0
    %2259 = vmatprep.subr.mxu0 0.0
    %2260 = vmatpush1.msra.mxu0 0.0
    %2261 = vmatprep.subr.mxu0 0.0
    %2262 = vmatpush1.msra.mxu0 0.0
    %2263 = vmatprep.subr.mxu0 0.0
    %2264 = vmatpush1.msra.mxu0 0.0
    %2265 = vmatprep.subr.mxu0 0.0
    %2266 = vmatpush1.msra.mxu0 0.0
    %2267 = vmatprep.subr.mxu0 0.0
    %2268 = vmatpush1.msra.mxu0 0.0
    %2269 = vmatprep.subr.mxu0 0.0
    %2270 = vmatpush1.msra.mxu0 0.0
    %2271 = vmatprep.subr.mxu0 0.0
    %2272 = vmatpush1.msra.mxu0 0.0
    %2273 = vmatprep.subr.mxu0 0.0
    %2274 = vmatpush1.msra.mxu0 0.0
    %2275 = vmatprep.subr.mxu0 0.0
    %2276 = vmatpush1.msra.mxu0 0.0
    %2277 = vmatprep.subr.mxu0 0.0
    %2278 = vmatpush1.msra.mxu0 0.0
    %2279 = vmatprep.subr.mxu0 0.0
    %2280 = vmatpush1.msra.mxu0 0.0
    %2281 = vmatprep.subr.mxu0 0.0
    %2282 = vmatpush1.msra.mxu0 0.0
    %2283 = vmatprep.subr.mxu0 0.0
    %2284 = vmatpush1.msra.mxu0 0.0
    %2285 = vmatprep.subr.mxu0 0.0
    %2286 = vmatpush1.msra.mxu0 0.0
    %2287 = vmatprep.subr.mxu0 0.0
    %2288 = vmatpush1.msra.mxu0 0.0
    %2289 = vmatprep.subr.mxu0 0.0
    %2290 = vmatpush1.msra.mxu0 0.0
    %2291 = vmatprep.subr.mxu0 0.0
    %2292 = vmatpush1.msra.mxu0 0.0
    %2293 = vmatprep.subr.mxu0 0.0
    %2294 = vmatpush1.msra.mxu0 0.0
    %2295 = vmatprep.subr.mxu0 0.0
    %2296 = vmatpush1.msra.mxu0 0.0
    %2297 = vmatprep.subr.mxu0 0.0
    %2298 = vmatpush1.msra.mxu0 0.0
    %2299 = vmatprep.subr.mxu0 0.0
    %2300 = vmatpush1.msra.mxu0 0.0
    %2301 = vmatprep.subr.mxu0 0.0
    %2302 = vmatpush1.msra.mxu0 0.0
    %2303 = vmatprep.subr.mxu0 0.0
    %2304 = vmatpush1.msra.mxu0 0.0
    %2305 = vmatprep.subr.mxu0 0.0
    %2306 = vmatpush1.msra.mxu0 0.0
    %2307 = vmatprep.subr.mxu0 0.0
    %2308 = vmatpush1.msra.mxu0 0.0
    %2309 = vmatprep.subr.mxu0 0.0
    %2310 = vmatpush1.msra.mxu0 0.0
    %2311 = vmatprep.subr.mxu0 0.0
    %2312 = vmatpush1.msra.mxu0 0.0
    %2313 = vmatprep.subr.mxu0 0.0
    %2314 = vmatpush1.msra.mxu0 0.0
    %2315 = vmatprep.subr.mxu0 0.0
    %2316 = vmatpush1.msra.mxu0 0.0
    %2317 = vmatprep.mubr.f32.mxu0 0.0
    %2318 = vmatmul.mubr.f32.gmra.mrb[0].mxu0 %v2248
    %v2319 = vpop.f32.mrb[0].mxu0
    %v2320 = vadd.f32 0.0, %v2319
    %v2321 = vpop.f32.mrb[0].mxu0
    %2322 = vmatprep.mubr.f32.mxu0 0.0
    %2323 = vmatmul.mubr.f32.gmra.mrb[0].mxu0 %v2251
    %v2324 = vpop.f32.mrb[0].mxu0
    %v2325 = vadd.f32 0.0, %v2324
    %v2326 = vpop.f32.mrb[0].mxu0
    %2327 = vdwg.mxu0
    %2328 = vrot.lane.b32.xlu0 %v95, 32
    %v2329 = vpop.permute.xlu0 %2328
    %v2332 = vsel %vm321, %v2016, 0
    %v2335 = vsel %vm321, %v2021, 0
    %2337 = vmatprep.subr.mxu0 0.0
    %2338 = vmatpush1.msra.mxu0 %v2329
    %2339 = vmatprep.subr.mxu0 0.0
    %2340 = vmatpush1.msra.mxu0 0.0
    %2341 = vmatprep.subr.mxu0 0.0
    %2342 = vmatpush1.msra.mxu0 0.0
    %2343 = vmatprep.subr.mxu0 0.0
    %2344 = vmatpush1.msra.mxu0 0.0
    %2345 = vmatprep.subr.mxu0 0.0
    %2346 = vmatpush1.msra.mxu0 0.0
    %2347 = vmatprep.subr.mxu0 0.0
    %2348 = vmatpush1.msra.mxu0 0.0
    %2349 = vmatprep.subr.mxu0 0.0
    %2350 = vmatpush1.msra.mxu0 0.0
    %2351 = vmatprep.subr.mxu0 0.0
    %2352 = vmatpush1.msra.mxu0 0.0
    %2353 = vmatprep.subr.mxu0 0.0
    %2354 = vmatpush1.msra.mxu0 0.0
    %2355 = vmatprep.subr.mxu0 0.0
    %2356 = vmatpush1.msra.mxu0 0.0
    %2357 = vmatprep.subr.mxu0 0.0
    %2358 = vmatpush1.msra.mxu0 0.0
    %2359 = vmatprep.subr.mxu0 0.0
    %2360 = vmatpush1.msra.mxu0 0.0
    %2361 = vmatprep.subr.mxu0 0.0
    %2362 = vmatpush1.msra.mxu0 0.0
    %2363 = vmatprep.subr.mxu0 0.0
    %2364 = vmatpush1.msra.mxu0 0.0
    %2365 = vmatprep.subr.mxu0 0.0
    %2366 = vmatpush1.msra.mxu0 0.0
    %2367 = vmatprep.subr.mxu0 0.0
    %2368 = vmatpush1.msra.mxu0 0.0
    %2369 = vmatprep.subr.mxu0 0.0
    %2370 = vmatpush1.msra.mxu0 0.0
    %2371 = vmatprep.subr.mxu0 0.0
    %2372 = vmatpush1.msra.mxu0 0.0
    %2373 = vmatprep.subr.mxu0 0.0
    %2374 = vmatpush1.msra.mxu0 0.0
    %2375 = vmatprep.subr.mxu0 0.0
    %2376 = vmatpush1.msra.mxu0 0.0
    %2377 = vmatprep.subr.mxu0 0.0
    %2378 = vmatpush1.msra.mxu0 0.0
    %2379 = vmatprep.subr.mxu0 0.0
    %2380 = vmatpush1.msra.mxu0 0.0
    %2381 = vmatprep.subr.mxu0 0.0
    %2382 = vmatpush1.msra.mxu0 0.0
    %2383 = vmatprep.subr.mxu0 0.0
    %2384 = vmatpush1.msra.mxu0 0.0
    %2385 = vmatprep.subr.mxu0 0.0
    %2386 = vmatpush1.msra.mxu0 0.0
    %2387 = vmatprep.subr.mxu0 0.0
    %2388 = vmatpush1.msra.mxu0 0.0
    %2389 = vmatprep.subr.mxu0 0.0
    %2390 = vmatpush1.msra.mxu0 0.0
    %2391 = vmatprep.subr.mxu0 0.0
    %2392 = vmatpush1.msra.mxu0 0.0
    %2393 = vmatprep.subr.mxu0 0.0
    %2394 = vmatpush1.msra.mxu0 0.0
    %2395 = vmatprep.subr.mxu0 0.0
    %2396 = vmatpush1.msra.mxu0 0.0
    %2397 = vmatprep.subr.mxu0 0.0
    %2398 = vmatpush1.msra.mxu0 0.0
    %2399 = vmatprep.subr.mxu0 0.0
    %2400 = vmatpush1.msra.mxu0 0.0
    %2401 = vmatprep.mubr.f32.mxu0 0.0
    %2402 = vmatmul.mubr.f32.gmra.mrb[0].mxu0 %v2332
    %v2403 = vpop.f32.mrb[0].mxu0
    %v2404 = vadd.f32 %v2320, %v2403
    %v2405 = vpop.f32.mrb[0].mxu0
    %2406 = vmatprep.mubr.f32.mxu0 0.0
    %2407 = vmatmul.mubr.f32.gmra.mrb[0].mxu0 %v2335
    %v2408 = vpop.f32.mrb[0].mxu0
    %v2409 = vadd.f32 %v2325, %v2408
    %v2410 = vpop.f32.mrb[0].mxu0
    %2411 = vdwg.mxu0
    %2412 = vrot.lane.b32.xlu0 %v1585, 112
    %v2413 = vpop.permute.xlu0 %2412
    %2414 = vrot.lane.b32.xlu0 %v1590, 112
    %v2415 = vpop.permute.xlu0 %2414
    %2416 = vrot.lane.b32.xlu0 %v1696, 112
    %v2417 = vpop.permute.xlu0 %2416
    %2418 = vrot.lane.b32.xlu0 %v1701, 112
    %v2419 = vpop.permute.xlu0 %2418
    %2420 = vrot.lane.b32.xlu0 %v1706, 112
    %v2421 = vpop.permute.xlu0 %2420
    %2422 = vrot.lane.b32.xlu0 %v1711, 112
    %v2423 = vpop.permute.xlu0 %2422
    %v2424 = vsel %vm321, %v2413, 0
    %v2426 = vsel %vm321, %v2415, 0
    %v2428 = vsel %vm321, %v2417, 0
    %v2430 = vsel %vm321, %v2419, 0
    %v2432 = vsel %vm321, %v2421, 0
    %v2434 = vsel %vm321, %v2423, 0
    %2436 = vmatprep.subr.mxu0 0.0
    %2437 = vmatpush1.xpose.msra.mxu0 %v2428
    %2438 = vmatprep.subr.mxu0 0.0
    %2439 = vmatpush1.xpose.msra.mxu0 %v2430
    %2440 = vmatprep.subr.mxu0 0.0
    %2441 = vmatpush1.xpose.msra.mxu0 %v2432
    %2442 = vmatprep.subr.mxu0 0.0
    %2443 = vmatpush1.xpose.msra.mxu0 %v2434
    %2444 = vmatprep.subr.mxu0 0.0
    %2445 = vmatpush1.xpose.msra.mxu0 0.0
    %2446 = vmatprep.subr.mxu0 0.0
    %2447 = vmatpush1.xpose.msra.mxu0 0.0
    %2448 = vmatprep.subr.mxu0 0.0
    %2449 = vmatpush1.xpose.msra.mxu0 0.0
    %2450 = vmatprep.subr.mxu0 0.0
    %2451 = vmatpush1.xpose.msra.mxu0 0.0
    %2452 = vmatprep.subr.mxu0 0.0
    %2453 = vmatpush1.xpose.msra.mxu0 0.0
    %2454 = vmatprep.subr.mxu0 0.0
    %2455 = vmatpush1.xpose.msra.mxu0 0.0
    %2456 = vmatprep.subr.mxu0 0.0
    %2457 = vmatpush1.xpose.msra.mxu0 0.0
    %2458 = vmatprep.subr.mxu0 0.0
    %2459 = vmatpush1.xpose.msra.mxu0 0.0
    %2460 = vmatprep.subr.mxu0 0.0
    %2461 = vmatpush1.xpose.msra.mxu0 0.0
    %2462 = vmatprep.subr.mxu0 0.0
    %2463 = vmatpush1.xpose.msra.mxu0 0.0
    %2464 = vmatprep.subr.mxu0 0.0
    %2465 = vmatpush1.xpose.msra.mxu0 0.0
    %2466 = vmatprep.subr.mxu0 0.0
    %2467 = vmatpush1.xpose.msra.mxu0 0.0
    %2468 = vmatprep.subr.mxu0 0.0
    %2469 = vmatpush1.xpose.msra.mxu0 0.0
    %2470 = vmatprep.subr.mxu0 0.0
    %2471 = vmatpush1.xpose.msra.mxu0 0.0
    %2472 = vmatprep.subr.mxu0 0.0
    %2473 = vmatpush1.xpose.msra.mxu0 0.0
    %2474 = vmatprep.subr.mxu0 0.0
    %2475 = vmatpush1.xpose.msra.mxu0 0.0
    %2476 = vmatprep.subr.mxu0 0.0
    %2477 = vmatpush1.xpose.msra.mxu0 0.0
    %2478 = vmatprep.subr.mxu0 0.0
    %2479 = vmatpush1.xpose.msra.mxu0 0.0
    %2480 = vmatprep.subr.mxu0 0.0
    %2481 = vmatpush1.xpose.msra.mxu0 0.0
    %2482 = vmatprep.subr.mxu0 0.0
    %2483 = vmatpush1.xpose.msra.mxu0 0.0
    %2484 = vmatprep.subr.mxu0 0.0
    %2485 = vmatpush1.xpose.msra.mxu0 0.0
    %2486 = vmatprep.subr.mxu0 0.0
    %2487 = vmatpush1.xpose.msra.mxu0 0.0
    %2488 = vmatprep.subr.mxu0 0.0
    %2489 = vmatpush1.xpose.msra.mxu0 0.0
    %2490 = vmatprep.subr.mxu0 0.0
    %2491 = vmatpush1.xpose.msra.mxu0 0.0
    %2492 = vmatprep.subr.mxu0 0.0
    %2493 = vmatpush1.xpose.msra.mxu0 0.0
    %2494 = vmatprep.subr.mxu0 0.0
    %2495 = vmatpush1.xpose.msra.mxu0 0.0
    %2496 = vmatprep.subr.mxu0 0.0
    %2497 = vmatpush1.xpose.msra.mxu0 0.0
    %2498 = vmatprep.subr.mxu0 0.0
    %2499 = vmatpush1.xpose.msra.mxu0 0.0
    %2500 = vmatprep.mubr.f32.mxu0 0.0
    %2501 = vmatmul.mubr.f32.gmra.mrb[0].mxu0 %v2424
    %v2502 = vpop.f32.mrb[0].mxu0
    %v2503 = vadd.f32 0.0, %v2502
    %v2504 = vpop.f32.mrb[0].mxu0
    %2505 = vmatprep.mubr.f32.mxu0 0.0
    %2506 = vmatmul.mubr.f32.gmra.mrb[0].mxu0 %v2426
    %v2507 = vpop.f32.mrb[0].mxu0
    %v2508 = vadd.f32 0.0, %v2507
    %v2509 = vpop.f32.mrb[0].mxu0
    %2510 = vdwg.mxu0
    %v2511 = vsel %vm124, %v2503, -1e+30
    %v2512 = vsel %vm125, %v2508, -1e+30
    %v2513 = vsel %vm132, %v2511, -inf
    %2514 = vmax.xlane.f32.xlu0 %v2513
    %v2515 = vpop.xlane.xlu0 %2514
    %v2516 = vsel %vm132, %v2512, -inf
    %2517 = vmax.xlane.f32.xlu0 %v2516
    %v2518 = vpop.xlane.xlu0 %2517
    %v2519 = vsub.f32 %v2511, %v2515
    %v2520 = vsub.f32 %v2512, %v2518
    %v2521 = vmul.f32 %v2519, 1.442695
    %v2522 = vpow.pop %v2521
    %v2523 = vmul.f32 %v2520, 1.442695
    %v2524 = vpow.pop %v2523
    %v2525 = vsel %vm132, %v2522, 0.0
    %2526 = vadd.xlane.f32.xlu0 %v2525
    %v2527 = vpop.xlane.xlu0 %2526
    %v2528 = vsel %vm132, %v2524, 0.0
    %2529 = vadd.xlane.f32.xlu0 %v2528
    %v2530 = vpop.xlane.xlu0 %2529
    %v2531 = vrcp.pop %v2527
    %v2532 = vrcp.pop %v2530
    %v2533 = vmul.f32 %v2522, %v2531
    %v2534 = vmul.f32 %v2524, %v2532
    %2535 = vrot.lane.b32.xlu0 %v1808, 112
    %v2536 = vpop.permute.xlu0 %2535
    %2537 = vrot.lane.b32.xlu0 %v1813, 112
    %v2538 = vpop.permute.xlu0 %2537
    %2539 = vrot.lane.b32.xlu0 %v1818, 112
    %v2540 = vpop.permute.xlu0 %2539
    %2541 = vrot.lane.b32.xlu0 %v1823, 112
    %v2542 = vpop.permute.xlu0 %2541
    %v2548 = vsel %vm132, %v2533, 0
    %v2551 = vsel %vm132, %v2534, 0
    %2553 = vmatprep.subr.mxu0 0.0
    %2554 = vmatpush1.msra.mxu0 %v2536
    %2555 = vmatprep.subr.mxu0 0.0
    %2556 = vmatpush1.msra.mxu0 %v2538
    %2557 = vmatprep.subr.mxu0 0.0
    %2558 = vmatpush1.msra.mxu0 %v2540
    %2559 = vmatprep.subr.mxu0 0.0
    %2560 = vmatpush1.msra.mxu0 %v2542
    %2561 = vmatprep.subr.mxu0 0.0
    %2562 = vmatpush1.msra.mxu0 0.0
    %2563 = vmatprep.subr.mxu0 0.0
    %2564 = vmatpush1.msra.mxu0 0.0
    %2565 = vmatprep.subr.mxu0 0.0
    %2566 = vmatpush1.msra.mxu0 0.0
    %2567 = vmatprep.subr.mxu0 0.0
    %2568 = vmatpush1.msra.mxu0 0.0
    %2569 = vmatprep.subr.mxu0 0.0
    %2570 = vmatpush1.msra.mxu0 0.0
    %2571 = vmatprep.subr.mxu0 0.0
    %2572 = vmatpush1.msra.mxu0 0.0
    %2573 = vmatprep.subr.mxu0 0.0
    %2574 = vmatpush1.msra.mxu0 0.0
    %2575 = vmatprep.subr.mxu0 0.0
    %2576 = vmatpush1.msra.mxu0 0.0
    %2577 = vmatprep.subr.mxu0 0.0
    %2578 = vmatpush1.msra.mxu0 0.0
    %2579 = vmatprep.subr.mxu0 0.0
    %2580 = vmatpush1.msra.mxu0 0.0
    %2581 = vmatprep.subr.mxu0 0.0
    %2582 = vmatpush1.msra.mxu0 0.0
    %2583 = vmatprep.subr.mxu0 0.0
    %2584 = vmatpush1.msra.mxu0 0.0
    %2585 = vmatprep.subr.mxu0 0.0
    %2586 = vmatpush1.msra.mxu0 0.0
    %2587 = vmatprep.subr.mxu0 0.0
    %2588 = vmatpush1.msra.mxu0 0.0
    %2589 = vmatprep.subr.mxu0 0.0
    %2590 = vmatpush1.msra.mxu0 0.0
    %2591 = vmatprep.subr.mxu0 0.0
    %2592 = vmatpush1.msra.mxu0 0.0
    %2593 = vmatprep.subr.mxu0 0.0
    %2594 = vmatpush1.msra.mxu0 0.0
    %2595 = vmatprep.subr.mxu0 0.0
    %2596 = vmatpush1.msra.mxu0 0.0
    %2597 = vmatprep.subr.mxu0 0.0
    %2598 = vmatpush1.msra.mxu0 0.0
    %2599 = vmatprep.subr.mxu0 0.0
    %2600 = vmatpush1.msra.mxu0 0.0
    %2601 = vmatprep.subr.mxu0 0.0
    %2602 = vmatpush1.msra.mxu0 0.0
    %2603 = vmatprep.subr.mxu0 0.0
    %2604 = vmatpush1.msra.mxu0 0.0
    %2605 = vmatprep.subr.mxu0 0.0
    %2606 = vmatpush1.msra.mxu0 0.0
    %2607 = vmatprep.subr.mxu0 0.0
    %2608 = vmatpush1.msra.mxu0 0.0
    %2609 = vmatprep.subr.mxu0 0.0
    %2610 = vmatpush1.msra.mxu0 0.0
    %2611 = vmatprep.subr.mxu0 0.0
    %2612 = vmatpush1.msra.mxu0 0.0
    %2613 = vmatprep.subr.mxu0 0.0
    %2614 = vmatpush1.msra.mxu0 0.0
    %2615 = vmatprep.subr.mxu0 0.0
    %2616 = vmatpush1.msra.mxu0 0.0
    %2617 = vmatprep.mubr.f32.mxu0 0.0
    %2618 = vmatmul.mubr.f32.gmra.mrb[0].mxu0 %v2548
    %v2619 = vpop.f32.mrb[0].mxu0
    %v2620 = vadd.f32 0.0, %v2619
    %v2621 = vpop.f32.mrb[0].mxu0
    %2622 = vmatprep.mubr.f32.mxu0 0.0
    %2623 = vmatmul.mubr.f32.gmra.mrb[0].mxu0 %v2551
    %v2624 = vpop.f32.mrb[0].mxu0
    %v2625 = vadd.f32 0.0, %v2624
    %v2626 = vpop.f32.mrb[0].mxu0
    %2627 = vdwg.mxu0
    %2628 = vrot.lane.b32.xlu0 %v101, 32
    %v2629 = vpop.permute.xlu0 %2628
    %v2632 = vsel %vm321, %v2620, 0
    %v2635 = vsel %vm321, %v2625, 0
    %2637 = vmatprep.subr.mxu0 0.0
    %2638 = vmatpush1.msra.mxu0 %v2629
    %2639 = vmatprep.subr.mxu0 0.0
    %2640 = vmatpush1.msra.mxu0 0.0
    %2641 = vmatprep.subr.mxu0 0.0
    %2642 = vmatpush1.msra.mxu0 0.0
    %2643 = vmatprep.subr.mxu0 0.0
    %2644 = vmatpush1.msra.mxu0 0.0
    %2645 = vmatprep.subr.mxu0 0.0
    %2646 = vmatpush1.msra.mxu0 0.0
    %2647 = vmatprep.subr.mxu0 0.0
    %2648 = vmatpush1.msra.mxu0 0.0
    %2649 = vmatprep.subr.mxu0 0.0
    %2650 = vmatpush1.msra.mxu0 0.0
    %2651 = vmatprep.subr.mxu0 0.0
    %2652 = vmatpush1.msra.mxu0 0.0
    %2653 = vmatprep.subr.mxu0 0.0
    %2654 = vmatpush1.msra.mxu0 0.0
    %2655 = vmatprep.subr.mxu0 0.0
    %2656 = vmatpush1.msra.mxu0 0.0
    %2657 = vmatprep.subr.mxu0 0.0
    %2658 = vmatpush1.msra.mxu0 0.0
    %2659 = vmatprep.subr.mxu0 0.0
    %2660 = vmatpush1.msra.mxu0 0.0
    %2661 = vmatprep.subr.mxu0 0.0
    %2662 = vmatpush1.msra.mxu0 0.0
    %2663 = vmatprep.subr.mxu0 0.0
    %2664 = vmatpush1.msra.mxu0 0.0
    %2665 = vmatprep.subr.mxu0 0.0
    %2666 = vmatpush1.msra.mxu0 0.0
    %2667 = vmatprep.subr.mxu0 0.0
    %2668 = vmatpush1.msra.mxu0 0.0
    %2669 = vmatprep.subr.mxu0 0.0
    %2670 = vmatpush1.msra.mxu0 0.0
    %2671 = vmatprep.subr.mxu0 0.0
    %2672 = vmatpush1.msra.mxu0 0.0
    %2673 = vmatprep.subr.mxu0 0.0
    %2674 = vmatpush1.msra.mxu0 0.0
    %2675 = vmatprep.subr.mxu0 0.0
    %2676 = vmatpush1.msra.mxu0 0.0
    %2677 = vmatprep.subr.mxu0 0.0
    %2678 = vmatpush1.msra.mxu0 0.0
    %2679 = vmatprep.subr.mxu0 0.0
    %2680 = vmatpush1.msra.mxu0 0.0
    %2681 = vmatprep.subr.mxu0 0.0
    %2682 = vmatpush1.msra.mxu0 0.0
    %2683 = vmatprep.subr.mxu0 0.0
    %2684 = vmatpush1.msra.mxu0 0.0
    %2685 = vmatprep.subr.mxu0 0.0
    %2686 = vmatpush1.msra.mxu0 0.0
    %2687 = vmatprep.subr.mxu0 0.0
    %2688 = vmatpush1.msra.mxu0 0.0
    %2689 = vmatprep.subr.mxu0 0.0
    %2690 = vmatpush1.msra.mxu0 0.0
    %2691 = vmatprep.subr.mxu0 0.0
    %2692 = vmatpush1.msra.mxu0 0.0
    %2693 = vmatprep.subr.mxu0 0.0
    %2694 = vmatpush1.msra.mxu0 0.0
    %2695 = vmatprep.subr.mxu0 0.0
    %2696 = vmatpush1.msra.mxu0 0.0
    %2697 = vmatprep.subr.mxu0 0.0
    %2698 = vmatpush1.msra.mxu0 0.0
    %2699 = vmatprep.subr.mxu0 0.0
    %2700 = vmatpush1.msra.mxu0 0.0
    %2701 = vmatprep.mubr.f32.mxu0 0.0
    %2702 = vmatmul.mubr.f32.gmra.mrb[0].mxu0 %v2632
    %v2703 = vpop.f32.mrb[0].mxu0
    %v2704 = vadd.f32 0.0, %v2703
    %v2705 = vpop.f32.mrb[0].mxu0
    %2706 = vmatprep.mubr.f32.mxu0 0.0
    %2707 = vmatmul.mubr.f32.gmra.mrb[0].mxu0 %v2635
    %v2708 = vpop.f32.mrb[0].mxu0
    %v2709 = vadd.f32 0.0, %v2708
    %v2710 = vpop.f32.mrb[0].mxu0
    %2711 = vdwg.mxu0
    %v2712 = vadd.f32 %v2404, %v2704
    %v2713 = vadd.f32 %v2409, %v2709
    %2714 = vrot.lane.b32.xlu0 %v1585, 104
    %v2715 = vpop.permute.xlu0 %2714
    %2716 = vrot.lane.b32.xlu0 %v1590, 104
    %v2717 = vpop.permute.xlu0 %2716
    %2718 = vrot.lane.b32.xlu0 %v1696, 104
    %v2719 = vpop.permute.xlu0 %2718
    %2720 = vrot.lane.b32.xlu0 %v1701, 104
    %v2721 = vpop.permute.xlu0 %2720
    %2722 = vrot.lane.b32.xlu0 %v1706, 104
    %v2723 = vpop.permute.xlu0 %2722
    %2724 = vrot.lane.b32.xlu0 %v1711, 104
    %v2725 = vpop.permute.xlu0 %2724
    %v2726 = vsel %vm321, %v2715, 0
    %v2728 = vsel %vm321, %v2717, 0
    %v2730 = vsel %vm321, %v2719, 0
    %v2732 = vsel %vm321, %v2721, 0
    %v2734 = vsel %vm321, %v2723, 0
    %v2736 = vsel %vm321, %v2725, 0
    %2738 = vmatprep.subr.mxu0 0.0
    %2739 = vmatpush1.xpose.msra.mxu0 %v2730
    %2740 = vmatprep.subr.mxu0 0.0
    %2741 = vmatpush1.xpose.msra.mxu0 %v2732
    %2742 = vmatprep.subr.mxu0 0.0
    %2743 = vmatpush1.xpose.msra.mxu0 %v2734
    %2744 = vmatprep.subr.mxu0 0.0
    %2745 = vmatpush1.xpose.msra.mxu0 %v2736
    %2746 = vmatprep.subr.mxu0 0.0
    %2747 = vmatpush1.xpose.msra.mxu0 0.0
    %2748 = vmatprep.subr.mxu0 0.0
    %2749 = vmatpush1.xpose.msra.mxu0 0.0
    %2750 = vmatprep.subr.mxu0 0.0
    %2751 = vmatpush1.xpose.msra.mxu0 0.0
    %2752 = vmatprep.subr.mxu0 0.0
    %2753 = vmatpush1.xpose.msra.mxu0 0.0
    %2754 = vmatprep.subr.mxu0 0.0
    %2755 = vmatpush1.xpose.msra.mxu0 0.0
    %2756 = vmatprep.subr.mxu0 0.0
    %2757 = vmatpush1.xpose.msra.mxu0 0.0
    %2758 = vmatprep.subr.mxu0 0.0
    %2759 = vmatpush1.xpose.msra.mxu0 0.0
    %2760 = vmatprep.subr.mxu0 0.0
    %2761 = vmatpush1.xpose.msra.mxu0 0.0
    %2762 = vmatprep.subr.mxu0 0.0
    %2763 = vmatpush1.xpose.msra.mxu0 0.0
    %2764 = vmatprep.subr.mxu0 0.0
    %2765 = vmatpush1.xpose.msra.mxu0 0.0
    %2766 = vmatprep.subr.mxu0 0.0
    %2767 = vmatpush1.xpose.msra.mxu0 0.0
    %2768 = vmatprep.subr.mxu0 0.0
    %2769 = vmatpush1.xpose.msra.mxu0 0.0
    %2770 = vmatprep.subr.mxu0 0.0
    %2771 = vmatpush1.xpose.msra.mxu0 0.0
    %2772 = vmatprep.subr.mxu0 0.0
    %2773 = vmatpush1.xpose.msra.mxu0 0.0
    %2774 = vmatprep.subr.mxu0 0.0
    %2775 = vmatpush1.xpose.msra.mxu0 0.0
    %2776 = vmatprep.subr.mxu0 0.0
    %2777 = vmatpush1.xpose.msra.mxu0 0.0
    %2778 = vmatprep.subr.mxu0 0.0
    %2779 = vmatpush1.xpose.msra.mxu0 0.0
    %2780 = vmatprep.subr.mxu0 0.0
    %2781 = vmatpush1.xpose.msra.mxu0 0.0
    %2782 = vmatprep.subr.mxu0 0.0
    %2783 = vmatpush1.xpose.msra.mxu0 0.0
    %2784 = vmatprep.subr.mxu0 0.0
    %2785 = vmatpush1.xpose.msra.mxu0 0.0
    %2786 = vmatprep.subr.mxu0 0.0
    %2787 = vmatpush1.xpose.msra.mxu0 0.0
    %2788 = vmatprep.subr.mxu0 0.0
    %2789 = vmatpush1.xpose.msra.mxu0 0.0
    %2790 = vmatprep.subr.mxu0 0.0
    %2791 = vmatpush1.xpose.msra.mxu0 0.0
    %2792 = vmatprep.subr.mxu0 0.0
    %2793 = vmatpush1.xpose.msra.mxu0 0.0
    %2794 = vmatprep.subr.mxu0 0.0
    %2795 = vmatpush1.xpose.msra.mxu0 0.0
    %2796 = vmatprep.subr.mxu0 0.0
    %2797 = vmatpush1.xpose.msra.mxu0 0.0
    %2798 = vmatprep.subr.mxu0 0.0
    %2799 = vmatpush1.xpose.msra.mxu0 0.0
    %2800 = vmatprep.subr.mxu0 0.0
    %2801 = vmatpush1.xpose.msra.mxu0 0.0
    %2802 = vmatprep.mubr.f32.mxu0 0.0
    %2803 = vmatmul.mubr.f32.gmra.mrb[0].mxu0 %v2726
    %v2804 = vpop.f32.mrb[0].mxu0
    %v2805 = vadd.f32 0.0, %v2804
    %v2806 = vpop.f32.mrb[0].mxu0
    %2807 = vmatprep.mubr.f32.mxu0 0.0
    %2808 = vmatmul.mubr.f32.gmra.mrb[0].mxu0 %v2728
    %v2809 = vpop.f32.mrb[0].mxu0
    %v2810 = vadd.f32 0.0, %v2809
    %v2811 = vpop.f32.mrb[0].mxu0
    %2812 = vdwg.mxu0
    %v2813 = vsel %vm124, %v2805, -1e+30
    %v2814 = vsel %vm125, %v2810, -1e+30
    %v2815 = vsel %vm132, %v2813, -inf
    %2816 = vmax.xlane.f32.xlu0 %v2815
    %v2817 = vpop.xlane.xlu0 %2816
    %v2818 = vsel %vm132, %v2814, -inf
    %2819 = vmax.xlane.f32.xlu0 %v2818
    %v2820 = vpop.xlane.xlu0 %2819
    %v2821 = vsub.f32 %v2813, %v2817
    %v2822 = vsub.f32 %v2814, %v2820
    %v2823 = vmul.f32 %v2821, 1.442695
    %v2824 = vpow.pop %v2823
    %v2825 = vmul.f32 %v2822, 1.442695
    %v2826 = vpow.pop %v2825
    %v2827 = vsel %vm132, %v2824, 0.0
    %2828 = vadd.xlane.f32.xlu0 %v2827
    %v2829 = vpop.xlane.xlu0 %2828
    %v2830 = vsel %vm132, %v2826, 0.0
    %2831 = vadd.xlane.f32.xlu0 %v2830
    %v2832 = vpop.xlane.xlu0 %2831
    %v2833 = vrcp.pop %v2829
    %v2834 = vrcp.pop %v2832
    %v2835 = vmul.f32 %v2824, %v2833
    %v2836 = vmul.f32 %v2826, %v2834
    %2837 = vrot.lane.b32.xlu0 %v1808, 104
    %v2838 = vpop.permute.xlu0 %2837
    %2839 = vrot.lane.b32.xlu0 %v1813, 104
    %v2840 = vpop.permute.xlu0 %2839
    %2841 = vrot.lane.b32.xlu0 %v1818, 104
    %v2842 = vpop.permute.xlu0 %2841
    %2843 = vrot.lane.b32.xlu0 %v1823, 104
    %v2844 = vpop.permute.xlu0 %2843
    %v2850 = vsel %vm132, %v2835, 0
    %v2853 = vsel %vm132, %v2836, 0
    %2855 = vmatprep.subr.mxu0 0.0
    %2856 = vmatpush1.msra.mxu0 %v2838
    %2857 = vmatprep.subr.mxu0 0.0
    %2858 = vmatpush1.msra.mxu0 %v2840
    %2859 = vmatprep.subr.mxu0 0.0
    %2860 = vmatpush1.msra.mxu0 %v2842
    %2861 = vmatprep.subr.mxu0 0.0
    %2862 = vmatpush1.msra.mxu0 %v2844
    %2863 = vmatprep.subr.mxu0 0.0
    %2864 = vmatpush1.msra.mxu0 0.0
    %2865 = vmatprep.subr.mxu0 0.0
    %2866 = vmatpush1.msra.mxu0 0.0
    %2867 = vmatprep.subr.mxu0 0.0
    %2868 = vmatpush1.msra.mxu0 0.0
    %2869 = vmatprep.subr.mxu0 0.0
    %2870 = vmatpush1.msra.mxu0 0.0
    %2871 = vmatprep.subr.mxu0 0.0
    %2872 = vmatpush1.msra.mxu0 0.0
    %2873 = vmatprep.subr.mxu0 0.0
    %2874 = vmatpush1.msra.mxu0 0.0
    %2875 = vmatprep.subr.mxu0 0.0
    %2876 = vmatpush1.msra.mxu0 0.0
    %2877 = vmatprep.subr.mxu0 0.0
    %2878 = vmatpush1.msra.mxu0 0.0
    %2879 = vmatprep.subr.mxu0 0.0
    %2880 = vmatpush1.msra.mxu0 0.0
    %2881 = vmatprep.subr.mxu0 0.0
    %2882 = vmatpush1.msra.mxu0 0.0
    %2883 = vmatprep.subr.mxu0 0.0
    %2884 = vmatpush1.msra.mxu0 0.0
    %2885 = vmatprep.subr.mxu0 0.0
    %2886 = vmatpush1.msra.mxu0 0.0
    %2887 = vmatprep.subr.mxu0 0.0
    %2888 = vmatpush1.msra.mxu0 0.0
    %2889 = vmatprep.subr.mxu0 0.0
    %2890 = vmatpush1.msra.mxu0 0.0
    %2891 = vmatprep.subr.mxu0 0.0
    %2892 = vmatpush1.msra.mxu0 0.0
    %2893 = vmatprep.subr.mxu0 0.0
    %2894 = vmatpush1.msra.mxu0 0.0
    %2895 = vmatprep.subr.mxu0 0.0
    %2896 = vmatpush1.msra.mxu0 0.0
    %2897 = vmatprep.subr.mxu0 0.0
    %2898 = vmatpush1.msra.mxu0 0.0
    %2899 = vmatprep.subr.mxu0 0.0
    %2900 = vmatpush1.msra.mxu0 0.0
    %2901 = vmatprep.subr.mxu0 0.0
    %2902 = vmatpush1.msra.mxu0 0.0
    %2903 = vmatprep.subr.mxu0 0.0
    %2904 = vmatpush1.msra.mxu0 0.0
    %2905 = vmatprep.subr.mxu0 0.0
    %2906 = vmatpush1.msra.mxu0 0.0
    %2907 = vmatprep.subr.mxu0 0.0
    %2908 = vmatpush1.msra.mxu0 0.0
    %2909 = vmatprep.subr.mxu0 0.0
    %2910 = vmatpush1.msra.mxu0 0.0
    %2911 = vmatprep.subr.mxu0 0.0
    %2912 = vmatpush1.msra.mxu0 0.0
    %2913 = vmatprep.subr.mxu0 0.0
    %2914 = vmatpush1.msra.mxu0 0.0
    %2915 = vmatprep.subr.mxu0 0.0
    %2916 = vmatpush1.msra.mxu0 0.0
    %2917 = vmatprep.subr.mxu0 0.0
    %2918 = vmatpush1.msra.mxu0 0.0
    %2919 = vmatprep.mubr.f32.mxu0 0.0
    %2920 = vmatmul.mubr.f32.gmra.mrb[0].mxu0 %v2850
    %v2921 = vpop.f32.mrb[0].mxu0
    %v2922 = vadd.f32 0.0, %v2921
    %v2923 = vpop.f32.mrb[0].mxu0
    %2924 = vmatprep.mubr.f32.mxu0 0.0
    %2925 = vmatmul.mubr.f32.gmra.mrb[0].mxu0 %v2853
    %v2926 = vpop.f32.mrb[0].mxu0
    %v2927 = vadd.f32 0.0, %v2926
    %v2928 = vpop.f32.mrb[0].mxu0
    %2929 = vdwg.mxu0
    %2930 = vrot.lane.b32.xlu0 %v104, 32
    %v2931 = vpop.permute.xlu0 %2930
    %v2934 = vsel %vm321, %v2922, 0
    %v2937 = vsel %vm321, %v2927, 0
    %2939 = vmatprep.subr.mxu0 0.0
    %2940 = vmatpush1.msra.mxu0 %v2931
    %2941 = vmatprep.subr.mxu0 0.0
    %2942 = vmatpush1.msra.mxu0 0.0
    %2943 = vmatprep.subr.mxu0 0.0
    %2944 = vmatpush1.msra.mxu0 0.0
    %2945 = vmatprep.subr.mxu0 0.0
    %2946 = vmatpush1.msra.mxu0 0.0
    %2947 = vmatprep.subr.mxu0 0.0
    %2948 = vmatpush1.msra.mxu0 0.0
    %2949 = vmatprep.subr.mxu0 0.0
    %2950 = vmatpush1.msra.mxu0 0.0
    %2951 = vmatprep.subr.mxu0 0.0
    %2952 = vmatpush1.msra.mxu0 0.0
    %2953 = vmatprep.subr.mxu0 0.0
    %2954 = vmatpush1.msra.mxu0 0.0
    %2955 = vmatprep.subr.mxu0 0.0
    %2956 = vmatpush1.msra.mxu0 0.0
    %2957 = vmatprep.subr.mxu0 0.0
    %2958 = vmatpush1.msra.mxu0 0.0
    %2959 = vmatprep.subr.mxu0 0.0
    %2960 = vmatpush1.msra.mxu0 0.0
    %2961 = vmatprep.subr.mxu0 0.0
    %2962 = vmatpush1.msra.mxu0 0.0
    %2963 = vmatprep.subr.mxu0 0.0
    %2964 = vmatpush1.msra.mxu0 0.0
    %2965 = vmatprep.subr.mxu0 0.0
    %2966 = vmatpush1.msra.mxu0 0.0
    %2967 = vmatprep.subr.mxu0 0.0
    %2968 = vmatpush1.msra.mxu0 0.0
    %2969 = vmatprep.subr.mxu0 0.0
    %2970 = vmatpush1.msra.mxu0 0.0
    %2971 = vmatprep.subr.mxu0 0.0
    %2972 = vmatpush1.msra.mxu0 0.0
    %2973 = vmatprep.subr.mxu0 0.0
    %2974 = vmatpush1.msra.mxu0 0.0
    %2975 = vmatprep.subr.mxu0 0.0
    %2976 = vmatpush1.msra.mxu0 0.0
    %2977 = vmatprep.subr.mxu0 0.0
    %2978 = vmatpush1.msra.mxu0 0.0
    %2979 = vmatprep.subr.mxu0 0.0
    %2980 = vmatpush1.msra.mxu0 0.0
    %2981 = vmatprep.subr.mxu0 0.0
    %2982 = vmatpush1.msra.mxu0 0.0
    %2983 = vmatprep.subr.mxu0 0.0
    %2984 = vmatpush1.msra.mxu0 0.0
    %2985 = vmatprep.subr.mxu0 0.0
    %2986 = vmatpush1.msra.mxu0 0.0
    %2987 = vmatprep.subr.mxu0 0.0
    %2988 = vmatpush1.msra.mxu0 0.0
    %2989 = vmatprep.subr.mxu0 0.0
    %2990 = vmatpush1.msra.mxu0 0.0
    %2991 = vmatprep.subr.mxu0 0.0
    %2992 = vmatpush1.msra.mxu0 0.0
    %2993 = vmatprep.subr.mxu0 0.0
    %2994 = vmatpush1.msra.mxu0 0.0
    %2995 = vmatprep.subr.mxu0 0.0
    %2996 = vmatpush1.msra.mxu0 0.0
    %2997 = vmatprep.subr.mxu0 0.0
    %2998 = vmatpush1.msra.mxu0 0.0
    %2999 = vmatprep.subr.mxu0 0.0
    %3000 = vmatpush1.msra.mxu0 0.0
    %3001 = vmatprep.subr.mxu0 0.0
    %3002 = vmatpush1.msra.mxu0 0.0
    %3003 = vmatprep.mubr.f32.mxu0 0.0
    %3004 = vmatmul.mubr.f32.gmra.mrb[0].mxu0 %v2934
    %v3005 = vpop.f32.mrb[0].mxu0
    %v3006 = vadd.f32 0.0, %v3005
    %v3007 = vpop.f32.mrb[0].mxu0
    %3008 = vmatprep.mubr.f32.mxu0 0.0
    %3009 = vmatmul.mubr.f32.gmra.mrb[0].mxu0 %v2937
    %v3010 = vpop.f32.mrb[0].mxu0
    %v3011 = vadd.f32 0.0, %v3010
    %v3012 = vpop.f32.mrb[0].mxu0
    %3013 = vdwg.mxu0
    %v3014 = vadd.f32 %v2712, %v3006
    %v3015 = vadd.f32 %v2713, %v3011
    %v3016 = vlaneseq
    %v3017 = vshrl.u32 %v3016, 7
    %v3018 = vsub.s32 4, %v3017
    %v3019 = vrot.slane %v114, %v3018
    %v3020 = vadd.f32 %v3014, %v3019
    %v3021 = vadd.f32 %v3015, %v3019
    %v3022 = vadd.f32 %v1504, %v3020
    %v3023 = vadd.f32 %v1505, %v3021
    %v3024 = vsel %vm132, %v3022, 0.0
    %3025 = vadd.xlane.f32.xlu0 %v3024
    %v3026 = vpop.xlane.xlu0 %3025
    %v3027 = vsel %vm132, %v3023, 0.0
    %3028 = vadd.xlane.f32.xlu0 %v3027
    %v3029 = vpop.xlane.xlu0 %3028
    %v3030 = vmul.f32 %v3026, %v1473
    %v3031 = vmul.f32 %v3029, %v1473
    %v3032 = vsub.f32 %v3022, %v3030
    %v3033 = vsub.f32 %v3023, %v3031
    %v3034 = vmul.f32 %v3032, %v3032
    %v3035 = vmul.f32 %v3033, %v3033
    %v3036 = vsel %vm132, %v3034, 0.0
    %3037 = vadd.xlane.f32.xlu0 %v3036
    %v3038 = vpop.xlane.xlu0 %3037
    %v3039 = vsel %vm132, %v3035, 0.0
    %3040 = vadd.xlane.f32.xlu0 %v3039
    %v3041 = vpop.xlane.xlu0 %3040
    %v3042 = vmul.f32 %v3038, %v1473
    %v3043 = vmul.f32 %v3041, %v1473
    %v3044 = vadd.f32 %v3042, 1e-05
    %v3045 = vadd.f32 %v3043, 1e-05
    %v3046 = vrsqrt.pop %v3044
    %v3047 = vrsqrt.pop %v3045
    %v3048 = vmul.f32 %v3032, %v3046
    %v3049 = vmul.f32 %v3033, %v3047
    %v3050 = vlaneseq
    %v3051 = vshrl.u32 %v3050, 7
    %v3052 = vsub.s32 0, %v3051
    %v3053 = vrot.slane %v115, %v3052
    %v3054 = vmul.f32 %v3048, %v3053
    %v3055 = vmul.f32 %v3049, %v3053
    %v3056 = vlaneseq
    %v3057 = vshrl.u32 %v3056, 7
    %v3058 = vsub.s32 1, %v3057
    %v3059 = vrot.slane %v115, %v3058
    %v3060 = vadd.f32 %v3054, %v3059
    %v3061 = vadd.f32 %v3055, %v3059
    %v3062 = vlaneseq
    %v3063 = vshrl.u32 %v3062, 7
    %v3064 = vsub.s32 2, %v3063
    %v3065 = vrot.slane %v114, %v3064
    %v3067 = vsel %vm132, %v3060, 0
    %v3070 = vsel %vm132, %v3061, 0
    %3072 = vmatprep.subr.mxu0 0.0
    %3073 = vmatpush1.msra.mxu0 %v96
    %3074 = vmatprep.subr.mxu0 0.0
    %3075 = vmatpush1.msra.mxu0 %v99
    %3076 = vmatprep.subr.mxu0 0.0
    %3077 = vmatpush1.msra.mxu0 %v102
    %3078 = vmatprep.subr.mxu0 0.0
    %3079 = vmatpush1.msra.mxu0 %v105
    %3080 = vmatprep.subr.mxu0 0.0
    %3081 = vmatpush1.msra.mxu0 0.0
    %3082 = vmatprep.subr.mxu0 0.0
    %3083 = vmatpush1.msra.mxu0 0.0
    %3084 = vmatprep.subr.mxu0 0.0
    %3085 = vmatpush1.msra.mxu0 0.0
    %3086 = vmatprep.subr.mxu0 0.0
    %3087 = vmatpush1.msra.mxu0 0.0
    %3088 = vmatprep.subr.mxu0 0.0
    %3089 = vmatpush1.msra.mxu0 0.0
    %3090 = vmatprep.subr.mxu0 0.0
    %3091 = vmatpush1.msra.mxu0 0.0
    %3092 = vmatprep.subr.mxu0 0.0
    %3093 = vmatpush1.msra.mxu0 0.0
    %3094 = vmatprep.subr.mxu0 0.0
    %3095 = vmatpush1.msra.mxu0 0.0
    %3096 = vmatprep.subr.mxu0 0.0
    %3097 = vmatpush1.msra.mxu0 0.0
    %3098 = vmatprep.subr.mxu0 0.0
    %3099 = vmatpush1.msra.mxu0 0.0
    %3100 = vmatprep.subr.mxu0 0.0
    %3101 = vmatpush1.msra.mxu0 0.0
    %3102 = vmatprep.subr.mxu0 0.0
    %3103 = vmatpush1.msra.mxu0 0.0
    %3104 = vmatprep.subr.mxu0 0.0
    %3105 = vmatpush1.msra.mxu0 0.0
    %3106 = vmatprep.subr.mxu0 0.0
    %3107 = vmatpush1.msra.mxu0 0.0
    %3108 = vmatprep.subr.mxu0 0.0
    %3109 = vmatpush1.msra.mxu0 0.0
    %3110 = vmatprep.subr.mxu0 0.0
    %3111 = vmatpush1.msra.mxu0 0.0
    %3112 = vmatprep.subr.mxu0 0.0
    %3113 = vmatpush1.msra.mxu0 0.0
    %3114 = vmatprep.subr.mxu0 0.0
    %3115 = vmatpush1.msra.mxu0 0.0
    %3116 = vmatprep.subr.mxu0 0.0
    %3117 = vmatpush1.msra.mxu0 0.0
    %3118 = vmatprep.subr.mxu0 0.0
    %3119 = vmatpush1.msra.mxu0 0.0
    %3120 = vmatprep.subr.mxu0 0.0
    %3121 = vmatpush1.msra.mxu0 0.0
    %3122 = vmatprep.subr.mxu0 0.0
    %3123 = vmatpush1.msra.mxu0 0.0
    %3124 = vmatprep.subr.mxu0 0.0
    %3125 = vmatpush1.msra.mxu0 0.0
    %3126 = vmatprep.subr.mxu0 0.0
    %3127 = vmatpush1.msra.mxu0 0.0
    %3128 = vmatprep.subr.mxu0 0.0
    %3129 = vmatpush1.msra.mxu0 0.0
    %3130 = vmatprep.subr.mxu0 0.0
    %3131 = vmatpush1.msra.mxu0 0.0
    %3132 = vmatprep.subr.mxu0 0.0
    %3133 = vmatpush1.msra.mxu0 0.0
    %3134 = vmatprep.subr.mxu0 0.0
    %3135 = vmatpush1.msra.mxu0 0.0
    %3136 = vmatprep.mubr.f32.mxu0 0.0
    %3137 = vmatmul.mubr.f32.gmra.mrb[0].mxu0 %v3067
    %v3138 = vpop.f32.mrb[0].mxu0
    %v3139 = vadd.f32 %v3065, %v3138
    %v3140 = vpop.f32.mrb[0].mxu0
    %3141 = vmatprep.mubr.f32.mxu0 0.0
    %3142 = vmatmul.mubr.f32.gmra.mrb[0].mxu0 %v3070
    %v3143 = vpop.f32.mrb[0].mxu0
    %v3144 = vadd.f32 %v3065, %v3143
    %v3145 = vpop.f32.mrb[0].mxu0
    %3146 = vdwg.mxu0
    %v3147 = vmax.f32 %v3139, 0.0
    %v3148 = vmax.f32 %v3144, 0.0
    %v3149 = vlaneseq
    %v3150 = vshrl.u32 %v3149, 7
    %v3151 = vsub.s32 5, %v3150
    %v3152 = vrot.slane %v114, %v3151
    %vm3153 = vcmask 523264
    %v3155 = vsel %vm3153, %v3147, 0
    %v3158 = vsel %vm3153, %v3148, 0
    %3160 = vmatprep.subr.mxu0 0.0
    %3161 = vmatpush1.msra.mxu0 %v106
    %3162 = vmatprep.subr.mxu0 0.0
    %3163 = vmatpush1.msra.mxu0 %v107
    %3164 = vmatprep.subr.mxu0 0.0
    %3165 = vmatpush1.msra.mxu0 %v108
    %3166 = vmatprep.subr.mxu0 0.0
    %3167 = vmatpush1.msra.mxu0 %v109
    %3168 = vmatprep.subr.mxu0 0.0
    %3169 = vmatpush1.msra.mxu0 %v110
    %3170 = vmatprep.subr.mxu0 0.0
    %3171 = vmatpush1.msra.mxu0 %v111
    %3172 = vmatprep.subr.mxu0 0.0
    %3173 = vmatpush1.msra.mxu0 %v112
    %3174 = vmatprep.subr.mxu0 0.0
    %3175 = vmatpush1.msra.mxu0 %v113
    %3176 = vmatprep.subr.mxu0 0.0
    %3177 = vmatpush1.msra.mxu0 0.0
    %3178 = vmatprep.subr.mxu0 0.0
    %3179 = vmatpush1.msra.mxu0 0.0
    %3180 = vmatprep.subr.mxu0 0.0
    %3181 = vmatpush1.msra.mxu0 0.0
    %3182 = vmatprep.subr.mxu0 0.0
    %3183 = vmatpush1.msra.mxu0 0.0
    %3184 = vmatprep.subr.mxu0 0.0
    %3185 = vmatpush1.msra.mxu0 0.0
    %3186 = vmatprep.subr.mxu0 0.0
    %3187 = vmatpush1.msra.mxu0 0.0
    %3188 = vmatprep.subr.mxu0 0.0
    %3189 = vmatpush1.msra.mxu0 0.0
    %3190 = vmatprep.subr.mxu0 0.0
    %3191 = vmatpush1.msra.mxu0 0.0
    %3192 = vmatprep.subr.mxu0 0.0
    %3193 = vmatpush1.msra.mxu0 0.0
    %3194 = vmatprep.subr.mxu0 0.0
    %3195 = vmatpush1.msra.mxu0 0.0
    %3196 = vmatprep.subr.mxu0 0.0
    %3197 = vmatpush1.msra.mxu0 0.0
    %3198 = vmatprep.subr.mxu0 0.0
    %3199 = vmatpush1.msra.mxu0 0.0
    %3200 = vmatprep.subr.mxu0 0.0
    %3201 = vmatpush1.msra.mxu0 0.0
    %3202 = vmatprep.subr.mxu0 0.0
    %3203 = vmatpush1.msra.mxu0 0.0
    %3204 = vmatprep.subr.mxu0 0.0
    %3205 = vmatpush1.msra.mxu0 0.0
    %3206 = vmatprep.subr.mxu0 0.0
    %3207 = vmatpush1.msra.mxu0 0.0
    %3208 = vmatprep.subr.mxu0 0.0
    %3209 = vmatpush1.msra.mxu0 0.0
    %3210 = vmatprep.subr.mxu0 0.0
    %3211 = vmatpush1.msra.mxu0 0.0
    %3212 = vmatprep.subr.mxu0 0.0
    %3213 = vmatpush1.msra.mxu0 0.0
    %3214 = vmatprep.subr.mxu0 0.0
    %3215 = vmatpush1.msra.mxu0 0.0
    %3216 = vmatprep.subr.mxu0 0.0
    %3217 = vmatpush1.msra.mxu0 0.0
    %3218 = vmatprep.subr.mxu0 0.0
    %3219 = vmatpush1.msra.mxu0 0.0
    %3220 = vmatprep.subr.mxu0 0.0
    %3221 = vmatpush1.msra.mxu0 0.0
    %3222 = vmatprep.subr.mxu0 0.0
    %3223 = vmatpush1.msra.mxu0 0.0
    %3224 = vmatprep.mubr.f32.mxu0 0.0
    %3225 = vmatmul.mubr.f32.gmra.mrb[0].mxu0 %v3155
    %v3226 = vpop.f32.mrb[0].mxu0
    %v3227 = vadd.f32 %v3152, %v3226
    %v3228 = vpop.f32.mrb[0].mxu0
    %3229 = vmatprep.mubr.f32.mxu0 0.0
    %3230 = vmatmul.mubr.f32.gmra.mrb[0].mxu0 %v3158
    %v3231 = vpop.f32.mrb[0].mxu0
    %v3232 = vadd.f32 %v3152, %v3231
    %v3233 = vpop.f32.mrb[0].mxu0
    %3234 = vdwg.mxu0
    %v3235 = vadd.f32 %v3060, %v3227
    %v3236 = vadd.f32 %v3061, %v3232
    %v3237 = vsel %vm132, %v3235, 0.0
    %3238 = vadd.xlane.f32.xlu0 %v3237
    %v3239 = vpop.xlane.xlu0 %3238
    %v3240 = vsel %vm132, %v3236, 0.0
    %3241 = vadd.xlane.f32.xlu0 %v3240
    %v3242 = vpop.xlane.xlu0 %3241
    %v3243 = vmul.f32 %v3239, %v1473
    %v3244 = vmul.f32 %v3242, %v1473
    %v3245 = vsub.f32 %v3235, %v3243
    %v3246 = vsub.f32 %v3236, %v3244
    %v3247 = vmul.f32 %v3245, %v3245
    %v3248 = vmul.f32 %v3246, %v3246
    %v3249 = vsel %vm132, %v3247, 0.0
    %3250 = vadd.xlane.f32.xlu0 %v3249
    %v3251 = vpop.xlane.xlu0 %3250
    %v3252 = vsel %vm132, %v3248, 0.0
    %3253 = vadd.xlane.f32.xlu0 %v3252
    %v3254 = vpop.xlane.xlu0 %3253
    %v3255 = vmul.f32 %v3251, %v1473
    %v3256 = vmul.f32 %v3254, %v1473
    %v3257 = vadd.f32 %v3255, 1e-05
    %v3258 = vadd.f32 %v3256, 1e-05
    %v3259 = vrsqrt.pop %v3257
    %v3260 = vrsqrt.pop %v3258
    %v3261 = vmul.f32 %v3245, %v3259
    %v3262 = vmul.f32 %v3246, %v3260
    %v3263 = vlaneseq
    %v3264 = vshrl.u32 %v3263, 7
    %v3265 = vsub.s32 2, %v3264
    %v3266 = vrot.slane %v115, %v3265
    %v3267 = vmul.f32 %v3261, %v3266
    %v3268 = vmul.f32 %v3262, %v3266
    %v3269 = vlaneseq
    %v3270 = vshrl.u32 %v3269, 7
    %v3271 = vsub.s32 3, %v3270
    %v3272 = vrot.slane %v115, %v3271
    %v3273 = vadd.f32 %v3267, %v3272
    %v3274 = vadd.f32 %v3268, %v3272
    %3275 = vst.msk [vmem:[#allocation10] sm:$0xff] %vm132, %v3273
    %3276 = vst.msk [vmem:[#allocation10 + $0x8] sm:$0xff] %vm132, %v3274
    // Predicated region
    $region46: #{decoder_layer_forward.1} parent=1 // pred_check
      _
    $region47: #{decoder_layer_forward.1} parent=1 // pred_check_branch
      %3278 = sbr.rel (0) target = $region49
    $region48: #{decoder_layer_forward.1} parent=1 // pred_region
      %s3280 = ssub.s32 256, 256
      %3281 = vsyncadd [#allocation4], %s3280
      %s3282 = sshll.u32 [#allocation10], 4
      %s3283 = int_to_ptr.vmem [resolvable:$true] %s3282
      %3288 = dma.vmem_to_hbm [thread:$0]  %s3283, 256, %s7, [#allocation4], 128, 128, 8
    $region49: #{decoder_layer_forward.1} parent=1 // pred_fallthru
      _
    // Predicated region
    $region50: #{decoder_layer_forward.1} parent=1 // pred_check
      _
    $region51: #{decoder_layer_forward.1} parent=1 // pred_check_branch
      %3290 = sbr.rel (0) target = $region53
    $region52: #{decoder_layer_forward.1} parent=1 // pred_region
      %3291 = dma.done [#allocation4], 256
    $region53: #{decoder_layer_forward.1} parent=1 // pred_fallthru
      _
    %3292 = vsyncpa [#allocation3], 1
    %3293 = vsyncpa [#allocation6], 1
    %3294 = vsyncpa [#allocation9], 1
    %3295 = vsyncpa [#allocation4], 1

</llo_original>
